<compile_context>
chip_gen: v7x
topology: tpu7x:2x2x1
jax: 0.10.0
libtpu: 0.0.40
codegen_flags: <defaults>
</compile_context>

<pallas_src>
import functools

import jax
import jax.numpy as jnp
import numpy as np
from jax.experimental import pallas as pl
from jax.experimental.pallas import tpu as pltpu

NEG_SLOPE = 0.01   # nn.LeakyReLU default
IN_EPS = 1e-5      # nn.InstanceNorm2d default eps


# ---------------------------------------------------------------------------
# Fused Pallas kernel: all conv blocks + folded head, VMEM-resident
# ---------------------------------------------------------------------------
def _fused_encoder_kernel(*refs, layers, nb):
    """Whole VanillaEncoder forward for one batch block of `nb` samples.

    layers: tuple of (H, W, Cin, OH, OW, Cout, has_instance_norm) per conv.
    """
    n_layers = len(layers)
    it = iter(refs)
    x_ref = next(it)
    conv_refs = []
    for (_, _, _, _, _, _, has_in) in layers:
        w_ref = next(it)
        g_ref = next(it) if has_in else None
        b_ref = next(it) if has_in else None
        conv_refs.append((w_ref, g_ref, b_ref))
    head_w_ref = next(it)
    head_b_ref = next(it)
    ml_ref = next(it)
    pad_refs = [next(it) for _ in range(n_layers)]

    # Zero only the 1-pixel halo of each padded scratch; the interior is fully
    # overwritten below.  Done every grid step so the kernel remains correct if
    # the "parallel" batch axis is sharded across two TensorCores (v7x).
    # NOTE(v5e): interior writes start at W offset 1 (unaligned); aligning them
    # to a sublane boundary was reviewed as a minor further win and is skipped.
    for (hh, ww, c, _, _, _, _), pad in zip(layers, pad_refs):
        zrow = jnp.zeros((nb, ww + 2, c), jnp.float32)
        zcol = jnp.zeros((nb, hh + 2, c), jnp.float32)
        pad[:, 0, :, :] = zrow
        pad[:, hh + 1, :, :] = zrow
        pad[:, :, 0, :] = zcol
        pad[:, :, ww + 1, :] = zcol

    # Stage this block's input into layer 0's padded scratch interior.
    h0, w0 = layers[0][0], layers[0][1]
    pad_refs[0][:, 1:h0 + 1, 1:w0 + 1, :] = x_ref[...]

    act = None
    for li, (hh, ww, cin, oh, ow, cout, has_in) in enumerate(layers):
        w_ref, g_ref, b_ref = conv_refs[li]
        pad_ref = pad_refs[li]
        p = oh * ow

        # True im2col: gather the 9 shifted taps (stride-2 in H and W) and
        # concatenate along channels -> one MXU matmul with K = 9*Cin.
        taps = []
        for kh in range(3):
            h_idx = pl.ds(kh, oh, stride=2) if oh > 1 else pl.ds(kh, 1)
            for kw in range(3):
                w_idx = pl.ds(kw, ow, stride=2) if ow > 1 else pl.ds(kw, 1)
                taps.append(pad_ref[:, h_idx, w_idx, :])        # (nb,oh,ow,cin)
        lhs = jnp.concatenate(taps, axis=-1)                     # (nb,oh,ow,9cin)
        lhs = lhs.reshape(nb * p, 9 * cin).astype(jnp.bfloat16)
        y = jnp.dot(lhs, w_ref[...], preferred_element_type=jnp.float32)
        y = y.reshape(nb, p, cout)

        if has_in:
            # Per-sample InstanceNorm, two-pass (robust) biased variance, f32.
            inv_p = 1.0 / p
            mean = jnp.sum(y, axis=1, keepdims=True) * inv_p
            var = jnp.sum((y - mean) * (y - mean), axis=1, keepdims=True) * inv_p
            scale = g_ref[...].reshape(1, 1, cout) * jax.lax.rsqrt(var + IN_EPS)
            shift = b_ref[...].reshape(1, 1, cout) - mean * scale
            y = y * scale + shift
        y = jnp.where(y >= 0.0, y, NEG_SLOPE * y)                # LeakyReLU

        if li + 1 < n_layers:
            # Write the activation into the next layer's padded-scratch interior.
            pad_refs[li + 1][:, 1:oh + 1, 1:ow + 1, :] = y.reshape(nb, oh, ow, cout)
        else:
            # Flatten.  The final feature map is 1x1 here, so NHWC and NCHW
            # flatten orders agree.
            # TODO(synk): if the final feature map were larger than 1x1, this
            # flatten order would differ from PyTorch's NCHW nn.Flatten.
            act = y.reshape(nb, p * cout)

    # Head: Linear folded into [fc_mu | fc_logvar] on the host -> one matmul.
    ml = jnp.dot(act.astype(jnp.bfloat16), head_w_ref[...],
                 preferred_element_type=jnp.float32) + head_b_ref[...]
    ml_ref[:, 0, :] = ml


# ---------------------------------------------------------------------------
# Wrapper
# ---------------------------------------------------------------------------
def _layer_geometry(in_channels, out_channels_list, height, width):
    layers = []
    c, hh, ww = in_channels, height, width
    n = len(out_channels_list)
    for li, cout in enumerate(out_channels_list):
        assert hh % 2 == 0 and ww % 2 == 0, "spatial dims must stay even"
        oh, ow = hh // 2, ww // 2
        layers.append((hh, ww, c, oh, ow, cout, li < n - 1))
        c, hh, ww = cout, oh, ow
    assert hh == 1 and ww == 1, "Flatten->Linear expects a 1x1 final feature map"
    return tuple(layers)


def _fold_head(params):
    """Fold the Linear into fc_mu/fc_logvar (no nonlinearity between them)."""
    head_w = jnp.concatenate([params["mu_w"], params["lv_w"]], axis=1)   # (F, 2L)
    head_b = jnp.concatenate([params["mu_b"], params["lv_b"]], axis=1)   # (1, 2L)
    w = jnp.dot(params["lin_w"], head_w)                                  # f32
    b = jnp.dot(params["lin_b"], head_w) + head_b
    return w, b


def _tensorcores_per_chip():
    """2 on dual-TensorCore chips (v7x-style), else 1. Perf-only heuristic."""
    try:
        kind = jax.devices()[0].device_kind.lower()
        if "v7" in kind or "7x" in kind:
            return 2
    except Exception:
        pass
    return 1


@jax.jit
def vanilla_encoder_forward(x_nchw, params, eps):
    """Returns (mu, log_var, z). `eps` is the Uniform[0,1) reparam noise."""
    x = jnp.transpose(x_nchw, (0, 2, 3, 1)).astype(jnp.float32)     # NHWC
    n, height, width, cin = x.shape
    latent = params["mu_w"].shape[1]

    conv_ws = list(params["conv_w"]) + [params["out_conv_w"]]       # HWIO
    out_channels = [w.shape[-1] for w in conv_ws]
    layers = _layer_geometry(cin, out_channels, height, width)
    feat = out_channels[-1]

    # Generation-aware batch blocking: single grid step holding the whole batch
    # on single-TC chips; 2-way "parallel" split only when 2 TCs exist (v7x).
    if _tensorcores_per_chip() >= 2 and n >= 2 and n % 2 == 0:
        nb = n // 2
    else:
        nb = n
    n_blocks = n // nb

    inputs = [x]
    in_specs = [pl.BlockSpec((nb, height, width, cin), lambda b: (b, 0, 0, 0))]
    for li, (hh, ww, c, oh, ow, cout, has_in) in enumerate(layers):
        # (3,3,Cin,Cout) HWIO -> (9*Cin, Cout): rows ordered (kh, kw, cin),
        # matching the in-kernel tap-concatenation order.
        w_mat = conv_ws[li].reshape(9 * c, cout).astype(jnp.bfloat16)
        inputs.append(w_mat)
        in_specs.append(pl.BlockSpec((9 * c, cout), lambda b: (0, 0)))
        if has_in:
            inputs += [params["in_gamma"][li], params["in_beta"][li]]
            in_specs += [pl.BlockSpec((1, cout), lambda b: (0, 0))] * 2

    head_w, head_b = _fold_head(params)                              # f32
    inputs += [head_w.astype(jnp.bfloat16), head_b]
    in_specs += [pl.BlockSpec((feat, 2 * latent), lambda b: (0, 0)),
                 pl.BlockSpec((1, 2 * latent), lambda b: (0, 0))]

    out_shape = jax.ShapeDtypeStruct((n, 1, 2 * latent), jnp.float32)
    out_specs = pl.BlockSpec((nb, 1, 2 * latent), lambda b: (b, 0, 0))

    # NOTE(v7x scaling): each NHWC scratch pads its channel dim to 128 lanes,
    # so these stay ~2 MiB here but grow fast with batch/spatial size; fold W
    # into the lane dim or tile via DMA (and set vmem_limit_bytes) if scaled up.
    scratch_shapes = [pltpu.VMEM((nb, hh + 2, ww + 2, c), jnp.float32)
                      for (hh, ww, c, _, _, _, _) in layers]

    kernel = functools.partial(_fused_encoder_kernel, layers=layers, nb=nb)
    ml = pl.pallas_call(
        kernel,
        out_shape=out_shape,
        grid=(n_blocks,),
        in_specs=in_specs,
        out_specs=out_specs,
        scratch_shapes=scratch_shapes,
        compiler_params=pltpu.CompilerParams(
            dimension_semantics=("parallel",)),
    )(*inputs)

    ml = ml.reshape(n, 2 * latent)
    mu = ml[:, :latent]
    lv = ml[:, latent:]
    # Reparameterize (elementwise; XLA fuses it with the split above).
    z = eps * jnp.exp(0.5 * lv) + mu
    return mu, lv, z


# ---------------------------------------------------------------------------
# Pure-JAX reference (for correctness checks)
# ---------------------------------------------------------------------------
def reference_forward(x_nchw, params, eps, matmul_dtype=jnp.float32,
                      fold_head=False):
    h = jnp.transpose(x_nchw, (0, 2, 3, 1)).astype(jnp.float32)

    def conv(x, w):
        return jax.lax.conv_general_dilated(
            x.astype(matmul_dtype), w.astype(matmul_dtype), (2, 2),
            ((1, 1), (1, 1)), dimension_numbers=("NHWC", "HWIO", "NHWC"),
            preferred_element_type=jnp.float32)

    def dense(x, w, b):
        return jnp.dot(x.astype(matmul_dtype), w.astype(matmul_dtype),
                       preferred_element_type=jnp.float32) + b

    for w, g, b in zip(params["conv_w"], params["in_gamma"], params["in_beta"]):
        h = conv(h, w)
        mean = jnp.mean(h, axis=(1, 2), keepdims=True)
        var = jnp.var(h, axis=(1, 2), keepdims=True)
        h = (h - mean) / jnp.sqrt(var + IN_EPS)
        h = h * g.reshape(1, 1, 1, -1) + b.reshape(1, 1, 1, -1)
        h = jnp.where(h >= 0, h, NEG_SLOPE * h)
    h = conv(h, params["out_conv_w"])
    h = jnp.where(h >= 0, h, NEG_SLOPE * h)
    h = h.reshape(h.shape[0], -1)
    latent = params["mu_w"].shape[1]
    if fold_head:
        w_fold, b_fold = _fold_head(params)
        ml = dense(h, w_fold, b_fold)
        mu, lv = ml[:, :latent], ml[:, latent:]
    else:
        r = dense(h, params["lin_w"], params["lin_b"])
        mu = dense(r, params["mu_w"], params["mu_b"])
        lv = dense(r, params["lv_w"], params["lv_b"])
    z = eps * jnp.exp(0.5 * lv) + mu
    return mu, lv, z


# ---------------------------------------------------------------------------
# Deterministic parameter construction
# ---------------------------------------------------------------------------
def make_params(key, in_channels, latent_dim, hidden_dims):
    keys = iter(jax.random.split(key, 4 * len(hidden_dims) + 16))
    params = {"conv_w": [], "in_gamma": [], "in_beta": []}
    cin = in_channels
    for h_dim in hidden_dims[:-1]:
        params["conv_w"].append(
            0.1 * jax.random.normal(next(keys), (3, 3, cin, h_dim), jnp.float32))
        params["in_gamma"].append(
            1.0 + 0.05 * jax.random.normal(next(keys), (1, h_dim), jnp.float32))
        params["in_beta"].append(
            0.05 * jax.random.normal(next(keys), (1, h_dim), jnp.float32))
        cin = h_dim
    c_out = hidden_dims[-1]
    params["out_conv_w"] = 0.1 * jax.random.normal(
        next(keys), (3, 3, hidden_dims[-2], c_out), jnp.float32)
    # Linear weights stored as (in, out); y = x @ W + b matches PyTorch math.
    params["lin_w"] = 0.1 * jax.random.normal(next(keys), (c_out, c_out), jnp.float32)
    params["lin_b"] = 0.05 * jax.random.normal(next(keys), (1, c_out), jnp.float32)
    params["mu_w"] = 0.1 * jax.random.normal(next(keys), (c_out, latent_dim), jnp.float32)
    params["mu_b"] = 0.05 * jax.random.normal(next(keys), (1, latent_dim), jnp.float32)
    params["lv_w"] = 0.1 * jax.random.normal(next(keys), (c_out, latent_dim), jnp.float32)
    params["lv_b"] = 0.05 * jax.random.normal(next(keys), (1, latent_dim), jnp.float32)
    return params


# ---------------------------------------------------------------------------
if __name__ == "__main__":
    batch, in_channels, spatial = 2, 4, 16
    latent_dim = 32
    hidden_dims = [16, 32, 64, 128]   # 3 encoder blocks + output conv -> 1x1 spatial

    root = jax.random.PRNGKey(0)
    k_x, k_p, k_eps = jax.random.split(root, 3)

    x = jax.random.normal(k_x, (batch, in_channels, spatial, spatial), jnp.float32)
    params = make_params(k_p, in_channels, latent_dim, hidden_dims)
    # torch.rand_like -> Uniform[0,1) noise (passed in explicitly).
    eps = jax.random.uniform(k_eps, (batch, latent_dim), jnp.float32)

    mu, log_var, latent_z = jax.block_until_ready(
        vanilla_encoder_forward(x, params, eps))

    # Structural check vs. a reference using the same bf16-MXU + folded-head
    # precision choices.
    mu_b, lv_b, z_b = reference_forward(x, params, eps,
                                        matmul_dtype=jnp.bfloat16, fold_head=True)
    np.testing.assert_allclose(np.asarray(mu), np.asarray(mu_b), rtol=1e-2, atol=1e-2)
    np.testing.assert_allclose(np.asarray(log_var), np.asarray(lv_b), rtol=1e-2, atol=1e-2)
    np.testing.assert_allclose(np.asarray(latent_z), np.asarray(z_b), rtol=1e-2, atol=1e-2)

    # End-to-end sanity vs. full-f32, unfolded PyTorch-structured math
    # (looser: bf16 matmul operands by design).
    mu_f, lv_f, z_f = reference_forward(x, params, eps, matmul_dtype=jnp.float32)
    np.testing.assert_allclose(np.asarray(mu), np.asarray(mu_f), rtol=5e-2, atol=5e-2)
    np.testing.assert_allclose(np.asarray(log_var), np.asarray(lv_f), rtol=5e-2, atol=5e-2)
    np.testing.assert_allclose(np.asarray(latent_z), np.asarray(z_f), rtol=5e-2, atol=5e-2)

    print("KERNEL_OK")
</pallas_src>

<mosaic_0001>
module attributes {stable_mosaic.version = 11 : i64} {
  func.func @_fused_encoder_kernel(%arg0: i32, %arg1: memref<2x16x16x4xf32, #tpu.memory_space<vmem>>, %arg2: memref<36x16xbf16, #tpu.memory_space<vmem>>, %arg3: memref<1x16xf32, #tpu.memory_space<vmem>>, %arg4: memref<1x16xf32, #tpu.memory_space<vmem>>, %arg5: memref<144x32xbf16, #tpu.memory_space<vmem>>, %arg6: memref<1x32xf32, #tpu.memory_space<vmem>>, %arg7: memref<1x32xf32, #tpu.memory_space<vmem>>, %arg8: memref<288x64xbf16, #tpu.memory_space<vmem>>, %arg9: memref<1x64xf32, #tpu.memory_space<vmem>>, %arg10: memref<1x64xf32, #tpu.memory_space<vmem>>, %arg11: memref<576x128xbf16, #tpu.memory_space<vmem>>, %arg12: memref<128x64xbf16, #tpu.memory_space<vmem>>, %arg13: memref<1x64xf32, #tpu.memory_space<vmem>>, %arg14: memref<2x1x64xf32, #tpu.memory_space<vmem>>, %arg15: memref<2x18x18x4xf32, #tpu.memory_space<vmem>>, %arg16: memref<2x10x10x16xf32, #tpu.memory_space<vmem>>, %arg17: memref<2x6x6x32xf32, #tpu.memory_space<vmem>>, %arg18: memref<2x4x4x64xf32, #tpu.memory_space<vmem>>) attributes {dimension_semantics = [#tpu.dimension_semantics<parallel>], iteration_bounds = array<i64: 1>, scalar_prefetch = 0 : i64, scratch_operands = 4 : i64, tpu.core_type = #tpu.core_type<tc>, window_params = [{transform_indices = @transform_0, window_bounds = array<i64: 2, 16, 16, 4>}, {pipeline_mode = #tpu.pipeline_mode<synchronous>, transform_indices = @transform_1, window_bounds = array<i64: 36, 16>}, {pipeline_mode = #tpu.pipeline_mode<synchronous>, transform_indices = @transform_2, window_bounds = array<i64: 1, 16>}, {pipeline_mode = #tpu.pipeline_mode<synchronous>, transform_indices = @transform_3, window_bounds = array<i64: 1, 16>}, {pipeline_mode = #tpu.pipeline_mode<synchronous>, transform_indices = @transform_4, window_bounds = array<i64: 144, 32>}, {pipeline_mode = #tpu.pipeline_mode<synchronous>, transform_indices = @transform_5, window_bounds = array<i64: 1, 32>}, {pipeline_mode = #tpu.pipeline_mode<synchronous>, transform_indices = @transform_6, window_bounds = array<i64: 1, 32>}, {pipeline_mode = #tpu.pipeline_mode<synchronous>, transform_indices = @transform_7, window_bounds = array<i64: 288, 64>}, {pipeline_mode = #tpu.pipeline_mode<synchronous>, transform_indices = @transform_8, window_bounds = array<i64: 1, 64>}, {pipeline_mode = #tpu.pipeline_mode<synchronous>, transform_indices = @transform_9, window_bounds = array<i64: 1, 64>}, {pipeline_mode = #tpu.pipeline_mode<synchronous>, transform_indices = @transform_10, window_bounds = array<i64: 576, 128>}, {pipeline_mode = #tpu.pipeline_mode<synchronous>, transform_indices = @transform_11, window_bounds = array<i64: 128, 64>}, {pipeline_mode = #tpu.pipeline_mode<synchronous>, transform_indices = @transform_12, window_bounds = array<i64: 1, 64>}, {transform_indices = @transform_13, window_bounds = array<i64: 2, 1, 64>}]} {
    %cst = arith.constant 0.000000e+00 : f32
    %0 = vector.broadcast %cst : f32 to vector<2x18x4xf32>
    %cst_0 = arith.constant 0.000000e+00 : f32
    %1 = vector.broadcast %cst_0 : f32 to vector<2x18x4xf32>
    %c0 = arith.constant 0 : index
    %c0_1 = arith.constant 0 : index
    %c0_2 = arith.constant 0 : index
    %c0_3 = arith.constant 0 : index
    %2 = vector.load %arg15[%c0, %c0_1, %c0_2, %c0_3] : memref<2x18x18x4xf32, #tpu.memory_space<vmem>>, vector<2x1x18x4xf32>
    %3 = vector.shape_cast %2 : vector<2x1x18x4xf32> to vector<2x18x4xf32>
    %4 = vector.shape_cast %0 : vector<2x18x4xf32> to vector<2x1x18x4xf32>
    tpu.vector_store %arg15[%c0, %c0_1, %c0_2, %c0_3], %4 {strides = array<i32>} : memref<2x18x18x4xf32, #tpu.memory_space<vmem>>, vector<2x1x18x4xf32>,
    %c0_4 = arith.constant 0 : index
    %c17 = arith.constant 17 : index
    %c0_5 = arith.constant 0 : index
    %c0_6 = arith.constant 0 : index
    %5 = vector.load %arg15[%c0_4, %c17, %c0_5, %c0_6] : memref<2x18x18x4xf32, #tpu.memory_space<vmem>>, vector<2x1x18x4xf32>
    %6 = vector.shape_cast %5 : vector<2x1x18x4xf32> to vector<2x18x4xf32>
    %7 = vector.shape_cast %0 : vector<2x18x4xf32> to vector<2x1x18x4xf32>
    tpu.vector_store %arg15[%c0_4, %c17, %c0_5, %c0_6], %7 {strides = array<i32>} : memref<2x18x18x4xf32, #tpu.memory_space<vmem>>, vector<2x1x18x4xf32>,
    %c0_7 = arith.constant 0 : index
    %c0_8 = arith.constant 0 : index
    %c0_9 = arith.constant 0 : index
    %c0_10 = arith.constant 0 : index
    %8 = vector.load %arg15[%c0_7, %c0_8, %c0_9, %c0_10] : memref<2x18x18x4xf32, #tpu.memory_space<vmem>>, vector<2x18x1x4xf32>
    %9 = vector.shape_cast %8 : vector<2x18x1x4xf32> to vector<2x18x4xf32>
    %10 = vector.shape_cast %1 : vector<2x18x4xf32> to vector<2x18x1x4xf32>
    tpu.vector_store %arg15[%c0_7, %c0_8, %c0_9, %c0_10], %10 {strides = array<i32>} : memref<2x18x18x4xf32, #tpu.memory_space<vmem>>, vector<2x18x1x4xf32>,
    %c0_11 = arith.constant 0 : index
    %c0_12 = arith.constant 0 : index
    %c17_13 = arith.constant 17 : index
    %c0_14 = arith.constant 0 : index
    %11 = vector.load %arg15[%c0_11, %c0_12, %c17_13, %c0_14] : memref<2x18x18x4xf32, #tpu.memory_space<vmem>>, vector<2x18x1x4xf32>
    %12 = vector.shape_cast %11 : vector<2x18x1x4xf32> to vector<2x18x4xf32>
    %13 = vector.shape_cast %1 : vector<2x18x4xf32> to vector<2x18x1x4xf32>
    tpu.vector_store %arg15[%c0_11, %c0_12, %c17_13, %c0_14], %13 {strides = array<i32>} : memref<2x18x18x4xf32, #tpu.memory_space<vmem>>, vector<2x18x1x4xf32>,
    %cst_15 = arith.constant 0.000000e+00 : f32
    %14 = vector.broadcast %cst_15 : f32 to vector<2x10x16xf32>
    %cst_16 = arith.constant 0.000000e+00 : f32
    %15 = vector.broadcast %cst_16 : f32 to vector<2x10x16xf32>
    %c0_17 = arith.constant 0 : index
    %c0_18 = arith.constant 0 : index
    %c0_19 = arith.constant 0 : index
    %c0_20 = arith.constant 0 : index
    %16 = vector.load %arg16[%c0_17, %c0_18, %c0_19, %c0_20] : memref<2x10x10x16xf32, #tpu.memory_space<vmem>>, vector<2x1x10x16xf32>
    %17 = vector.shape_cast %16 : vector<2x1x10x16xf32> to vector<2x10x16xf32>
    %18 = vector.shape_cast %14 : vector<2x10x16xf32> to vector<2x1x10x16xf32>
    tpu.vector_store %arg16[%c0_17, %c0_18, %c0_19, %c0_20], %18 {strides = array<i32>} : memref<2x10x10x16xf32, #tpu.memory_space<vmem>>, vector<2x1x10x16xf32>,
    %c0_21 = arith.constant 0 : index
    %c9 = arith.constant 9 : index
    %c0_22 = arith.constant 0 : index
    %c0_23 = arith.constant 0 : index
    %19 = vector.load %arg16[%c0_21, %c9, %c0_22, %c0_23] : memref<2x10x10x16xf32, #tpu.memory_space<vmem>>, vector<2x1x10x16xf32>
    %20 = vector.shape_cast %19 : vector<2x1x10x16xf32> to vector<2x10x16xf32>
    %21 = vector.shape_cast %14 : vector<2x10x16xf32> to vector<2x1x10x16xf32>
    tpu.vector_store %arg16[%c0_21, %c9, %c0_22, %c0_23], %21 {strides = array<i32>} : memref<2x10x10x16xf32, #tpu.memory_space<vmem>>, vector<2x1x10x16xf32>,
    %c0_24 = arith.constant 0 : index
    %c0_25 = arith.constant 0 : index
    %c0_26 = arith.constant 0 : index
    %c0_27 = arith.constant 0 : index
    %22 = vector.load %arg16[%c0_24, %c0_25, %c0_26, %c0_27] : memref<2x10x10x16xf32, #tpu.memory_space<vmem>>, vector<2x10x1x16xf32>
    %23 = vector.shape_cast %22 : vector<2x10x1x16xf32> to vector<2x10x16xf32>
    %24 = vector.shape_cast %15 : vector<2x10x16xf32> to vector<2x10x1x16xf32>
    tpu.vector_store %arg16[%c0_24, %c0_25, %c0_26, %c0_27], %24 {strides = array<i32>} : memref<2x10x10x16xf32, #tpu.memory_space<vmem>>, vector<2x10x1x16xf32>,
    %c0_28 = arith.constant 0 : index
    %c0_29 = arith.constant 0 : index
    %c9_30 = arith.constant 9 : index
    %c0_31 = arith.constant 0 : index
    %25 = vector.load %arg16[%c0_28, %c0_29, %c9_30, %c0_31] : memref<2x10x10x16xf32, #tpu.memory_space<vmem>>, vector<2x10x1x16xf32>
    %26 = vector.shape_cast %25 : vector<2x10x1x16xf32> to vector<2x10x16xf32>
    %27 = vector.shape_cast %15 : vector<2x10x16xf32> to vector<2x10x1x16xf32>
    tpu.vector_store %arg16[%c0_28, %c0_29, %c9_30, %c0_31], %27 {strides = array<i32>} : memref<2x10x10x16xf32, #tpu.memory_space<vmem>>, vector<2x10x1x16xf32>,
    %cst_32 = arith.constant 0.000000e+00 : f32
    %28 = vector.broadcast %cst_32 : f32 to vector<2x6x32xf32>
    %cst_33 = arith.constant 0.000000e+00 : f32
    %29 = vector.broadcast %cst_33 : f32 to vector<2x6x32xf32>
    %c0_34 = arith.constant 0 : index
    %c0_35 = arith.constant 0 : index
    %c0_36 = arith.constant 0 : index
    %c0_37 = arith.constant 0 : index
    %30 = vector.load %arg17[%c0_34, %c0_35, %c0_36, %c0_37] : memref<2x6x6x32xf32, #tpu.memory_space<vmem>>, vector<2x1x6x32xf32>
    %31 = vector.shape_cast %30 : vector<2x1x6x32xf32> to vector<2x6x32xf32>
    %32 = vector.shape_cast %28 : vector<2x6x32xf32> to vector<2x1x6x32xf32>
    tpu.vector_store %arg17[%c0_34, %c0_35, %c0_36, %c0_37], %32 {strides = array<i32>} : memref<2x6x6x32xf32, #tpu.memory_space<vmem>>, vector<2x1x6x32xf32>,
    %c0_38 = arith.constant 0 : index
    %c5 = arith.constant 5 : index
    %c0_39 = arith.constant 0 : index
    %c0_40 = arith.constant 0 : index
    %33 = vector.load %arg17[%c0_38, %c5, %c0_39, %c0_40] : memref<2x6x6x32xf32, #tpu.memory_space<vmem>>, vector<2x1x6x32xf32>
    %34 = vector.shape_cast %33 : vector<2x1x6x32xf32> to vector<2x6x32xf32>
    %35 = vector.shape_cast %28 : vector<2x6x32xf32> to vector<2x1x6x32xf32>
    tpu.vector_store %arg17[%c0_38, %c5, %c0_39, %c0_40], %35 {strides = array<i32>} : memref<2x6x6x32xf32, #tpu.memory_space<vmem>>, vector<2x1x6x32xf32>,
    %c0_41 = arith.constant 0 : index
    %c0_42 = arith.constant 0 : index
    %c0_43 = arith.constant 0 : index
    %c0_44 = arith.constant 0 : index
    %36 = vector.load %arg17[%c0_41, %c0_42, %c0_43, %c0_44] : memref<2x6x6x32xf32, #tpu.memory_space<vmem>>, vector<2x6x1x32xf32>
    %37 = vector.shape_cast %36 : vector<2x6x1x32xf32> to vector<2x6x32xf32>
    %38 = vector.shape_cast %29 : vector<2x6x32xf32> to vector<2x6x1x32xf32>
    tpu.vector_store %arg17[%c0_41, %c0_42, %c0_43, %c0_44], %38 {strides = array<i32>} : memref<2x6x6x32xf32, #tpu.memory_space<vmem>>, vector<2x6x1x32xf32>,
    %c0_45 = arith.constant 0 : index
    %c0_46 = arith.constant 0 : index
    %c5_47 = arith.constant 5 : index
    %c0_48 = arith.constant 0 : index
    %39 = vector.load %arg17[%c0_45, %c0_46, %c5_47, %c0_48] : memref<2x6x6x32xf32, #tpu.memory_space<vmem>>, vector<2x6x1x32xf32>
    %40 = vector.shape_cast %39 : vector<2x6x1x32xf32> to vector<2x6x32xf32>
    %41 = vector.shape_cast %29 : vector<2x6x32xf32> to vector<2x6x1x32xf32>
    tpu.vector_store %arg17[%c0_45, %c0_46, %c5_47, %c0_48], %41 {strides = array<i32>} : memref<2x6x6x32xf32, #tpu.memory_space<vmem>>, vector<2x6x1x32xf32>,
    %cst_49 = arith.constant 0.000000e+00 : f32
    %42 = vector.broadcast %cst_49 : f32 to vector<2x4x64xf32>
    %cst_50 = arith.constant 0.000000e+00 : f32
    %43 = vector.broadcast %cst_50 : f32 to vector<2x4x64xf32>
    %c0_51 = arith.constant 0 : index
    %c0_52 = arith.constant 0 : index
    %c0_53 = arith.constant 0 : index
    %c0_54 = arith.constant 0 : index
    %44 = vector.load %arg18[%c0_51, %c0_52, %c0_53, %c0_54] : memref<2x4x4x64xf32, #tpu.memory_space<vmem>>, vector<2x1x4x64xf32>
    %45 = vector.shape_cast %44 : vector<2x1x4x64xf32> to vector<2x4x64xf32>
    %46 = vector.shape_cast %42 : vector<2x4x64xf32> to vector<2x1x4x64xf32>
    tpu.vector_store %arg18[%c0_51, %c0_52, %c0_53, %c0_54], %46 {strides = array<i32>} : memref<2x4x4x64xf32, #tpu.memory_space<vmem>>, vector<2x1x4x64xf32>,
    %c0_55 = arith.constant 0 : index
    %c3 = arith.constant 3 : index
    %c0_56 = arith.constant 0 : index
    %c0_57 = arith.constant 0 : index
    %47 = vector.load %arg18[%c0_55, %c3, %c0_56, %c0_57] : memref<2x4x4x64xf32, #tpu.memory_space<vmem>>, vector<2x1x4x64xf32>
    %48 = vector.shape_cast %47 : vector<2x1x4x64xf32> to vector<2x4x64xf32>
    %49 = vector.shape_cast %42 : vector<2x4x64xf32> to vector<2x1x4x64xf32>
    tpu.vector_store %arg18[%c0_55, %c3, %c0_56, %c0_57], %49 {strides = array<i32>} : memref<2x4x4x64xf32, #tpu.memory_space<vmem>>, vector<2x1x4x64xf32>,
    %c0_58 = arith.constant 0 : index
    %c0_59 = arith.constant 0 : index
    %c0_60 = arith.constant 0 : index
    %c0_61 = arith.constant 0 : index
    %50 = vector.load %arg18[%c0_58, %c0_59, %c0_60, %c0_61] : memref<2x4x4x64xf32, #tpu.memory_space<vmem>>, vector<2x4x1x64xf32>
    %51 = vector.shape_cast %50 : vector<2x4x1x64xf32> to vector<2x4x64xf32>
    %52 = vector.shape_cast %43 : vector<2x4x64xf32> to vector<2x4x1x64xf32>
    tpu.vector_store %arg18[%c0_58, %c0_59, %c0_60, %c0_61], %52 {strides = array<i32>} : memref<2x4x4x64xf32, #tpu.memory_space<vmem>>, vector<2x4x1x64xf32>,
    %c0_62 = arith.constant 0 : index
    %c0_63 = arith.constant 0 : index
    %c3_64 = arith.constant 3 : index
    %c0_65 = arith.constant 0 : index
    %53 = vector.load %arg18[%c0_62, %c0_63, %c3_64, %c0_65] : memref<2x4x4x64xf32, #tpu.memory_space<vmem>>, vector<2x4x1x64xf32>
    %54 = vector.shape_cast %53 : vector<2x4x1x64xf32> to vector<2x4x64xf32>
    %55 = vector.shape_cast %43 : vector<2x4x64xf32> to vector<2x4x1x64xf32>
    tpu.vector_store %arg18[%c0_62, %c0_63, %c3_64, %c0_65], %55 {strides = array<i32>} : memref<2x4x4x64xf32, #tpu.memory_space<vmem>>, vector<2x4x1x64xf32>,
    %c0_66 = arith.constant 0 : index
    %c0_67 = arith.constant 0 : index
    %c0_68 = arith.constant 0 : index
    %c0_69 = arith.constant 0 : index
    %56 = vector.load %arg1[%c0_66, %c0_67, %c0_68, %c0_69] : memref<2x16x16x4xf32, #tpu.memory_space<vmem>>, vector<2x16x16x4xf32>
    %c0_70 = arith.constant 0 : index
    %c1 = arith.constant 1 : index
    %c1_71 = arith.constant 1 : index
    %c0_72 = arith.constant 0 : index
    %57 = vector.load %arg15[%c0_70, %c1, %c1_71, %c0_72] : memref<2x18x18x4xf32, #tpu.memory_space<vmem>>, vector<2x16x16x4xf32>
    tpu.vector_store %arg15[%c0_70, %c1, %c1_71, %c0_72], %56 {strides = array<i32>} : memref<2x18x18x4xf32, #tpu.memory_space<vmem>>, vector<2x16x16x4xf32>,
    %c0_73 = arith.constant 0 : index
    %c0_74 = arith.constant 0 : index
    %c0_75 = arith.constant 0 : index
    %c0_76 = arith.constant 0 : index
    %58 = tpu.strided_load %arg15[%c0_73, %c0_74, %c0_75, %c0_76] {strides = array<i32: 1, 2, 2, 1>} : memref<2x18x18x4xf32, #tpu.memory_space<vmem>>, vector<2x8x8x4xf32>
    %c0_77 = arith.constant 0 : index
    %c0_78 = arith.constant 0 : index
    %c1_79 = arith.constant 1 : index
    %c0_80 = arith.constant 0 : index
    %59 = tpu.strided_load %arg15[%c0_77, %c0_78, %c1_79, %c0_80] {strides = array<i32: 1, 2, 2, 1>} : memref<2x18x18x4xf32, #tpu.memory_space<vmem>>, vector<2x8x8x4xf32>
    %c0_81 = arith.constant 0 : index
    %c0_82 = arith.constant 0 : index
    %c2 = arith.constant 2 : index
    %c0_83 = arith.constant 0 : index
    %60 = tpu.strided_load %arg15[%c0_81, %c0_82, %c2, %c0_83] {strides = array<i32: 1, 2, 2, 1>} : memref<2x18x18x4xf32, #tpu.memory_space<vmem>>, vector<2x8x8x4xf32>
    %c0_84 = arith.constant 0 : index
    %c1_85 = arith.constant 1 : index
    %c0_86 = arith.constant 0 : index
    %c0_87 = arith.constant 0 : index
    %61 = tpu.strided_load %arg15[%c0_84, %c1_85, %c0_86, %c0_87] {strides = array<i32: 1, 2, 2, 1>} : memref<2x18x18x4xf32, #tpu.memory_space<vmem>>, vector<2x8x8x4xf32>
    %c0_88 = arith.constant 0 : index
    %c1_89 = arith.constant 1 : index
    %c1_90 = arith.constant 1 : index
    %c0_91 = arith.constant 0 : index
    %62 = tpu.strided_load %arg15[%c0_88, %c1_89, %c1_90, %c0_91] {strides = array<i32: 1, 2, 2, 1>} : memref<2x18x18x4xf32, #tpu.memory_space<vmem>>, vector<2x8x8x4xf32>
    %c0_92 = arith.constant 0 : index
    %c1_93 = arith.constant 1 : index
    %c2_94 = arith.constant 2 : index
    %c0_95 = arith.constant 0 : index
    %63 = tpu.strided_load %arg15[%c0_92, %c1_93, %c2_94, %c0_95] {strides = array<i32: 1, 2, 2, 1>} : memref<2x18x18x4xf32, #tpu.memory_space<vmem>>, vector<2x8x8x4xf32>
    %c0_96 = arith.constant 0 : index
    %c2_97 = arith.constant 2 : index
    %c0_98 = arith.constant 0 : index
    %c0_99 = arith.constant 0 : index
    %64 = tpu.strided_load %arg15[%c0_96, %c2_97, %c0_98, %c0_99] {strides = array<i32: 1, 2, 2, 1>} : memref<2x18x18x4xf32, #tpu.memory_space<vmem>>, vector<2x8x8x4xf32>
    %c0_100 = arith.constant 0 : index
    %c2_101 = arith.constant 2 : index
    %c1_102 = arith.constant 1 : index
    %c0_103 = arith.constant 0 : index
    %65 = tpu.strided_load %arg15[%c0_100, %c2_101, %c1_102, %c0_103] {strides = array<i32: 1, 2, 2, 1>} : memref<2x18x18x4xf32, #tpu.memory_space<vmem>>, vector<2x8x8x4xf32>
    %c0_104 = arith.constant 0 : index
    %c2_105 = arith.constant 2 : index
    %c2_106 = arith.constant 2 : index
    %c0_107 = arith.constant 0 : index
    %66 = tpu.strided_load %arg15[%c0_104, %c2_105, %c2_106, %c0_107] {strides = array<i32: 1, 2, 2, 1>} : memref<2x18x18x4xf32, #tpu.memory_space<vmem>>, vector<2x8x8x4xf32>
    %67 = tpu.concatenate %58, %59, %60, %61, %62, %63, %64, %65, %66 in 3 : vector<2x8x8x4xf32>, vector<2x8x8x4xf32>, vector<2x8x8x4xf32>, vector<2x8x8x4xf32>, vector<2x8x8x4xf32>, vector<2x8x8x4xf32>, vector<2x8x8x4xf32>, vector<2x8x8x4xf32>, vector<2x8x8x4xf32> -> vector<2x8x8x36xf32>
    %68 = vector.shape_cast %67 : vector<2x8x8x36xf32> to vector<128x36xf32>
    %69 = arith.truncf %68 : vector<128x36xf32> to vector<128x36xbf16>
    %c0_108 = arith.constant 0 : index
    %c0_109 = arith.constant 0 : index
    %70 = vector.load %arg2[%c0_108, %c0_109] : memref<36x16xbf16, #tpu.memory_space<vmem>>, vector<36x16xbf16>
    %cst_110 = arith.constant dense<0.000000e+00> : vector<128x16xf32>
    %71 = tpu.matmul %69, %70, %cst_110 {dimension_numbers = #tpu.dot_dimension_numbers<[1], [0], [0], [1], [0, 0, 1, 1], [], []>} : vector<128x36xbf16>, vector<36x16xbf16>, vector<128x16xf32> -> vector<128x16xf32>
    %72 = vector.shape_cast %71 : vector<128x16xf32> to vector<2x64x16xf32>
    %cst_111 = arith.constant dense<0.000000e+00> : vector<2x16xf32>
    %73 = vector.multi_reduction <add>, %72, %cst_111 [1] : vector<2x64x16xf32> to vector<2x16xf32>
    %74 = vector.shape_cast %73 : vector<2x16xf32> to vector<2x1x16xf32>
    %cst_112 = arith.constant 1.562500e-02 : f32
    %75 = vector.broadcast %cst_112 : f32 to vector<2x1x16xf32>
    %76 = arith.mulf %74, %75 : vector<2x1x16xf32>
    %77 = vector.broadcast %76 : vector<2x1x16xf32> to vector<2x64x16xf32>
    %78 = arith.subf %72, %77 : vector<2x64x16xf32>
    %79 = vector.broadcast %76 : vector<2x1x16xf32> to vector<2x64x16xf32>
    %80 = arith.subf %72, %79 : vector<2x64x16xf32>
    %81 = arith.mulf %78, %80 : vector<2x64x16xf32>
    %cst_113 = arith.constant dense<0.000000e+00> : vector<2x16xf32>
    %82 = vector.multi_reduction <add>, %81, %cst_113 [1] : vector<2x64x16xf32> to vector<2x16xf32>
    %83 = vector.shape_cast %82 : vector<2x16xf32> to vector<2x1x16xf32>
    %cst_114 = arith.constant 1.562500e-02 : f32
    %84 = vector.broadcast %cst_114 : f32 to vector<2x1x16xf32>
    %85 = arith.mulf %83, %84 : vector<2x1x16xf32>
    %c0_115 = arith.constant 0 : index
    %c0_116 = arith.constant 0 : index
    %86 = vector.load %arg3[%c0_115, %c0_116] : memref<1x16xf32, #tpu.memory_space<vmem>>, vector<1x16xf32>
    %87 = vector.shape_cast %86 : vector<1x16xf32> to vector<1x1x16xf32>
    %cst_117 = arith.constant 9.99999974E-6 : f32
    %88 = vector.broadcast %cst_117 : f32 to vector<2x1x16xf32>
    %89 = arith.addf %85, %88 : vector<2x1x16xf32>
    %90 = math.rsqrt %89 : vector<2x1x16xf32>
    %91 = vector.broadcast %87 : vector<1x1x16xf32> to vector<2x1x16xf32>
    %92 = arith.mulf %91, %90 : vector<2x1x16xf32>
    %c0_118 = arith.constant 0 : index
    %c0_119 = arith.constant 0 : index
    %93 = vector.load %arg4[%c0_118, %c0_119] : memref<1x16xf32, #tpu.memory_space<vmem>>, vector<1x16xf32>
    %94 = vector.shape_cast %93 : vector<1x16xf32> to vector<1x1x16xf32>
    %95 = arith.mulf %76, %92 : vector<2x1x16xf32>
    %96 = vector.broadcast %94 : vector<1x1x16xf32> to vector<2x1x16xf32>
    %97 = arith.subf %96, %95 : vector<2x1x16xf32>
    %98 = vector.broadcast %92 : vector<2x1x16xf32> to vector<2x64x16xf32>
    %99 = arith.mulf %72, %98 : vector<2x64x16xf32>
    %100 = vector.broadcast %97 : vector<2x1x16xf32> to vector<2x64x16xf32>
    %101 = arith.addf %99, %100 : vector<2x64x16xf32>
    %cst_120 = arith.constant 0.000000e+00 : f32
    %102 = vector.broadcast %cst_120 : f32 to vector<2x64x16xf32>
    %103 = arith.cmpf oge, %101, %102 : vector<2x64x16xf32>
    %cst_121 = arith.constant 0.00999999977 : f32
    %104 = vector.broadcast %cst_121 : f32 to vector<2x64x16xf32>
    %105 = arith.mulf %104, %101 : vector<2x64x16xf32>
    %106 = arith.select %103, %101, %105 : vector<2x64x16xi1>, vector<2x64x16xf32>
    %107 = vector.shape_cast %106 : vector<2x64x16xf32> to vector<2x8x8x16xf32>
    %c0_122 = arith.constant 0 : index
    %c1_123 = arith.constant 1 : index
    %c1_124 = arith.constant 1 : index
    %c0_125 = arith.constant 0 : index
    %108 = vector.load %arg16[%c0_122, %c1_123, %c1_124, %c0_125] : memref<2x10x10x16xf32, #tpu.memory_space<vmem>>, vector<2x8x8x16xf32>
    tpu.vector_store %arg16[%c0_122, %c1_123, %c1_124, %c0_125], %107 {strides = array<i32>} : memref<2x10x10x16xf32, #tpu.memory_space<vmem>>, vector<2x8x8x16xf32>,
    %c0_126 = arith.constant 0 : index
    %c0_127 = arith.constant 0 : index
    %c0_128 = arith.constant 0 : index
    %c0_129 = arith.constant 0 : index
    %109 = tpu.strided_load %arg16[%c0_126, %c0_127, %c0_128, %c0_129] {strides = array<i32: 1, 2, 2, 1>} : memref<2x10x10x16xf32, #tpu.memory_space<vmem>>, vector<2x4x4x16xf32>
    %c0_130 = arith.constant 0 : index
    %c0_131 = arith.constant 0 : index
    %c1_132 = arith.constant 1 : index
    %c0_133 = arith.constant 0 : index
    %110 = tpu.strided_load %arg16[%c0_130, %c0_131, %c1_132, %c0_133] {strides = array<i32: 1, 2, 2, 1>} : memref<2x10x10x16xf32, #tpu.memory_space<vmem>>, vector<2x4x4x16xf32>
    %c0_134 = arith.constant 0 : index
    %c0_135 = arith.constant 0 : index
    %c2_136 = arith.constant 2 : index
    %c0_137 = arith.constant 0 : index
    %111 = tpu.strided_load %arg16[%c0_134, %c0_135, %c2_136, %c0_137] {strides = array<i32: 1, 2, 2, 1>} : memref<2x10x10x16xf32, #tpu.memory_space<vmem>>, vector<2x4x4x16xf32>
    %c0_138 = arith.constant 0 : index
    %c1_139 = arith.constant 1 : index
    %c0_140 = arith.constant 0 : index
    %c0_141 = arith.constant 0 : index
    %112 = tpu.strided_load %arg16[%c0_138, %c1_139, %c0_140, %c0_141] {strides = array<i32: 1, 2, 2, 1>} : memref<2x10x10x16xf32, #tpu.memory_space<vmem>>, vector<2x4x4x16xf32>
    %c0_142 = arith.constant 0 : index
    %c1_143 = arith.constant 1 : index
    %c1_144 = arith.constant 1 : index
    %c0_145 = arith.constant 0 : index
    %113 = tpu.strided_load %arg16[%c0_142, %c1_143, %c1_144, %c0_145] {strides = array<i32: 1, 2, 2, 1>} : memref<2x10x10x16xf32, #tpu.memory_space<vmem>>, vector<2x4x4x16xf32>
    %c0_146 = arith.constant 0 : index
    %c1_147 = arith.constant 1 : index
    %c2_148 = arith.constant 2 : index
    %c0_149 = arith.constant 0 : index
    %114 = tpu.strided_load %arg16[%c0_146, %c1_147, %c2_148, %c0_149] {strides = array<i32: 1, 2, 2, 1>} : memref<2x10x10x16xf32, #tpu.memory_space<vmem>>, vector<2x4x4x16xf32>
    %c0_150 = arith.constant 0 : index
    %c2_151 = arith.constant 2 : index
    %c0_152 = arith.constant 0 : index
    %c0_153 = arith.constant 0 : index
    %115 = tpu.strided_load %arg16[%c0_150, %c2_151, %c0_152, %c0_153] {strides = array<i32: 1, 2, 2, 1>} : memref<2x10x10x16xf32, #tpu.memory_space<vmem>>, vector<2x4x4x16xf32>
    %c0_154 = arith.constant 0 : index
    %c2_155 = arith.constant 2 : index
    %c1_156 = arith.constant 1 : index
    %c0_157 = arith.constant 0 : index
    %116 = tpu.strided_load %arg16[%c0_154, %c2_155, %c1_156, %c0_157] {strides = array<i32: 1, 2, 2, 1>} : memref<2x10x10x16xf32, #tpu.memory_space<vmem>>, vector<2x4x4x16xf32>
    %c0_158 = arith.constant 0 : index
    %c2_159 = arith.constant 2 : index
    %c2_160 = arith.constant 2 : index
    %c0_161 = arith.constant 0 : index
    %117 = tpu.strided_load %arg16[%c0_158, %c2_159, %c2_160, %c0_161] {strides = array<i32: 1, 2, 2, 1>} : memref<2x10x10x16xf32, #tpu.memory_space<vmem>>, vector<2x4x4x16xf32>
    %118 = tpu.concatenate %109, %110, %111, %112, %113, %114, %115, %116, %117 in 3 : vector<2x4x4x16xf32>, vector<2x4x4x16xf32>, vector<2x4x4x16xf32>, vector<2x4x4x16xf32>, vector<2x4x4x16xf32>, vector<2x4x4x16xf32>, vector<2x4x4x16xf32>, vector<2x4x4x16xf32>, vector<2x4x4x16xf32> -> vector<2x4x4x144xf32>
    %119 = vector.shape_cast %118 : vector<2x4x4x144xf32> to vector<32x144xf32>
    %120 = arith.truncf %119 : vector<32x144xf32> to vector<32x144xbf16>
    %c0_162 = arith.constant 0 : index
    %c0_163 = arith.constant 0 : index
    %121 = vector.load %arg5[%c0_162, %c0_163] : memref<144x32xbf16, #tpu.memory_space<vmem>>, vector<144x32xbf16>
    %cst_164 = arith.constant dense<0.000000e+00> : vector<32x32xf32>
    %122 = tpu.matmul %120, %121, %cst_164 {dimension_numbers = #tpu.dot_dimension_numbers<[1], [0], [0], [1], [0, 0, 1, 1], [], []>} : vector<32x144xbf16>, vector<144x32xbf16>, vector<32x32xf32> -> vector<32x32xf32>
    %123 = vector.shape_cast %122 : vector<32x32xf32> to vector<2x16x32xf32>
    %cst_165 = arith.constant dense<0.000000e+00> : vector<2x32xf32>
    %124 = vector.multi_reduction <add>, %123, %cst_165 [1] : vector<2x16x32xf32> to vector<2x32xf32>
    %125 = vector.shape_cast %124 : vector<2x32xf32> to vector<2x1x32xf32>
    %cst_166 = arith.constant 6.250000e-02 : f32
    %126 = vector.broadcast %cst_166 : f32 to vector<2x1x32xf32>
    %127 = arith.mulf %125, %126 : vector<2x1x32xf32>
    %128 = vector.broadcast %127 : vector<2x1x32xf32> to vector<2x16x32xf32>
    %129 = arith.subf %123, %128 : vector<2x16x32xf32>
    %130 = vector.broadcast %127 : vector<2x1x32xf32> to vector<2x16x32xf32>
    %131 = arith.subf %123, %130 : vector<2x16x32xf32>
    %132 = arith.mulf %129, %131 : vector<2x16x32xf32>
    %cst_167 = arith.constant dense<0.000000e+00> : vector<2x32xf32>
    %133 = vector.multi_reduction <add>, %132, %cst_167 [1] : vector<2x16x32xf32> to vector<2x32xf32>
    %134 = vector.shape_cast %133 : vector<2x32xf32> to vector<2x1x32xf32>
    %cst_168 = arith.constant 6.250000e-02 : f32
    %135 = vector.broadcast %cst_168 : f32 to vector<2x1x32xf32>
    %136 = arith.mulf %134, %135 : vector<2x1x32xf32>
    %c0_169 = arith.constant 0 : index
    %c0_170 = arith.constant 0 : index
    %137 = vector.load %arg6[%c0_169, %c0_170] : memref<1x32xf32, #tpu.memory_space<vmem>>, vector<1x32xf32>
    %138 = vector.shape_cast %137 : vector<1x32xf32> to vector<1x1x32xf32>
    %cst_171 = arith.constant 9.99999974E-6 : f32
    %139 = vector.broadcast %cst_171 : f32 to vector<2x1x32xf32>
    %140 = arith.addf %136, %139 : vector<2x1x32xf32>
    %141 = math.rsqrt %140 : vector<2x1x32xf32>
    %142 = vector.broadcast %138 : vector<1x1x32xf32> to vector<2x1x32xf32>
    %143 = arith.mulf %142, %141 : vector<2x1x32xf32>
    %c0_172 = arith.constant 0 : index
    %c0_173 = arith.constant 0 : index
    %144 = vector.load %arg7[%c0_172, %c0_173] : memref<1x32xf32, #tpu.memory_space<vmem>>, vector<1x32xf32>
    %145 = vector.shape_cast %144 : vector<1x32xf32> to vector<1x1x32xf32>
    %146 = arith.mulf %127, %143 : vector<2x1x32xf32>
    %147 = vector.broadcast %145 : vector<1x1x32xf32> to vector<2x1x32xf32>
    %148 = arith.subf %147, %146 : vector<2x1x32xf32>
    %149 = vector.broadcast %143 : vector<2x1x32xf32> to vector<2x16x32xf32>
    %150 = arith.mulf %123, %149 : vector<2x16x32xf32>
    %151 = vector.broadcast %148 : vector<2x1x32xf32> to vector<2x16x32xf32>
    %152 = arith.addf %150, %151 : vector<2x16x32xf32>
    %cst_174 = arith.constant 0.000000e+00 : f32
    %153 = vector.broadcast %cst_174 : f32 to vector<2x16x32xf32>
    %154 = arith.cmpf oge, %152, %153 : vector<2x16x32xf32>
    %cst_175 = arith.constant 0.00999999977 : f32
    %155 = vector.broadcast %cst_175 : f32 to vector<2x16x32xf32>
    %156 = arith.mulf %155, %152 : vector<2x16x32xf32>
    %157 = arith.select %154, %152, %156 : vector<2x16x32xi1>, vector<2x16x32xf32>
    %158 = vector.shape_cast %157 : vector<2x16x32xf32> to vector<2x4x4x32xf32>
    %c0_176 = arith.constant 0 : index
    %c1_177 = arith.constant 1 : index
    %c1_178 = arith.constant 1 : index
    %c0_179 = arith.constant 0 : index
    %159 = vector.load %arg17[%c0_176, %c1_177, %c1_178, %c0_179] : memref<2x6x6x32xf32, #tpu.memory_space<vmem>>, vector<2x4x4x32xf32>
    tpu.vector_store %arg17[%c0_176, %c1_177, %c1_178, %c0_179], %158 {strides = array<i32>} : memref<2x6x6x32xf32, #tpu.memory_space<vmem>>, vector<2x4x4x32xf32>,
    %c0_180 = arith.constant 0 : index
    %c0_181 = arith.constant 0 : index
    %c0_182 = arith.constant 0 : index
    %c0_183 = arith.constant 0 : index
    %160 = tpu.strided_load %arg17[%c0_180, %c0_181, %c0_182, %c0_183] {strides = array<i32: 1, 2, 2, 1>} : memref<2x6x6x32xf32, #tpu.memory_space<vmem>>, vector<2x2x2x32xf32>
    %c0_184 = arith.constant 0 : index
    %c0_185 = arith.constant 0 : index
    %c1_186 = arith.constant 1 : index
    %c0_187 = arith.constant 0 : index
    %161 = tpu.strided_load %arg17[%c0_184, %c0_185, %c1_186, %c0_187] {strides = array<i32: 1, 2, 2, 1>} : memref<2x6x6x32xf32, #tpu.memory_space<vmem>>, vector<2x2x2x32xf32>
    %c0_188 = arith.constant 0 : index
    %c0_189 = arith.constant 0 : index
    %c2_190 = arith.constant 2 : index
    %c0_191 = arith.constant 0 : index
    %162 = tpu.strided_load %arg17[%c0_188, %c0_189, %c2_190, %c0_191] {strides = array<i32: 1, 2, 2, 1>} : memref<2x6x6x32xf32, #tpu.memory_space<vmem>>, vector<2x2x2x32xf32>
    %c0_192 = arith.constant 0 : index
    %c1_193 = arith.constant 1 : index
    %c0_194 = arith.constant 0 : index
    %c0_195 = arith.constant 0 : index
    %163 = tpu.strided_load %arg17[%c0_192, %c1_193, %c0_194, %c0_195] {strides = array<i32: 1, 2, 2, 1>} : memref<2x6x6x32xf32, #tpu.memory_space<vmem>>, vector<2x2x2x32xf32>
    %c0_196 = arith.constant 0 : index
    %c1_197 = arith.constant 1 : index
    %c1_198 = arith.constant 1 : index
    %c0_199 = arith.constant 0 : index
    %164 = tpu.strided_load %arg17[%c0_196, %c1_197, %c1_198, %c0_199] {strides = array<i32: 1, 2, 2, 1>} : memref<2x6x6x32xf32, #tpu.memory_space<vmem>>, vector<2x2x2x32xf32>
    %c0_200 = arith.constant 0 : index
    %c1_201 = arith.constant 1 : index
    %c2_202 = arith.constant 2 : index
    %c0_203 = arith.constant 0 : index
    %165 = tpu.strided_load %arg17[%c0_200, %c1_201, %c2_202, %c0_203] {strides = array<i32: 1, 2, 2, 1>} : memref<2x6x6x32xf32, #tpu.memory_space<vmem>>, vector<2x2x2x32xf32>
    %c0_204 = arith.constant 0 : index
    %c2_205 = arith.constant 2 : index
    %c0_206 = arith.constant 0 : index
    %c0_207 = arith.constant 0 : index
    %166 = tpu.strided_load %arg17[%c0_204, %c2_205, %c0_206, %c0_207] {strides = array<i32: 1, 2, 2, 1>} : memref<2x6x6x32xf32, #tpu.memory_space<vmem>>, vector<2x2x2x32xf32>
    %c0_208 = arith.constant 0 : index
    %c2_209 = arith.constant 2 : index
    %c1_210 = arith.constant 1 : index
    %c0_211 = arith.constant 0 : index
    %167 = tpu.strided_load %arg17[%c0_208, %c2_209, %c1_210, %c0_211] {strides = array<i32: 1, 2, 2, 1>} : memref<2x6x6x32xf32, #tpu.memory_space<vmem>>, vector<2x2x2x32xf32>
    %c0_212 = arith.constant 0 : index
    %c2_213 = arith.constant 2 : index
    %c2_214 = arith.constant 2 : index
    %c0_215 = arith.constant 0 : index
    %168 = tpu.strided_load %arg17[%c0_212, %c2_213, %c2_214, %c0_215] {strides = array<i32: 1, 2, 2, 1>} : memref<2x6x6x32xf32, #tpu.memory_space<vmem>>, vector<2x2x2x32xf32>
    %169 = tpu.concatenate %160, %161, %162, %163, %164, %165, %166, %167, %168 in 3 : vector<2x2x2x32xf32>, vector<2x2x2x32xf32>, vector<2x2x2x32xf32>, vector<2x2x2x32xf32>, vector<2x2x2x32xf32>, vector<2x2x2x32xf32>, vector<2x2x2x32xf32>, vector<2x2x2x32xf32>, vector<2x2x2x32xf32> -> vector<2x2x2x288xf32>
    %170 = vector.shape_cast %169 : vector<2x2x2x288xf32> to vector<8x288xf32>
    %171 = arith.truncf %170 : vector<8x288xf32> to vector<8x288xbf16>
    %c0_216 = arith.constant 0 : index
    %c0_217 = arith.constant 0 : index
    %172 = vector.load %arg8[%c0_216, %c0_217] : memref<288x64xbf16, #tpu.memory_space<vmem>>, vector<288x64xbf16>
    %cst_218 = arith.constant dense<0.000000e+00> : vector<8x64xf32>
    %173 = tpu.matmul %171, %172, %cst_218 {dimension_numbers = #tpu.dot_dimension_numbers<[1], [0], [0], [1], [0, 0, 1, 1], [], []>} : vector<8x288xbf16>, vector<288x64xbf16>, vector<8x64xf32> -> vector<8x64xf32>
    %174 = vector.shape_cast %173 : vector<8x64xf32> to vector<2x4x64xf32>
    %cst_219 = arith.constant dense<0.000000e+00> : vector<2x64xf32>
    %175 = vector.multi_reduction <add>, %174, %cst_219 [1] : vector<2x4x64xf32> to vector<2x64xf32>
    %176 = vector.shape_cast %175 : vector<2x64xf32> to vector<2x1x64xf32>
    %cst_220 = arith.constant 2.500000e-01 : f32
    %177 = vector.broadcast %cst_220 : f32 to vector<2x1x64xf32>
    %178 = arith.mulf %176, %177 : vector<2x1x64xf32>
    %179 = vector.broadcast %178 : vector<2x1x64xf32> to vector<2x4x64xf32>
    %180 = arith.subf %174, %179 : vector<2x4x64xf32>
    %181 = vector.broadcast %178 : vector<2x1x64xf32> to vector<2x4x64xf32>
    %182 = arith.subf %174, %181 : vector<2x4x64xf32>
    %183 = arith.mulf %180, %182 : vector<2x4x64xf32>
    %cst_221 = arith.constant dense<0.000000e+00> : vector<2x64xf32>
    %184 = vector.multi_reduction <add>, %183, %cst_221 [1] : vector<2x4x64xf32> to vector<2x64xf32>
    %185 = vector.shape_cast %184 : vector<2x64xf32> to vector<2x1x64xf32>
    %cst_222 = arith.constant 2.500000e-01 : f32
    %186 = vector.broadcast %cst_222 : f32 to vector<2x1x64xf32>
    %187 = arith.mulf %185, %186 : vector<2x1x64xf32>
    %c0_223 = arith.constant 0 : index
    %c0_224 = arith.constant 0 : index
    %188 = vector.load %arg9[%c0_223, %c0_224] : memref<1x64xf32, #tpu.memory_space<vmem>>, vector<1x64xf32>
    %189 = vector.shape_cast %188 : vector<1x64xf32> to vector<1x1x64xf32>
    %cst_225 = arith.constant 9.99999974E-6 : f32
    %190 = vector.broadcast %cst_225 : f32 to vector<2x1x64xf32>
    %191 = arith.addf %187, %190 : vector<2x1x64xf32>
    %192 = math.rsqrt %191 : vector<2x1x64xf32>
    %193 = vector.broadcast %189 : vector<1x1x64xf32> to vector<2x1x64xf32>
    %194 = arith.mulf %193, %192 : vector<2x1x64xf32>
    %c0_226 = arith.constant 0 : index
    %c0_227 = arith.constant 0 : index
    %195 = vector.load %arg10[%c0_226, %c0_227] : memref<1x64xf32, #tpu.memory_space<vmem>>, vector<1x64xf32>
    %196 = vector.shape_cast %195 : vector<1x64xf32> to vector<1x1x64xf32>
    %197 = arith.mulf %178, %194 : vector<2x1x64xf32>
    %198 = vector.broadcast %196 : vector<1x1x64xf32> to vector<2x1x64xf32>
    %199 = arith.subf %198, %197 : vector<2x1x64xf32>
    %200 = vector.broadcast %194 : vector<2x1x64xf32> to vector<2x4x64xf32>
    %201 = arith.mulf %174, %200 : vector<2x4x64xf32>
    %202 = vector.broadcast %199 : vector<2x1x64xf32> to vector<2x4x64xf32>
    %203 = arith.addf %201, %202 : vector<2x4x64xf32>
    %cst_228 = arith.constant 0.000000e+00 : f32
    %204 = vector.broadcast %cst_228 : f32 to vector<2x4x64xf32>
    %205 = arith.cmpf oge, %203, %204 : vector<2x4x64xf32>
    %cst_229 = arith.constant 0.00999999977 : f32
    %206 = vector.broadcast %cst_229 : f32 to vector<2x4x64xf32>
    %207 = arith.mulf %206, %203 : vector<2x4x64xf32>
    %208 = arith.select %205, %203, %207 : vector<2x4x64xi1>, vector<2x4x64xf32>
    %209 = vector.shape_cast %208 : vector<2x4x64xf32> to vector<2x2x2x64xf32>
    %c0_230 = arith.constant 0 : index
    %c1_231 = arith.constant 1 : index
    %c1_232 = arith.constant 1 : index
    %c0_233 = arith.constant 0 : index
    %210 = vector.load %arg18[%c0_230, %c1_231, %c1_232, %c0_233] : memref<2x4x4x64xf32, #tpu.memory_space<vmem>>, vector<2x2x2x64xf32>
    tpu.vector_store %arg18[%c0_230, %c1_231, %c1_232, %c0_233], %209 {strides = array<i32>} : memref<2x4x4x64xf32, #tpu.memory_space<vmem>>, vector<2x2x2x64xf32>,
    %c0_234 = arith.constant 0 : index
    %c0_235 = arith.constant 0 : index
    %c0_236 = arith.constant 0 : index
    %c0_237 = arith.constant 0 : index
    %211 = vector.load %arg18[%c0_234, %c0_235, %c0_236, %c0_237] : memref<2x4x4x64xf32, #tpu.memory_space<vmem>>, vector<2x1x1x64xf32>
    %c0_238 = arith.constant 0 : index
    %c0_239 = arith.constant 0 : index
    %c1_240 = arith.constant 1 : index
    %c0_241 = arith.constant 0 : index
    %212 = vector.load %arg18[%c0_238, %c0_239, %c1_240, %c0_241] : memref<2x4x4x64xf32, #tpu.memory_space<vmem>>, vector<2x1x1x64xf32>
    %c0_242 = arith.constant 0 : index
    %c0_243 = arith.constant 0 : index
    %c2_244 = arith.constant 2 : index
    %c0_245 = arith.constant 0 : index
    %213 = vector.load %arg18[%c0_242, %c0_243, %c2_244, %c0_245] : memref<2x4x4x64xf32, #tpu.memory_space<vmem>>, vector<2x1x1x64xf32>
    %c0_246 = arith.constant 0 : index
    %c1_247 = arith.constant 1 : index
    %c0_248 = arith.constant 0 : index
    %c0_249 = arith.constant 0 : index
    %214 = vector.load %arg18[%c0_246, %c1_247, %c0_248, %c0_249] : memref<2x4x4x64xf32, #tpu.memory_space<vmem>>, vector<2x1x1x64xf32>
    %c0_250 = arith.constant 0 : index
    %c1_251 = arith.constant 1 : index
    %c1_252 = arith.constant 1 : index
    %c0_253 = arith.constant 0 : index
    %215 = vector.load %arg18[%c0_250, %c1_251, %c1_252, %c0_253] : memref<2x4x4x64xf32, #tpu.memory_space<vmem>>, vector<2x1x1x64xf32>
    %c0_254 = arith.constant 0 : index
    %c1_255 = arith.constant 1 : index
    %c2_256 = arith.constant 2 : index
    %c0_257 = arith.constant 0 : index
    %216 = vector.load %arg18[%c0_254, %c1_255, %c2_256, %c0_257] : memref<2x4x4x64xf32, #tpu.memory_space<vmem>>, vector<2x1x1x64xf32>
    %c0_258 = arith.constant 0 : index
    %c2_259 = arith.constant 2 : index
    %c0_260 = arith.constant 0 : index
    %c0_261 = arith.constant 0 : index
    %217 = vector.load %arg18[%c0_258, %c2_259, %c0_260, %c0_261] : memref<2x4x4x64xf32, #tpu.memory_space<vmem>>, vector<2x1x1x64xf32>
    %c0_262 = arith.constant 0 : index
    %c2_263 = arith.constant 2 : index
    %c1_264 = arith.constant 1 : index
    %c0_265 = arith.constant 0 : index
    %218 = vector.load %arg18[%c0_262, %c2_263, %c1_264, %c0_265] : memref<2x4x4x64xf32, #tpu.memory_space<vmem>>, vector<2x1x1x64xf32>
    %c0_266 = arith.constant 0 : index
    %c2_267 = arith.constant 2 : index
    %c2_268 = arith.constant 2 : index
    %c0_269 = arith.constant 0 : index
    %219 = vector.load %arg18[%c0_266, %c2_267, %c2_268, %c0_269] : memref<2x4x4x64xf32, #tpu.memory_space<vmem>>, vector<2x1x1x64xf32>
    %220 = tpu.concatenate %211, %212, %213, %214, %215, %216, %217, %218, %219 in 3 : vector<2x1x1x64xf32>, vector<2x1x1x64xf32>, vector<2x1x1x64xf32>, vector<2x1x1x64xf32>, vector<2x1x1x64xf32>, vector<2x1x1x64xf32>, vector<2x1x1x64xf32>, vector<2x1x1x64xf32>, vector<2x1x1x64xf32> -> vector<2x1x1x576xf32>
    %221 = vector.shape_cast %220 : vector<2x1x1x576xf32> to vector<2x576xf32>
    %222 = arith.truncf %221 : vector<2x576xf32> to vector<2x576xbf16>
    %c0_270 = arith.constant 0 : index
    %c0_271 = arith.constant 0 : index
    %223 = vector.load %arg11[%c0_270, %c0_271] : memref<576x128xbf16, #tpu.memory_space<vmem>>, vector<576x128xbf16>
    %cst_272 = arith.constant dense<0.000000e+00> : vector<2x128xf32>
    %224 = tpu.matmul %222, %223, %cst_272 {dimension_numbers = #tpu.dot_dimension_numbers<[1], [0], [0], [1], [0, 0, 1, 1], [], []>} : vector<2x576xbf16>, vector<576x128xbf16>, vector<2x128xf32> -> vector<2x128xf32>
    %225 = vector.shape_cast %224 : vector<2x128xf32> to vector<2x1x128xf32>
    %cst_273 = arith.constant 0.000000e+00 : f32
    %226 = vector.broadcast %cst_273 : f32 to vector<2x1x128xf32>
    %227 = arith.cmpf oge, %225, %226 : vector<2x1x128xf32>
    %cst_274 = arith.constant 0.00999999977 : f32
    %228 = vector.broadcast %cst_274 : f32 to vector<2x1x128xf32>
    %229 = arith.mulf %228, %225 : vector<2x1x128xf32>
    %230 = arith.select %227, %225, %229 : vector<2x1x128xi1>, vector<2x1x128xf32>
    %231 = vector.shape_cast %230 : vector<2x1x128xf32> to vector<2x128xf32>
    %232 = arith.truncf %231 : vector<2x128xf32> to vector<2x128xbf16>
    %c0_275 = arith.constant 0 : index
    %c0_276 = arith.constant 0 : index
    %233 = vector.load %arg12[%c0_275, %c0_276] : memref<128x64xbf16, #tpu.memory_space<vmem>>, vector<128x64xbf16>
    %cst_277 = arith.constant dense<0.000000e+00> : vector<2x64xf32>
    %234 = tpu.matmul %232, %233, %cst_277 {dimension_numbers = #tpu.dot_dimension_numbers<[1], [0], [0], [1], [0, 0, 1, 1], [], []>} : vector<2x128xbf16>, vector<128x64xbf16>, vector<2x64xf32> -> vector<2x64xf32>
    %c0_278 = arith.constant 0 : index
    %c0_279 = arith.constant 0 : index
    %235 = vector.load %arg13[%c0_278, %c0_279] : memref<1x64xf32, #tpu.memory_space<vmem>>, vector<1x64xf32>
    %236 = vector.broadcast %235 : vector<1x64xf32> to vector<2x64xf32>
    %237 = arith.addf %234, %236 : vector<2x64xf32>
    %c0_280 = arith.constant 0 : index
    %c0_281 = arith.constant 0 : index
    %c0_282 = arith.constant 0 : index
    %238 = vector.load %arg14[%c0_280, %c0_281, %c0_282] : memref<2x1x64xf32, #tpu.memory_space<vmem>>, vector<2x1x64xf32>
    %239 = vector.shape_cast %238 : vector<2x1x64xf32> to vector<2x64xf32>
    %240 = vector.shape_cast %237 : vector<2x64xf32> to vector<2x1x64xf32>
    tpu.vector_store %arg14[%c0_280, %c0_281, %c0_282], %240 {strides = array<i32>} : memref<2x1x64xf32, #tpu.memory_space<vmem>>, vector<2x1x64xf32>,
    return
  }
  func.func @transform_0(%arg0: i32) -> (i32, i32, i32, i32) {
    %c0_i32 = arith.constant 0 : i32
    %c0_i32_0 = arith.constant 0 : i32
    %c0_i32_1 = arith.constant 0 : i32
    %c0_i32_2 = arith.constant 0 : i32
    return %arg0, %c0_i32, %c0_i32_0, %c0_i32_1 : i32, i32, i32, i32
  }
  func.func @transform_1(%arg0: i32) -> (i32, i32) {
    %c0_i32 = arith.constant 0 : i32
    %c0_i32_0 = arith.constant 0 : i32
    %c0_i32_1 = arith.constant 0 : i32
    return %c0_i32, %c0_i32_0 : i32, i32
  }
  func.func @transform_2(%arg0: i32) -> (i32, i32) {
    %c0_i32 = arith.constant 0 : i32
    %c0_i32_0 = arith.constant 0 : i32
    %c0_i32_1 = arith.constant 0 : i32
    return %c0_i32, %c0_i32_0 : i32, i32
  }
  func.func @transform_3(%arg0: i32) -> (i32, i32) {
    %c0_i32 = arith.constant 0 : i32
    %c0_i32_0 = arith.constant 0 : i32
    %c0_i32_1 = arith.constant 0 : i32
    return %c0_i32, %c0_i32_0 : i32, i32
  }
  func.func @transform_4(%arg0: i32) -> (i32, i32) {
    %c0_i32 = arith.constant 0 : i32
    %c0_i32_0 = arith.constant 0 : i32
    %c0_i32_1 = arith.constant 0 : i32
    return %c0_i32, %c0_i32_0 : i32, i32
  }
  func.func @transform_5(%arg0: i32) -> (i32, i32) {
    %c0_i32 = arith.constant 0 : i32
    %c0_i32_0 = arith.constant 0 : i32
    %c0_i32_1 = arith.constant 0 : i32
    return %c0_i32, %c0_i32_0 : i32, i32
  }
  func.func @transform_6(%arg0: i32) -> (i32, i32) {
    %c0_i32 = arith.constant 0 : i32
    %c0_i32_0 = arith.constant 0 : i32
    %c0_i32_1 = arith.constant 0 : i32
    return %c0_i32, %c0_i32_0 : i32, i32
  }
  func.func @transform_7(%arg0: i32) -> (i32, i32) {
    %c0_i32 = arith.constant 0 : i32
    %c0_i32_0 = arith.constant 0 : i32
    %c0_i32_1 = arith.constant 0 : i32
    return %c0_i32, %c0_i32_0 : i32, i32
  }
  func.func @transform_8(%arg0: i32) -> (i32, i32) {
    %c0_i32 = arith.constant 0 : i32
    %c0_i32_0 = arith.constant 0 : i32
    %c0_i32_1 = arith.constant 0 : i32
    return %c0_i32, %c0_i32_0 : i32, i32
  }
  func.func @transform_9(%arg0: i32) -> (i32, i32) {
    %c0_i32 = arith.constant 0 : i32
    %c0_i32_0 = arith.constant 0 : i32
    %c0_i32_1 = arith.constant 0 : i32
    return %c0_i32, %c0_i32_0 : i32, i32
  }
  func.func @transform_10(%arg0: i32) -> (i32, i32) {
    %c0_i32 = arith.constant 0 : i32
    %c0_i32_0 = arith.constant 0 : i32
    %c0_i32_1 = arith.constant 0 : i32
    return %c0_i32, %c0_i32_0 : i32, i32
  }
  func.func @transform_11(%arg0: i32) -> (i32, i32) {
    %c0_i32 = arith.constant 0 : i32
    %c0_i32_0 = arith.constant 0 : i32
    %c0_i32_1 = arith.constant 0 : i32
    return %c0_i32, %c0_i32_0 : i32, i32
  }
  func.func @transform_12(%arg0: i32) -> (i32, i32) {
    %c0_i32 = arith.constant 0 : i32
    %c0_i32_0 = arith.constant 0 : i32
    %c0_i32_1 = arith.constant 0 : i32
    return %c0_i32, %c0_i32_0 : i32, i32
  }
  func.func @transform_13(%arg0: i32) -> (i32, i32, i32) {
    %c0_i32 = arith.constant 0 : i32
    %c0_i32_0 = arith.constant 0 : i32
    %c0_i32_1 = arith.constant 0 : i32
    return %arg0, %c0_i32, %c0_i32_0 : i32, i32, i32
  }
}

</mosaic_0001>

<llo_original>
// kernel: vanilla_encoder_forward.1
$region0: #{vanilla_encoder_forward.1}
  #allocation0 [shape = 'u32[]', space=smem, size = 0x4, offset = 0x4, fixed_abs, tag = 'smem constant byte address 0x4 - core index']
  #allocation1 [shape = 'u32[144,128]{1,0:T(1,128)}', space=vmem, size = 0x12000, scoped, tag = 'internal scratch']
  #allocation2 [shape = 'f32[2,18,18,4]{3,2,1,0:T(8,128)}', space=vmem, size = 0x6c000, scoped, tag = 'scratch operand']
  #allocation3 [shape = 'f32[2,10,10,16]{3,2,1,0:T(8,128)}', space=vmem, size = 0x28000, scoped, tag = 'scratch operand']
  #allocation4 [shape = 'f32[2,6,6,32]{3,2,1,0:T(8,128)}', space=vmem, size = 0xc000, scoped, tag = 'scratch operand']
  #allocation5 [shape = 'f32[2,4,4,64]{3,2,1,0:T(4,128)}', space=vmem, size = 0x4000, scoped, tag = 'scratch operand']
  %s0 = inlined_call_operand.vmem [shape: f32[2,16,16,4], index: 0, kind: input, shape index: {}]
  %s1 = inlined_call_operand.vmem [shape: bf16[36,16], index: 1, kind: input, shape index: {}]
  %s2 = inlined_call_operand.vmem [shape: f32[1,16], index: 2, kind: input, shape index: {}]
  %s3 = inlined_call_operand.vmem [shape: f32[1,16], index: 3, kind: input, shape index: {}]
  %s4 = inlined_call_operand.vmem [shape: bf16[144,32], index: 4, kind: input, shape index: {}]
  %s5 = inlined_call_operand.vmem [shape: f32[1,32], index: 5, kind: input, shape index: {}]
  %s6 = inlined_call_operand.vmem [shape: f32[1,32], index: 6, kind: input, shape index: {}]
  %s7 = inlined_call_operand.vmem [shape: bf16[288,64], index: 7, kind: input, shape index: {}]
  %s8 = inlined_call_operand.vmem [shape: f32[1,64], index: 8, kind: input, shape index: {}]
  %s9 = inlined_call_operand.vmem [shape: f32[1,64], index: 9, kind: input, shape index: {}]
  %s10 = inlined_call_operand.vmem [shape: bf16[576,128], index: 10, kind: input, shape index: {}]
  %s11 = inlined_call_operand.vmem [shape: bf16[128,64], index: 11, kind: input, shape index: {}]
  %s12 = inlined_call_operand.vmem [shape: f32[1,64], index: 12, kind: input, shape index: {}]
  %s13 = inlined_call_operand.vmem [shape: f32[2,1,64], index: 13, kind: output, shape index: {}]
  %s14 = sld [smem:[#allocation0]]
  $region62: #{vanilla_encoder_forward.1} parent=0
    _
  %s16 = ssub.s32 1, %s14
  %s17 = scalar_select 0, %s16, %s14
  // Predicated region
  $region2: #{vanilla_encoder_forward.1} parent=0 // pred_check
    _
  $region3: #{vanilla_encoder_forward.1} parent=0 // pred_check_branch
    %19 = sbr.rel (0) target = $region5
  $region4: #{vanilla_encoder_forward.1} parent=0 // pred_region
    _
  $region5: #{vanilla_encoder_forward.1} parent=0 // pred_fallthru
    _
  // Predicated region
  $region6: #{vanilla_encoder_forward.1} parent=0 // pred_check
    _
  $region7: #{vanilla_encoder_forward.1} parent=0 // pred_check_branch
    %21 = sbr.rel (0) target = $region9
  $region8: #{vanilla_encoder_forward.1} parent=0 // pred_region
    _
  $region9: #{vanilla_encoder_forward.1} parent=0 // pred_fallthru
    _
  // Predicated region
  $region10: #{vanilla_encoder_forward.1} parent=0 // pred_check
    _
  $region11: #{vanilla_encoder_forward.1} parent=0 // pred_check_branch
    %23 = sbr.rel (0) target = $region13
  $region12: #{vanilla_encoder_forward.1} parent=0 // pred_region
    _
  $region13: #{vanilla_encoder_forward.1} parent=0 // pred_fallthru
    _
  // Predicated region
  $region14: #{vanilla_encoder_forward.1} parent=0 // pred_check
    _
  $region15: #{vanilla_encoder_forward.1} parent=0 // pred_check_branch
    %25 = sbr.rel (0) target = $region17
  $region16: #{vanilla_encoder_forward.1} parent=0 // pred_region
    _
  $region17: #{vanilla_encoder_forward.1} parent=0 // pred_fallthru
    _
  // Predicated region
  $region18: #{vanilla_encoder_forward.1} parent=0 // pred_check
    _
  $region19: #{vanilla_encoder_forward.1} parent=0 // pred_check_branch
    %27 = sbr.rel (0) target = $region21
  $region20: #{vanilla_encoder_forward.1} parent=0 // pred_region
    _
  $region21: #{vanilla_encoder_forward.1} parent=0 // pred_fallthru
    _
  // Predicated region
  $region22: #{vanilla_encoder_forward.1} parent=0 // pred_check
    _
  $region23: #{vanilla_encoder_forward.1} parent=0 // pred_check_branch
    %29 = sbr.rel (0) target = $region25
  $region24: #{vanilla_encoder_forward.1} parent=0 // pred_region
    _
  $region25: #{vanilla_encoder_forward.1} parent=0 // pred_fallthru
    _
  // Predicated region
  $region26: #{vanilla_encoder_forward.1} parent=0 // pred_check
    _
  $region27: #{vanilla_encoder_forward.1} parent=0 // pred_check_branch
    %31 = sbr.rel (0) target = $region29
  $region28: #{vanilla_encoder_forward.1} parent=0 // pred_region
    _
  $region29: #{vanilla_encoder_forward.1} parent=0 // pred_fallthru
    _
  // Predicated region
  $region30: #{vanilla_encoder_forward.1} parent=0 // pred_check
    _
  $region31: #{vanilla_encoder_forward.1} parent=0 // pred_check_branch
    %33 = sbr.rel (0) target = $region33
  $region32: #{vanilla_encoder_forward.1} parent=0 // pred_region
    _
  $region33: #{vanilla_encoder_forward.1} parent=0 // pred_fallthru
    _
  // Predicated region
  $region34: #{vanilla_encoder_forward.1} parent=0 // pred_check
    _
  $region35: #{vanilla_encoder_forward.1} parent=0 // pred_check_branch
    %35 = sbr.rel (0) target = $region37
  $region36: #{vanilla_encoder_forward.1} parent=0 // pred_region
    _
  $region37: #{vanilla_encoder_forward.1} parent=0 // pred_fallthru
    _
  // Predicated region
  $region38: #{vanilla_encoder_forward.1} parent=0 // pred_check
    _
  $region39: #{vanilla_encoder_forward.1} parent=0 // pred_check_branch
    %37 = sbr.rel (0) target = $region41
  $region40: #{vanilla_encoder_forward.1} parent=0 // pred_region
    _
  $region41: #{vanilla_encoder_forward.1} parent=0 // pred_fallthru
    _
  // Predicated region
  $region42: #{vanilla_encoder_forward.1} parent=0 // pred_check
    _
  $region43: #{vanilla_encoder_forward.1} parent=0 // pred_check_branch
    %39 = sbr.rel (0) target = $region45
  $region44: #{vanilla_encoder_forward.1} parent=0 // pred_region
    _
  $region45: #{vanilla_encoder_forward.1} parent=0 // pred_fallthru
    _
  // Predicated region
  $region46: #{vanilla_encoder_forward.1} parent=0 // pred_check
    _
  $region47: #{vanilla_encoder_forward.1} parent=0 // pred_check_branch
    %41 = sbr.rel (0) target = $region49
  $region48: #{vanilla_encoder_forward.1} parent=0 // pred_region
    _
  $region49: #{vanilla_encoder_forward.1} parent=0 // pred_fallthru
    _
  // Predicated region
  $region50: #{vanilla_encoder_forward.1} parent=0 // pred_check
    _
  $region51: #{vanilla_encoder_forward.1} parent=0 // pred_check_branch
    %43 = sbr.rel (0) target = $region53
  $region52: #{vanilla_encoder_forward.1} parent=0 // pred_region
    _
  $region53: #{vanilla_encoder_forward.1} parent=0 // pred_fallthru
    _
  %vm45 = vcmask 31744
  %46 = vst.msk [vmem:[#allocation2] sm:$0xff] %vm45, 0.0
  %47 = vst.msk [vmem:[#allocation2 + $0x8] sm:$0xff] %vm45, 0.0
  %vm48 = vcmask 25600
  %49 = vst.msk [vmem:[#allocation2 + $0x10] sm:$0x3] %vm48, 0.0
  %50 = vst.msk [vmem:[#allocation2 + $0x1b0] sm:$0xff] %vm45, 0.0
  %51 = vst.msk [vmem:[#allocation2 + $0x1b8] sm:$0xff] %vm45, 0.0
  %52 = vst.msk [vmem:[#allocation2 + $0x1c0] sm:$0x3] %vm48, 0.0
  %s53 = scalar_lea.vmem [#allocation2], 408
  %54 = vst.msk [vmem:[%s53] sm:$0xff] %vm45, 0.0
  %55 = vst.msk [vmem:[%s53 + $0x8] sm:$0xff] %vm45, 0.0
  %56 = vst.msk [vmem:[%s53 + $0x10] sm:$0x3] %vm48, 0.0
  %57 = vst.msk [vmem:[%s53 + $0x1b0] sm:$0xff] %vm45, 0.0
  %58 = vst.msk [vmem:[%s53 + $0x1b8] sm:$0xff] %vm45, 0.0
  %59 = vst.msk [vmem:[%s53 + $0x1c0] sm:$0x3] %vm48, 0.0
  %vm60 = vcmask 24576
  %61 = vst.msk [vmem:[#allocation2] sm:$0x1] %vm60, 0.0
  %62 = vst.msk [vmem:[#allocation2 + $0x18] sm:$0x1] %vm60, 0.0
  %63 = vst.msk [vmem:[#allocation2 + $0x30] sm:$0x1] %vm60, 0.0
  %64 = vst.msk [vmem:[#allocation2 + $0x48] sm:$0x1] %vm60, 0.0
  %65 = vst.msk [vmem:[#allocation2 + $0x60] sm:$0x1] %vm60, 0.0
  %66 = vst.msk [vmem:[#allocation2 + $0x78] sm:$0x1] %vm60, 0.0
  %67 = vst.msk [vmem:[#allocation2 + $0x90] sm:$0x1] %vm60, 0.0
  %68 = vst.msk [vmem:[#allocation2 + $0xa8] sm:$0x1] %vm60, 0.0
  %69 = vst.msk [vmem:[#allocation2 + $0xc0] sm:$0x1] %vm60, 0.0
  %70 = vst.msk [vmem:[#allocation2 + $0xd8] sm:$0x1] %vm60, 0.0
  %71 = vst.msk [vmem:[#allocation2 + $0xf0] sm:$0x1] %vm60, 0.0
  %72 = vst.msk [vmem:[#allocation2 + $0x108] sm:$0x1] %vm60, 0.0
  %73 = vst.msk [vmem:[#allocation2 + $0x120] sm:$0x1] %vm60, 0.0
  %74 = vst.msk [vmem:[#allocation2 + $0x138] sm:$0x1] %vm60, 0.0
  %75 = vst.msk [vmem:[#allocation2 + $0x150] sm:$0x1] %vm60, 0.0
  %76 = vst.msk [vmem:[#allocation2 + $0x168] sm:$0x1] %vm60, 0.0
  %77 = vst.msk [vmem:[#allocation2 + $0x180] sm:$0x1] %vm60, 0.0
  %78 = vst.msk [vmem:[#allocation2 + $0x198] sm:$0x1] %vm60, 0.0
  %79 = vst.msk [vmem:[#allocation2 + $0x1b0] sm:$0x1] %vm60, 0.0
  %80 = vst.msk [vmem:[#allocation2 + $0x1c8] sm:$0x1] %vm60, 0.0
  %81 = vst.msk [vmem:[#allocation2 + $0x1e0] sm:$0x1] %vm60, 0.0
  %82 = vst.msk [vmem:[#allocation2 + $0x1f8] sm:$0x1] %vm60, 0.0
  %83 = vst.msk [vmem:[#allocation2 + $0x210] sm:$0x1] %vm60, 0.0
  %84 = vst.msk [vmem:[#allocation2 + $0x228] sm:$0x1] %vm60, 0.0
  %85 = vst.msk [vmem:[#allocation2 + $0x240] sm:$0x1] %vm60, 0.0
  %86 = vst.msk [vmem:[#allocation2 + $0x258] sm:$0x1] %vm60, 0.0
  %87 = vst.msk [vmem:[#allocation2 + $0x270] sm:$0x1] %vm60, 0.0
  %88 = vst.msk [vmem:[#allocation2 + $0x288] sm:$0x1] %vm60, 0.0
  %89 = vst.msk [vmem:[#allocation2 + $0x2a0] sm:$0x1] %vm60, 0.0
  %90 = vst.msk [vmem:[#allocation2 + $0x2b8] sm:$0x1] %vm60, 0.0
  %91 = vst.msk [vmem:[#allocation2 + $0x2d0] sm:$0x1] %vm60, 0.0
  %92 = vst.msk [vmem:[#allocation2 + $0x2e8] sm:$0x1] %vm60, 0.0
  %93 = vst.msk [vmem:[#allocation2 + $0x300] sm:$0x1] %vm60, 0.0
  %94 = vst.msk [vmem:[#allocation2 + $0x318] sm:$0x1] %vm60, 0.0
  %95 = vst.msk [vmem:[#allocation2 + $0x330] sm:$0x1] %vm60, 0.0
  %96 = vst.msk [vmem:[#allocation2 + $0x348] sm:$0x1] %vm60, 0.0
  %97 = vst.msk [vmem:[#allocation2 + $0x11] sm:$0x1] %vm60, 0.0
  %98 = vst.msk [vmem:[#allocation2 + $0x29] sm:$0x1] %vm60, 0.0
  %99 = vst.msk [vmem:[#allocation2 + $0x41] sm:$0x1] %vm60, 0.0
  %100 = vst.msk [vmem:[#allocation2 + $0x59] sm:$0x1] %vm60, 0.0
  %101 = vst.msk [vmem:[#allocation2 + $0x71] sm:$0x1] %vm60, 0.0
  %102 = vst.msk [vmem:[#allocation2 + $0x89] sm:$0x1] %vm60, 0.0
  %103 = vst.msk [vmem:[#allocation2 + $0xa1] sm:$0x1] %vm60, 0.0
  %104 = vst.msk [vmem:[#allocation2 + $0xb9] sm:$0x1] %vm60, 0.0
  %105 = vst.msk [vmem:[#allocation2 + $0xd1] sm:$0x1] %vm60, 0.0
  %106 = vst.msk [vmem:[#allocation2 + $0xe9] sm:$0x1] %vm60, 0.0
  %107 = vst.msk [vmem:[#allocation2 + $0x101] sm:$0x1] %vm60, 0.0
  %108 = vst.msk [vmem:[#allocation2 + $0x119] sm:$0x1] %vm60, 0.0
  %109 = vst.msk [vmem:[#allocation2 + $0x131] sm:$0x1] %vm60, 0.0
  %110 = vst.msk [vmem:[#allocation2 + $0x149] sm:$0x1] %vm60, 0.0
  %111 = vst.msk [vmem:[#allocation2 + $0x161] sm:$0x1] %vm60, 0.0
  %112 = vst.msk [vmem:[#allocation2 + $0x179] sm:$0x1] %vm60, 0.0
  %113 = vst.msk [vmem:[#allocation2 + $0x191] sm:$0x1] %vm60, 0.0
  %114 = vst.msk [vmem:[#allocation2 + $0x1a9] sm:$0x1] %vm60, 0.0
  %115 = vst.msk [vmem:[#allocation2 + $0x1c1] sm:$0x1] %vm60, 0.0
  %116 = vst.msk [vmem:[#allocation2 + $0x1d9] sm:$0x1] %vm60, 0.0
  %117 = vst.msk [vmem:[#allocation2 + $0x1f1] sm:$0x1] %vm60, 0.0
  %118 = vst.msk [vmem:[#allocation2 + $0x209] sm:$0x1] %vm60, 0.0
  %119 = vst.msk [vmem:[#allocation2 + $0x221] sm:$0x1] %vm60, 0.0
  %120 = vst.msk [vmem:[#allocation2 + $0x239] sm:$0x1] %vm60, 0.0
  %121 = vst.msk [vmem:[#allocation2 + $0x251] sm:$0x1] %vm60, 0.0
  %122 = vst.msk [vmem:[#allocation2 + $0x269] sm:$0x1] %vm60, 0.0
  %123 = vst.msk [vmem:[#allocation2 + $0x281] sm:$0x1] %vm60, 0.0
  %124 = vst.msk [vmem:[#allocation2 + $0x299] sm:$0x1] %vm60, 0.0
  %125 = vst.msk [vmem:[#allocation2 + $0x2b1] sm:$0x1] %vm60, 0.0
  %126 = vst.msk [vmem:[#allocation2 + $0x2c9] sm:$0x1] %vm60, 0.0
  %127 = vst.msk [vmem:[#allocation2 + $0x2e1] sm:$0x1] %vm60, 0.0
  %128 = vst.msk [vmem:[#allocation2 + $0x2f9] sm:$0x1] %vm60, 0.0
  %129 = vst.msk [vmem:[#allocation2 + $0x311] sm:$0x1] %vm60, 0.0
  %130 = vst.msk [vmem:[#allocation2 + $0x329] sm:$0x1] %vm60, 0.0
  %131 = vst.msk [vmem:[#allocation2 + $0x341] sm:$0x1] %vm60, 0.0
  %132 = vst.msk [vmem:[#allocation2 + $0x359] sm:$0x1] %vm60, 0.0
  %vm133 = vcmask 130048
  %134 = vst.msk [vmem:[#allocation3] sm:$0xff] %vm133, 0.0
  %vm135 = vcmask 123904
  %136 = vst.msk [vmem:[#allocation3 + $0x8] sm:$0x3] %vm135, 0.0
  %137 = vst.msk [vmem:[#allocation3 + $0xa0] sm:$0xff] %vm133, 0.0
  %138 = vst.msk [vmem:[#allocation3 + $0xa8] sm:$0x3] %vm135, 0.0
  %s139 = scalar_lea.vmem [#allocation3], 144
  %140 = vst.msk [vmem:[%s139] sm:$0xff] %vm133, 0.0
  %141 = vst.msk [vmem:[%s139 + $0x8] sm:$0x3] %vm135, 0.0
  %142 = vst.msk [vmem:[%s139 + $0xa0] sm:$0xff] %vm133, 0.0
  %143 = vst.msk [vmem:[%s139 + $0xa8] sm:$0x3] %vm135, 0.0
  %vm144 = vcmask 122880
  %145 = vst.msk [vmem:[#allocation3] sm:$0x1] %vm144, 0.0
  %146 = vst.msk [vmem:[#allocation3 + $0x10] sm:$0x1] %vm144, 0.0
  %147 = vst.msk [vmem:[#allocation3 + $0x20] sm:$0x1] %vm144, 0.0
  %148 = vst.msk [vmem:[#allocation3 + $0x30] sm:$0x1] %vm144, 0.0
  %149 = vst.msk [vmem:[#allocation3 + $0x40] sm:$0x1] %vm144, 0.0
  %150 = vst.msk [vmem:[#allocation3 + $0x50] sm:$0x1] %vm144, 0.0
  %151 = vst.msk [vmem:[#allocation3 + $0x60] sm:$0x1] %vm144, 0.0
  %152 = vst.msk [vmem:[#allocation3 + $0x70] sm:$0x1] %vm144, 0.0
  %153 = vst.msk [vmem:[#allocation3 + $0x80] sm:$0x1] %vm144, 0.0
  %154 = vst.msk [vmem:[#allocation3 + $0x90] sm:$0x1] %vm144, 0.0
  %155 = vst.msk [vmem:[#allocation3 + $0xa0] sm:$0x1] %vm144, 0.0
  %156 = vst.msk [vmem:[#allocation3 + $0xb0] sm:$0x1] %vm144, 0.0
  %157 = vst.msk [vmem:[#allocation3 + $0xc0] sm:$0x1] %vm144, 0.0
  %158 = vst.msk [vmem:[#allocation3 + $0xd0] sm:$0x1] %vm144, 0.0
  %159 = vst.msk [vmem:[#allocation3 + $0xe0] sm:$0x1] %vm144, 0.0
  %160 = vst.msk [vmem:[#allocation3 + $0xf0] sm:$0x1] %vm144, 0.0
  %161 = vst.msk [vmem:[#allocation3 + $0x100] sm:$0x1] %vm144, 0.0
  %162 = vst.msk [vmem:[#allocation3 + $0x110] sm:$0x1] %vm144, 0.0
  %163 = vst.msk [vmem:[#allocation3 + $0x120] sm:$0x1] %vm144, 0.0
  %164 = vst.msk [vmem:[#allocation3 + $0x130] sm:$0x1] %vm144, 0.0
  %165 = vst.msk [vmem:[#allocation3 + $0x9] sm:$0x1] %vm144, 0.0
  %166 = vst.msk [vmem:[#allocation3 + $0x19] sm:$0x1] %vm144, 0.0
  %167 = vst.msk [vmem:[#allocation3 + $0x29] sm:$0x1] %vm144, 0.0
  %168 = vst.msk [vmem:[#allocation3 + $0x39] sm:$0x1] %vm144, 0.0
  %169 = vst.msk [vmem:[#allocation3 + $0x49] sm:$0x1] %vm144, 0.0
  %170 = vst.msk [vmem:[#allocation3 + $0x59] sm:$0x1] %vm144, 0.0
  %171 = vst.msk [vmem:[#allocation3 + $0x69] sm:$0x1] %vm144, 0.0
  %172 = vst.msk [vmem:[#allocation3 + $0x79] sm:$0x1] %vm144, 0.0
  %173 = vst.msk [vmem:[#allocation3 + $0x89] sm:$0x1] %vm144, 0.0
  %174 = vst.msk [vmem:[#allocation3 + $0x99] sm:$0x1] %vm144, 0.0
  %175 = vst.msk [vmem:[#allocation3 + $0xa9] sm:$0x1] %vm144, 0.0
  %176 = vst.msk [vmem:[#allocation3 + $0xb9] sm:$0x1] %vm144, 0.0
  %177 = vst.msk [vmem:[#allocation3 + $0xc9] sm:$0x1] %vm144, 0.0
  %178 = vst.msk [vmem:[#allocation3 + $0xd9] sm:$0x1] %vm144, 0.0
  %179 = vst.msk [vmem:[#allocation3 + $0xe9] sm:$0x1] %vm144, 0.0
  %180 = vst.msk [vmem:[#allocation3 + $0xf9] sm:$0x1] %vm144, 0.0
  %181 = vst.msk [vmem:[#allocation3 + $0x109] sm:$0x1] %vm144, 0.0
  %182 = vst.msk [vmem:[#allocation3 + $0x119] sm:$0x1] %vm144, 0.0
  %183 = vst.msk [vmem:[#allocation3 + $0x129] sm:$0x1] %vm144, 0.0
  %184 = vst.msk [vmem:[#allocation3 + $0x139] sm:$0x1] %vm144, 0.0
  %vm185 = vcmask 259072
  %186 = vst.msk [vmem:[#allocation4] sm:$0x3f] %vm185, 0.0
  %187 = vst.msk [vmem:[#allocation4 + $0x30] sm:$0x3f] %vm185, 0.0
  %s188 = scalar_lea.vmem [#allocation4], 40
  %189 = vst.msk [vmem:[%s188] sm:$0x3f] %vm185, 0.0
  %190 = vst.msk [vmem:[%s188 + $0x30] sm:$0x3f] %vm185, 0.0
  %vm191 = vcmask 253952
  %192 = vst.msk [vmem:[#allocation4] sm:$0x1] %vm191, 0.0
  %193 = vst.msk [vmem:[#allocation4 + $0x8] sm:$0x1] %vm191, 0.0
  %194 = vst.msk [vmem:[#allocation4 + $0x10] sm:$0x1] %vm191, 0.0
  %195 = vst.msk [vmem:[#allocation4 + $0x18] sm:$0x1] %vm191, 0.0
  %196 = vst.msk [vmem:[#allocation4 + $0x20] sm:$0x1] %vm191, 0.0
  %197 = vst.msk [vmem:[#allocation4 + $0x28] sm:$0x1] %vm191, 0.0
  %198 = vst.msk [vmem:[#allocation4 + $0x30] sm:$0x1] %vm191, 0.0
  %199 = vst.msk [vmem:[#allocation4 + $0x38] sm:$0x1] %vm191, 0.0
  %200 = vst.msk [vmem:[#allocation4 + $0x40] sm:$0x1] %vm191, 0.0
  %201 = vst.msk [vmem:[#allocation4 + $0x48] sm:$0x1] %vm191, 0.0
  %202 = vst.msk [vmem:[#allocation4 + $0x50] sm:$0x1] %vm191, 0.0
  %203 = vst.msk [vmem:[#allocation4 + $0x58] sm:$0x1] %vm191, 0.0
  %204 = vst.msk [vmem:[#allocation4 + $0x5] sm:$0x1] %vm191, 0.0
  %205 = vst.msk [vmem:[#allocation4 + $0xd] sm:$0x1] %vm191, 0.0
  %206 = vst.msk [vmem:[#allocation4 + $0x15] sm:$0x1] %vm191, 0.0
  %207 = vst.msk [vmem:[#allocation4 + $0x1d] sm:$0x1] %vm191, 0.0
  %208 = vst.msk [vmem:[#allocation4 + $0x25] sm:$0x1] %vm191, 0.0
  %209 = vst.msk [vmem:[#allocation4 + $0x2d] sm:$0x1] %vm191, 0.0
  %210 = vst.msk [vmem:[#allocation4 + $0x35] sm:$0x1] %vm191, 0.0
  %211 = vst.msk [vmem:[#allocation4 + $0x3d] sm:$0x1] %vm191, 0.0
  %212 = vst.msk [vmem:[#allocation4 + $0x45] sm:$0x1] %vm191, 0.0
  %213 = vst.msk [vmem:[#allocation4 + $0x4d] sm:$0x1] %vm191, 0.0
  %214 = vst.msk [vmem:[#allocation4 + $0x55] sm:$0x1] %vm191, 0.0
  %215 = vst.msk [vmem:[#allocation4 + $0x5d] sm:$0x1] %vm191, 0.0
  %vm216 = vcmask 519168
  %217 = vst.msk [vmem:[#allocation5] sm:$0xf] %vm216, 0.0
  %218 = vst.msk [vmem:[#allocation5 + $0x10] sm:$0xf] %vm216, 0.0
  %s219 = scalar_lea.vmem [#allocation5], 12
  %220 = vst.msk [vmem:[%s219] sm:$0xf] %vm216, 0.0
  %221 = vst.msk [vmem:[%s219 + $0x10] sm:$0xf] %vm216, 0.0
  %vm222 = vcmask 516096
  %223 = vst.msk [vmem:[#allocation5] sm:$0x1] %vm222, 0.0
  %224 = vst.msk [vmem:[#allocation5 + $0x4] sm:$0x1] %vm222, 0.0
  %225 = vst.msk [vmem:[#allocation5 + $0x8] sm:$0x1] %vm222, 0.0
  %226 = vst.msk [vmem:[#allocation5 + $0xc] sm:$0x1] %vm222, 0.0
  %227 = vst.msk [vmem:[#allocation5 + $0x10] sm:$0x1] %vm222, 0.0
  %228 = vst.msk [vmem:[#allocation5 + $0x14] sm:$0x1] %vm222, 0.0
  %229 = vst.msk [vmem:[#allocation5 + $0x18] sm:$0x1] %vm222, 0.0
  %230 = vst.msk [vmem:[#allocation5 + $0x1c] sm:$0x1] %vm222, 0.0
  %231 = vst.msk [vmem:[#allocation5 + $0x3] sm:$0x1] %vm222, 0.0
  %232 = vst.msk [vmem:[#allocation5 + $0x7] sm:$0x1] %vm222, 0.0
  %233 = vst.msk [vmem:[#allocation5 + $0xb] sm:$0x1] %vm222, 0.0
  %234 = vst.msk [vmem:[#allocation5 + $0xf] sm:$0x1] %vm222, 0.0
  %235 = vst.msk [vmem:[#allocation5 + $0x13] sm:$0x1] %vm222, 0.0
  %236 = vst.msk [vmem:[#allocation5 + $0x17] sm:$0x1] %vm222, 0.0
  %237 = vst.msk [vmem:[#allocation5 + $0x1b] sm:$0x1] %vm222, 0.0
  %238 = vst.msk [vmem:[#allocation5 + $0x1f] sm:$0x1] %vm222, 0.0
  %v239 = vld [vmem:[%s0] sm:$0xff]
  %v240 = vld [vmem:[%s0 + $0x8] sm:$0xff]
  %v241 = vld [vmem:[%s0 + $0x10] sm:$0xff]
  %v242 = vld [vmem:[%s0 + $0x18] sm:$0xff]
  %v243 = vld [vmem:[%s0 + $0x20] sm:$0xff]
  %v244 = vld [vmem:[%s0 + $0x28] sm:$0xff]
  %v245 = vld [vmem:[%s0 + $0x30] sm:$0xff]
  %v246 = vld [vmem:[%s0 + $0x38] sm:$0xff]
  %v247 = vld [vmem:[%s0 + $0x40] sm:$0xff]
  %v248 = vld [vmem:[%s0 + $0x48] sm:$0xff]
  %v249 = vld [vmem:[%s0 + $0x50] sm:$0xff]
  %v250 = vld [vmem:[%s0 + $0x58] sm:$0xff]
  %v251 = vld [vmem:[%s0 + $0x60] sm:$0xff]
  %v252 = vld [vmem:[%s0 + $0x68] sm:$0xff]
  %v253 = vld [vmem:[%s0 + $0x70] sm:$0xff]
  %v254 = vld [vmem:[%s0 + $0x78] sm:$0xff]
  %v255 = vld [vmem:[%s0 + $0x80] sm:$0xff]
  %v256 = vld [vmem:[%s0 + $0x88] sm:$0xff]
  %v257 = vld [vmem:[%s0 + $0x90] sm:$0xff]
  %v258 = vld [vmem:[%s0 + $0x98] sm:$0xff]
  %v259 = vld [vmem:[%s0 + $0xa0] sm:$0xff]
  %v260 = vld [vmem:[%s0 + $0xa8] sm:$0xff]
  %v261 = vld [vmem:[%s0 + $0xb0] sm:$0xff]
  %v262 = vld [vmem:[%s0 + $0xb8] sm:$0xff]
  %v263 = vld [vmem:[%s0 + $0xc0] sm:$0xff]
  %v264 = vld [vmem:[%s0 + $0xc8] sm:$0xff]
  %v265 = vld [vmem:[%s0 + $0xd0] sm:$0xff]
  %v266 = vld [vmem:[%s0 + $0xd8] sm:$0xff]
  %v267 = vld [vmem:[%s0 + $0xe0] sm:$0xff]
  %v268 = vld [vmem:[%s0 + $0xe8] sm:$0xff]
  %v269 = vld [vmem:[%s0 + $0xf0] sm:$0xff]
  %v270 = vld [vmem:[%s0 + $0xf8] sm:$0xff]
  %v271 = vld [vmem:[%s0 + $0x100] sm:$0xff]
  %v272 = vld [vmem:[%s0 + $0x108] sm:$0xff]
  %v273 = vld [vmem:[%s0 + $0x110] sm:$0xff]
  %v274 = vld [vmem:[%s0 + $0x118] sm:$0xff]
  %v275 = vld [vmem:[%s0 + $0x120] sm:$0xff]
  %v276 = vld [vmem:[%s0 + $0x128] sm:$0xff]
  %v277 = vld [vmem:[%s0 + $0x130] sm:$0xff]
  %v278 = vld [vmem:[%s0 + $0x138] sm:$0xff]
  %v279 = vld [vmem:[%s0 + $0x140] sm:$0xff]
  %v280 = vld [vmem:[%s0 + $0x148] sm:$0xff]
  %v281 = vld [vmem:[%s0 + $0x150] sm:$0xff]
  %v282 = vld [vmem:[%s0 + $0x158] sm:$0xff]
  %v283 = vld [vmem:[%s0 + $0x160] sm:$0xff]
  %v284 = vld [vmem:[%s0 + $0x168] sm:$0xff]
  %v285 = vld [vmem:[%s0 + $0x170] sm:$0xff]
  %v286 = vld [vmem:[%s0 + $0x178] sm:$0xff]
  %v287 = vld [vmem:[%s0 + $0x180] sm:$0xff]
  %v288 = vld [vmem:[%s0 + $0x188] sm:$0xff]
  %v289 = vld [vmem:[%s0 + $0x190] sm:$0xff]
  %v290 = vld [vmem:[%s0 + $0x198] sm:$0xff]
  %v291 = vld [vmem:[%s0 + $0x1a0] sm:$0xff]
  %v292 = vld [vmem:[%s0 + $0x1a8] sm:$0xff]
  %v293 = vld [vmem:[%s0 + $0x1b0] sm:$0xff]
  %v294 = vld [vmem:[%s0 + $0x1b8] sm:$0xff]
  %v295 = vld [vmem:[%s0 + $0x1c0] sm:$0xff]
  %v296 = vld [vmem:[%s0 + $0x1c8] sm:$0xff]
  %v297 = vld [vmem:[%s0 + $0x1d0] sm:$0xff]
  %v298 = vld [vmem:[%s0 + $0x1d8] sm:$0xff]
  %v299 = vld [vmem:[%s0 + $0x1e0] sm:$0xff]
  %v300 = vld [vmem:[%s0 + $0x1e8] sm:$0xff]
  %v301 = vld [vmem:[%s0 + $0x1f0] sm:$0xff]
  %v302 = vld [vmem:[%s0 + $0x1f8] sm:$0xff]
  %s303 = scalar_lea.vmem [#allocation2], 24
  %304 = vst.msk [vmem:[%s303 + $0x1] sm:$0xff] %vm45, %v239
  %305 = vst.msk [vmem:[%s303 + $0x9] sm:$0xff] %vm45, %v240
  %306 = vst.msk [vmem:[%s303 + $0x19] sm:$0xff] %vm45, %v241
  %307 = vst.msk [vmem:[%s303 + $0x21] sm:$0xff] %vm45, %v242
  %308 = vst.msk [vmem:[%s303 + $0x31] sm:$0xff] %vm45, %v243
  %309 = vst.msk [vmem:[%s303 + $0x39] sm:$0xff] %vm45, %v244
  %310 = vst.msk [vmem:[%s303 + $0x49] sm:$0xff] %vm45, %v245
  %311 = vst.msk [vmem:[%s303 + $0x51] sm:$0xff] %vm45, %v246
  %312 = vst.msk [vmem:[%s303 + $0x61] sm:$0xff] %vm45, %v247
  %313 = vst.msk [vmem:[%s303 + $0x69] sm:$0xff] %vm45, %v248
  %314 = vst.msk [vmem:[%s303 + $0x79] sm:$0xff] %vm45, %v249
  %315 = vst.msk [vmem:[%s303 + $0x81] sm:$0xff] %vm45, %v250
  %316 = vst.msk [vmem:[%s303 + $0x91] sm:$0xff] %vm45, %v251
  %317 = vst.msk [vmem:[%s303 + $0x99] sm:$0xff] %vm45, %v252
  %318 = vst.msk [vmem:[%s303 + $0xa9] sm:$0xff] %vm45, %v253
  %319 = vst.msk [vmem:[%s303 + $0xb1] sm:$0xff] %vm45, %v254
  %320 = vst.msk [vmem:[%s303 + $0xc1] sm:$0xff] %vm45, %v255
  %321 = vst.msk [vmem:[%s303 + $0xc9] sm:$0xff] %vm45, %v256
  %322 = vst.msk [vmem:[%s303 + $0xd9] sm:$0xff] %vm45, %v257
  %323 = vst.msk [vmem:[%s303 + $0xe1] sm:$0xff] %vm45, %v258
  %324 = vst.msk [vmem:[%s303 + $0xf1] sm:$0xff] %vm45, %v259
  %325 = vst.msk [vmem:[%s303 + $0xf9] sm:$0xff] %vm45, %v260
  %326 = vst.msk [vmem:[%s303 + $0x109] sm:$0xff] %vm45, %v261
  %327 = vst.msk [vmem:[%s303 + $0x111] sm:$0xff] %vm45, %v262
  %328 = vst.msk [vmem:[%s303 + $0x121] sm:$0xff] %vm45, %v263
  %329 = vst.msk [vmem:[%s303 + $0x129] sm:$0xff] %vm45, %v264
  %330 = vst.msk [vmem:[%s303 + $0x139] sm:$0xff] %vm45, %v265
  %331 = vst.msk [vmem:[%s303 + $0x141] sm:$0xff] %vm45, %v266
  %332 = vst.msk [vmem:[%s303 + $0x151] sm:$0xff] %vm45, %v267
  %333 = vst.msk [vmem:[%s303 + $0x159] sm:$0xff] %vm45, %v268
  %334 = vst.msk [vmem:[%s303 + $0x169] sm:$0xff] %vm45, %v269
  %335 = vst.msk [vmem:[%s303 + $0x171] sm:$0xff] %vm45, %v270
  %336 = vst.msk [vmem:[%s303 + $0x1b1] sm:$0xff] %vm45, %v271
  %337 = vst.msk [vmem:[%s303 + $0x1b9] sm:$0xff] %vm45, %v272
  %338 = vst.msk [vmem:[%s303 + $0x1c9] sm:$0xff] %vm45, %v273
  %339 = vst.msk [vmem:[%s303 + $0x1d1] sm:$0xff] %vm45, %v274
  %340 = vst.msk [vmem:[%s303 + $0x1e1] sm:$0xff] %vm45, %v275
  %341 = vst.msk [vmem:[%s303 + $0x1e9] sm:$0xff] %vm45, %v276
  %342 = vst.msk [vmem:[%s303 + $0x1f9] sm:$0xff] %vm45, %v277
  %343 = vst.msk [vmem:[%s303 + $0x201] sm:$0xff] %vm45, %v278
  %344 = vst.msk [vmem:[%s303 + $0x211] sm:$0xff] %vm45, %v279
  %345 = vst.msk [vmem:[%s303 + $0x219] sm:$0xff] %vm45, %v280
  %346 = vst.msk [vmem:[%s303 + $0x229] sm:$0xff] %vm45, %v281
  %347 = vst.msk [vmem:[%s303 + $0x231] sm:$0xff] %vm45, %v282
  %348 = vst.msk [vmem:[%s303 + $0x241] sm:$0xff] %vm45, %v283
  %349 = vst.msk [vmem:[%s303 + $0x249] sm:$0xff] %vm45, %v284
  %350 = vst.msk [vmem:[%s303 + $0x259] sm:$0xff] %vm45, %v285
  %351 = vst.msk [vmem:[%s303 + $0x261] sm:$0xff] %vm45, %v286
  %352 = vst.msk [vmem:[%s303 + $0x271] sm:$0xff] %vm45, %v287
  %353 = vst.msk [vmem:[%s303 + $0x279] sm:$0xff] %vm45, %v288
  %354 = vst.msk [vmem:[%s303 + $0x289] sm:$0xff] %vm45, %v289
  %355 = vst.msk [vmem:[%s303 + $0x291] sm:$0xff] %vm45, %v290
  %356 = vst.msk [vmem:[%s303 + $0x2a1] sm:$0xff] %vm45, %v291
  %357 = vst.msk [vmem:[%s303 + $0x2a9] sm:$0xff] %vm45, %v292
  %358 = vst.msk [vmem:[%s303 + $0x2b9] sm:$0xff] %vm45, %v293
  %359 = vst.msk [vmem:[%s303 + $0x2c1] sm:$0xff] %vm45, %v294
  %360 = vst.msk [vmem:[%s303 + $0x2d1] sm:$0xff] %vm45, %v295
  %361 = vst.msk [vmem:[%s303 + $0x2d9] sm:$0xff] %vm45, %v296
  %362 = vst.msk [vmem:[%s303 + $0x2e9] sm:$0xff] %vm45, %v297
  %363 = vst.msk [vmem:[%s303 + $0x2f1] sm:$0xff] %vm45, %v298
  %364 = vst.msk [vmem:[%s303 + $0x301] sm:$0xff] %vm45, %v299
  %365 = vst.msk [vmem:[%s303 + $0x309] sm:$0xff] %vm45, %v300
  %366 = vst.msk [vmem:[%s303 + $0x319] sm:$0xff] %vm45, %v301
  %367 = vst.msk [vmem:[%s303 + $0x321] sm:$0xff] %vm45, %v302
  %v368 = vld [vmem:[#allocation2] ss:$2 sm:$0xff]
  %s369 = scalar_lea.vmem [#allocation2], 48
  %v370 = vld [vmem:[%s369] ss:$2 sm:$0xff]
  %s371 = scalar_lea.vmem [#allocation2], 96
  %v372 = vld [vmem:[%s371] ss:$2 sm:$0xff]
  %s373 = scalar_lea.vmem [#allocation2], 144
  %v374 = vld [vmem:[%s373] ss:$2 sm:$0xff]
  %s375 = scalar_lea.vmem [#allocation2], 192
  %v376 = vld [vmem:[%s375] ss:$2 sm:$0xff]
  %s377 = scalar_lea.vmem [#allocation2], 240
  %v378 = vld [vmem:[%s377] ss:$2 sm:$0xff]
  %s379 = scalar_lea.vmem [#allocation2], 288
  %v380 = vld [vmem:[%s379] ss:$2 sm:$0xff]
  %s381 = scalar_lea.vmem [#allocation2], 336
  %v382 = vld [vmem:[%s381] ss:$2 sm:$0xff]
  %s383 = scalar_lea.vmem [#allocation2], 432
  %v384 = vld [vmem:[%s383] ss:$2 sm:$0xff]
  %s385 = scalar_lea.vmem [#allocation2], 480
  %v386 = vld [vmem:[%s385] ss:$2 sm:$0xff]
  %s387 = scalar_lea.vmem [#allocation2], 528
  %v388 = vld [vmem:[%s387] ss:$2 sm:$0xff]
  %s389 = scalar_lea.vmem [#allocation2], 576
  %v390 = vld [vmem:[%s389] ss:$2 sm:$0xff]
  %s391 = scalar_lea.vmem [#allocation2], 624
  %v392 = vld [vmem:[%s391] ss:$2 sm:$0xff]
  %s393 = scalar_lea.vmem [#allocation2], 672
  %v394 = vld [vmem:[%s393] ss:$2 sm:$0xff]
  %s395 = scalar_lea.vmem [#allocation2], 720
  %v396 = vld [vmem:[%s395] ss:$2 sm:$0xff]
  %s397 = scalar_lea.vmem [#allocation2], 768
  %v398 = vld [vmem:[%s397] ss:$2 sm:$0xff]
  %s399 = scalar_lea.vmem [#allocation2], 1
  %v400 = vld [vmem:[%s399] ss:$2 sm:$0xff]
  %s401 = scalar_lea.vmem [#allocation2], 49
  %v402 = vld [vmem:[%s401] ss:$2 sm:$0xff]
  %s403 = scalar_lea.vmem [#allocation2], 97
  %v404 = vld [vmem:[%s403] ss:$2 sm:$0xff]
  %s405 = scalar_lea.vmem [#allocation2], 145
  %v406 = vld [vmem:[%s405] ss:$2 sm:$0xff]
  %s407 = scalar_lea.vmem [#allocation2], 193
  %v408 = vld [vmem:[%s407] ss:$2 sm:$0xff]
  %s409 = scalar_lea.vmem [#allocation2], 241
  %v410 = vld [vmem:[%s409] ss:$2 sm:$0xff]
  %s411 = scalar_lea.vmem [#allocation2], 289
  %v412 = vld [vmem:[%s411] ss:$2 sm:$0xff]
  %s413 = scalar_lea.vmem [#allocation2], 337
  %v414 = vld [vmem:[%s413] ss:$2 sm:$0xff]
  %s415 = scalar_lea.vmem [#allocation2], 433
  %v416 = vld [vmem:[%s415] ss:$2 sm:$0xff]
  %s417 = scalar_lea.vmem [#allocation2], 481
  %v418 = vld [vmem:[%s417] ss:$2 sm:$0xff]
  %s419 = scalar_lea.vmem [#allocation2], 529
  %v420 = vld [vmem:[%s419] ss:$2 sm:$0xff]
  %s421 = scalar_lea.vmem [#allocation2], 577
  %v422 = vld [vmem:[%s421] ss:$2 sm:$0xff]
  %s423 = scalar_lea.vmem [#allocation2], 625
  %v424 = vld [vmem:[%s423] ss:$2 sm:$0xff]
  %s425 = scalar_lea.vmem [#allocation2], 673
  %v426 = vld [vmem:[%s425] ss:$2 sm:$0xff]
  %s427 = scalar_lea.vmem [#allocation2], 721
  %v428 = vld [vmem:[%s427] ss:$2 sm:$0xff]
  %s429 = scalar_lea.vmem [#allocation2], 769
  %v430 = vld [vmem:[%s429] ss:$2 sm:$0xff]
  %s431 = scalar_lea.vmem [#allocation2], 2
  %v432 = vld [vmem:[%s431] ss:$2 sm:$0xff]
  %s433 = scalar_lea.vmem [#allocation2], 50
  %v434 = vld [vmem:[%s433] ss:$2 sm:$0xff]
  %s435 = scalar_lea.vmem [#allocation2], 98
  %v436 = vld [vmem:[%s435] ss:$2 sm:$0xff]
  %s437 = scalar_lea.vmem [#allocation2], 146
  %v438 = vld [vmem:[%s437] ss:$2 sm:$0xff]
  %s439 = scalar_lea.vmem [#allocation2], 194
  %v440 = vld [vmem:[%s439] ss:$2 sm:$0xff]
  %s441 = scalar_lea.vmem [#allocation2], 242
  %v442 = vld [vmem:[%s441] ss:$2 sm:$0xff]
  %s443 = scalar_lea.vmem [#allocation2], 290
  %v444 = vld [vmem:[%s443] ss:$2 sm:$0xff]
  %s445 = scalar_lea.vmem [#allocation2], 338
  %v446 = vld [vmem:[%s445] ss:$2 sm:$0xff]
  %s447 = scalar_lea.vmem [#allocation2], 434
  %v448 = vld [vmem:[%s447] ss:$2 sm:$0xff]
  %s449 = scalar_lea.vmem [#allocation2], 482
  %v450 = vld [vmem:[%s449] ss:$2 sm:$0xff]
  %s451 = scalar_lea.vmem [#allocation2], 530
  %v452 = vld [vmem:[%s451] ss:$2 sm:$0xff]
  %s453 = scalar_lea.vmem [#allocation2], 578
  %v454 = vld [vmem:[%s453] ss:$2 sm:$0xff]
  %s455 = scalar_lea.vmem [#allocation2], 626
  %v456 = vld [vmem:[%s455] ss:$2 sm:$0xff]
  %s457 = scalar_lea.vmem [#allocation2], 674
  %v458 = vld [vmem:[%s457] ss:$2 sm:$0xff]
  %s459 = scalar_lea.vmem [#allocation2], 722
  %v460 = vld [vmem:[%s459] ss:$2 sm:$0xff]
  %s461 = scalar_lea.vmem [#allocation2], 770
  %v462 = vld [vmem:[%s461] ss:$2 sm:$0xff]
  %v463 = vld [vmem:[%s303] ss:$2 sm:$0xff]
  %s464 = scalar_lea.vmem %s303, 48 [#allocation2]
  %v465 = vld [vmem:[%s464] ss:$2 sm:$0xff]
  %s466 = scalar_lea.vmem %s303, 96 [#allocation2]
  %v467 = vld [vmem:[%s466] ss:$2 sm:$0xff]
  %s468 = scalar_lea.vmem %s303, 144 [#allocation2]
  %v469 = vld [vmem:[%s468] ss:$2 sm:$0xff]
  %s470 = scalar_lea.vmem %s303, 192 [#allocation2]
  %v471 = vld [vmem:[%s470] ss:$2 sm:$0xff]
  %s472 = scalar_lea.vmem %s303, 240 [#allocation2]
  %v473 = vld [vmem:[%s472] ss:$2 sm:$0xff]
  %s474 = scalar_lea.vmem %s303, 288 [#allocation2]
  %v475 = vld [vmem:[%s474] ss:$2 sm:$0xff]
  %s476 = scalar_lea.vmem %s303, 336 [#allocation2]
  %v477 = vld [vmem:[%s476] ss:$2 sm:$0xff]
  %s478 = scalar_lea.vmem %s303, 432 [#allocation2]
  %v479 = vld [vmem:[%s478] ss:$2 sm:$0xff]
  %s480 = scalar_lea.vmem %s303, 480 [#allocation2]
  %v481 = vld [vmem:[%s480] ss:$2 sm:$0xff]
  %s482 = scalar_lea.vmem %s303, 528 [#allocation2]
  %v483 = vld [vmem:[%s482] ss:$2 sm:$0xff]
  %s484 = scalar_lea.vmem %s303, 576 [#allocation2]
  %v485 = vld [vmem:[%s484] ss:$2 sm:$0xff]
  %s486 = scalar_lea.vmem %s303, 624 [#allocation2]
  %v487 = vld [vmem:[%s486] ss:$2 sm:$0xff]
  %s488 = scalar_lea.vmem %s303, 672 [#allocation2]
  %v489 = vld [vmem:[%s488] ss:$2 sm:$0xff]
  %s490 = scalar_lea.vmem %s303, 720 [#allocation2]
  %v491 = vld [vmem:[%s490] ss:$2 sm:$0xff]
  %s492 = scalar_lea.vmem %s303, 768 [#allocation2]
  %v493 = vld [vmem:[%s492] ss:$2 sm:$0xff]
  %s494 = scalar_lea.vmem %s303, 1 [#allocation2]
  %v495 = vld [vmem:[%s494] ss:$2 sm:$0xff]
  %s496 = scalar_lea.vmem %s303, 49 [#allocation2]
  %v497 = vld [vmem:[%s496] ss:$2 sm:$0xff]
  %s498 = scalar_lea.vmem %s303, 97 [#allocation2]
  %v499 = vld [vmem:[%s498] ss:$2 sm:$0xff]
  %s500 = scalar_lea.vmem %s303, 145 [#allocation2]
  %v501 = vld [vmem:[%s500] ss:$2 sm:$0xff]
  %s502 = scalar_lea.vmem %s303, 193 [#allocation2]
  %v503 = vld [vmem:[%s502] ss:$2 sm:$0xff]
  %s504 = scalar_lea.vmem %s303, 241 [#allocation2]
  %v505 = vld [vmem:[%s504] ss:$2 sm:$0xff]
  %s506 = scalar_lea.vmem %s303, 289 [#allocation2]
  %v507 = vld [vmem:[%s506] ss:$2 sm:$0xff]
  %s508 = scalar_lea.vmem %s303, 337 [#allocation2]
  %v509 = vld [vmem:[%s508] ss:$2 sm:$0xff]
  %s510 = scalar_lea.vmem %s303, 433 [#allocation2]
  %v511 = vld [vmem:[%s510] ss:$2 sm:$0xff]
  %s512 = scalar_lea.vmem %s303, 481 [#allocation2]
  %v513 = vld [vmem:[%s512] ss:$2 sm:$0xff]
  %s514 = scalar_lea.vmem %s303, 529 [#allocation2]
  %v515 = vld [vmem:[%s514] ss:$2 sm:$0xff]
  %s516 = scalar_lea.vmem %s303, 577 [#allocation2]
  %v517 = vld [vmem:[%s516] ss:$2 sm:$0xff]
  %s518 = scalar_lea.vmem %s303, 625 [#allocation2]
  %v519 = vld [vmem:[%s518] ss:$2 sm:$0xff]
  %s520 = scalar_lea.vmem %s303, 673 [#allocation2]
  %v521 = vld [vmem:[%s520] ss:$2 sm:$0xff]
  %s522 = scalar_lea.vmem %s303, 721 [#allocation2]
  %v523 = vld [vmem:[%s522] ss:$2 sm:$0xff]
  %s524 = scalar_lea.vmem %s303, 769 [#allocation2]
  %v525 = vld [vmem:[%s524] ss:$2 sm:$0xff]
  %s526 = scalar_lea.vmem %s303, 2 [#allocation2]
  %v527 = vld [vmem:[%s526] ss:$2 sm:$0xff]
  %s528 = scalar_lea.vmem %s303, 50 [#allocation2]
  %v529 = vld [vmem:[%s528] ss:$2 sm:$0xff]
  %s530 = scalar_lea.vmem %s303, 98 [#allocation2]
  %v531 = vld [vmem:[%s530] ss:$2 sm:$0xff]
  %s532 = scalar_lea.vmem %s303, 146 [#allocation2]
  %v533 = vld [vmem:[%s532] ss:$2 sm:$0xff]
  %s534 = scalar_lea.vmem %s303, 194 [#allocation2]
  %v535 = vld [vmem:[%s534] ss:$2 sm:$0xff]
  %s536 = scalar_lea.vmem %s303, 242 [#allocation2]
  %v537 = vld [vmem:[%s536] ss:$2 sm:$0xff]
  %s538 = scalar_lea.vmem %s303, 290 [#allocation2]
  %v539 = vld [vmem:[%s538] ss:$2 sm:$0xff]
  %s540 = scalar_lea.vmem %s303, 338 [#allocation2]
  %v541 = vld [vmem:[%s540] ss:$2 sm:$0xff]
  %s542 = scalar_lea.vmem %s303, 434 [#allocation2]
  %v543 = vld [vmem:[%s542] ss:$2 sm:$0xff]
  %s544 = scalar_lea.vmem %s303, 482 [#allocation2]
  %v545 = vld [vmem:[%s544] ss:$2 sm:$0xff]
  %s546 = scalar_lea.vmem %s303, 530 [#allocation2]
  %v547 = vld [vmem:[%s546] ss:$2 sm:$0xff]
  %s548 = scalar_lea.vmem %s303, 578 [#allocation2]
  %v549 = vld [vmem:[%s548] ss:$2 sm:$0xff]
  %s550 = scalar_lea.vmem %s303, 626 [#allocation2]
  %v551 = vld [vmem:[%s550] ss:$2 sm:$0xff]
  %s552 = scalar_lea.vmem %s303, 674 [#allocation2]
  %v553 = vld [vmem:[%s552] ss:$2 sm:$0xff]
  %s554 = scalar_lea.vmem %s303, 722 [#allocation2]
  %v555 = vld [vmem:[%s554] ss:$2 sm:$0xff]
  %s556 = scalar_lea.vmem %s303, 770 [#allocation2]
  %v557 = vld [vmem:[%s556] ss:$2 sm:$0xff]
  %s558 = scalar_lea.vmem [#allocation2], 48
  %v559 = vld [vmem:[%s558] ss:$2 sm:$0xff]
  %s560 = scalar_lea.vmem %s558, 48 [#allocation2]
  %v561 = vld [vmem:[%s560] ss:$2 sm:$0xff]
  %s562 = scalar_lea.vmem %s558, 96 [#allocation2]
  %v563 = vld [vmem:[%s562] ss:$2 sm:$0xff]
  %s564 = scalar_lea.vmem %s558, 144 [#allocation2]
  %v565 = vld [vmem:[%s564] ss:$2 sm:$0xff]
  %s566 = scalar_lea.vmem %s558, 192 [#allocation2]
  %v567 = vld [vmem:[%s566] ss:$2 sm:$0xff]
  %s568 = scalar_lea.vmem %s558, 240 [#allocation2]
  %v569 = vld [vmem:[%s568] ss:$2 sm:$0xff]
  %s570 = scalar_lea.vmem %s558, 288 [#allocation2]
  %v571 = vld [vmem:[%s570] ss:$2 sm:$0xff]
  %s572 = scalar_lea.vmem %s558, 336 [#allocation2]
  %v573 = vld [vmem:[%s572] ss:$2 sm:$0xff]
  %s574 = scalar_lea.vmem %s558, 432 [#allocation2]
  %v575 = vld [vmem:[%s574] ss:$2 sm:$0xff]
  %s576 = scalar_lea.vmem %s558, 480 [#allocation2]
  %v577 = vld [vmem:[%s576] ss:$2 sm:$0xff]
  %s578 = scalar_lea.vmem %s558, 528 [#allocation2]
  %v579 = vld [vmem:[%s578] ss:$2 sm:$0xff]
  %s580 = scalar_lea.vmem %s558, 576 [#allocation2]
  %v581 = vld [vmem:[%s580] ss:$2 sm:$0xff]
  %s582 = scalar_lea.vmem %s558, 624 [#allocation2]
  %v583 = vld [vmem:[%s582] ss:$2 sm:$0xff]
  %s584 = scalar_lea.vmem %s558, 672 [#allocation2]
  %v585 = vld [vmem:[%s584] ss:$2 sm:$0xff]
  %s586 = scalar_lea.vmem %s558, 720 [#allocation2]
  %v587 = vld [vmem:[%s586] ss:$2 sm:$0xff]
  %s588 = scalar_lea.vmem %s558, 768 [#allocation2]
  %v589 = vld [vmem:[%s588] ss:$2 sm:$0xff]
  %s590 = scalar_lea.vmem %s558, 1 [#allocation2]
  %v591 = vld [vmem:[%s590] ss:$2 sm:$0xff]
  %s592 = scalar_lea.vmem %s558, 49 [#allocation2]
  %v593 = vld [vmem:[%s592] ss:$2 sm:$0xff]
  %s594 = scalar_lea.vmem %s558, 97 [#allocation2]
  %v595 = vld [vmem:[%s594] ss:$2 sm:$0xff]
  %s596 = scalar_lea.vmem %s558, 145 [#allocation2]
  %v597 = vld [vmem:[%s596] ss:$2 sm:$0xff]
  %s598 = scalar_lea.vmem %s558, 193 [#allocation2]
  %v599 = vld [vmem:[%s598] ss:$2 sm:$0xff]
  %s600 = scalar_lea.vmem %s558, 241 [#allocation2]
  %v601 = vld [vmem:[%s600] ss:$2 sm:$0xff]
  %s602 = scalar_lea.vmem %s558, 289 [#allocation2]
  %v603 = vld [vmem:[%s602] ss:$2 sm:$0xff]
  %s604 = scalar_lea.vmem %s558, 337 [#allocation2]
  %v605 = vld [vmem:[%s604] ss:$2 sm:$0xff]
  %s606 = scalar_lea.vmem %s558, 433 [#allocation2]
  %v607 = vld [vmem:[%s606] ss:$2 sm:$0xff]
  %s608 = scalar_lea.vmem %s558, 481 [#allocation2]
  %v609 = vld [vmem:[%s608] ss:$2 sm:$0xff]
  %s610 = scalar_lea.vmem %s558, 529 [#allocation2]
  %v611 = vld [vmem:[%s610] ss:$2 sm:$0xff]
  %s612 = scalar_lea.vmem %s558, 577 [#allocation2]
  %v613 = vld [vmem:[%s612] ss:$2 sm:$0xff]
  %s614 = scalar_lea.vmem %s558, 625 [#allocation2]
  %v615 = vld [vmem:[%s614] ss:$2 sm:$0xff]
  %s616 = scalar_lea.vmem %s558, 673 [#allocation2]
  %v617 = vld [vmem:[%s616] ss:$2 sm:$0xff]
  %s618 = scalar_lea.vmem %s558, 721 [#allocation2]
  %v619 = vld [vmem:[%s618] ss:$2 sm:$0xff]
  %s620 = scalar_lea.vmem %s558, 769 [#allocation2]
  %v621 = vld [vmem:[%s620] ss:$2 sm:$0xff]
  %s622 = scalar_lea.vmem %s558, 2 [#allocation2]
  %v623 = vld [vmem:[%s622] ss:$2 sm:$0xff]
  %s624 = scalar_lea.vmem %s558, 50 [#allocation2]
  %v625 = vld [vmem:[%s624] ss:$2 sm:$0xff]
  %s626 = scalar_lea.vmem %s558, 98 [#allocation2]
  %v627 = vld [vmem:[%s626] ss:$2 sm:$0xff]
  %s628 = scalar_lea.vmem %s558, 146 [#allocation2]
  %v629 = vld [vmem:[%s628] ss:$2 sm:$0xff]
  %s630 = scalar_lea.vmem %s558, 194 [#allocation2]
  %v631 = vld [vmem:[%s630] ss:$2 sm:$0xff]
  %s632 = scalar_lea.vmem %s558, 242 [#allocation2]
  %v633 = vld [vmem:[%s632] ss:$2 sm:$0xff]
  %s634 = scalar_lea.vmem %s558, 290 [#allocation2]
  %v635 = vld [vmem:[%s634] ss:$2 sm:$0xff]
  %s636 = scalar_lea.vmem %s558, 338 [#allocation2]
  %v637 = vld [vmem:[%s636] ss:$2 sm:$0xff]
  %s638 = scalar_lea.vmem %s558, 434 [#allocation2]
  %v639 = vld [vmem:[%s638] ss:$2 sm:$0xff]
  %s640 = scalar_lea.vmem %s558, 482 [#allocation2]
  %v641 = vld [vmem:[%s640] ss:$2 sm:$0xff]
  %s642 = scalar_lea.vmem %s558, 530 [#allocation2]
  %v643 = vld [vmem:[%s642] ss:$2 sm:$0xff]
  %s644 = scalar_lea.vmem %s558, 578 [#allocation2]
  %v645 = vld [vmem:[%s644] ss:$2 sm:$0xff]
  %s646 = scalar_lea.vmem %s558, 626 [#allocation2]
  %v647 = vld [vmem:[%s646] ss:$2 sm:$0xff]
  %s648 = scalar_lea.vmem %s558, 674 [#allocation2]
  %v649 = vld [vmem:[%s648] ss:$2 sm:$0xff]
  %s650 = scalar_lea.vmem %s558, 722 [#allocation2]
  %v651 = vld [vmem:[%s650] ss:$2 sm:$0xff]
  %s652 = scalar_lea.vmem %s558, 770 [#allocation2]
  %v653 = vld [vmem:[%s652] ss:$2 sm:$0xff]
  %670 = vrot.lane.b32.xlu0 %v400, 4
  %v671 = vpop.permute.xlu0 %670
  %672 = vrot.lane.b32.xlu0 %v402, 4
  %v673 = vpop.permute.xlu0 %672
  %674 = vrot.lane.b32.xlu0 %v404, 4
  %v675 = vpop.permute.xlu0 %674
  %676 = vrot.lane.b32.xlu0 %v406, 4
  %v677 = vpop.permute.xlu0 %676
  %678 = vrot.lane.b32.xlu0 %v408, 4
  %v679 = vpop.permute.xlu0 %678
  %680 = vrot.lane.b32.xlu0 %v410, 4
  %v681 = vpop.permute.xlu0 %680
  %682 = vrot.lane.b32.xlu0 %v412, 4
  %v683 = vpop.permute.xlu0 %682
  %684 = vrot.lane.b32.xlu0 %v414, 4
  %v685 = vpop.permute.xlu0 %684
  %686 = vrot.lane.b32.xlu0 %v416, 4
  %v687 = vpop.permute.xlu0 %686
  %688 = vrot.lane.b32.xlu0 %v418, 4
  %v689 = vpop.permute.xlu0 %688
  %690 = vrot.lane.b32.xlu0 %v420, 4
  %v691 = vpop.permute.xlu0 %690
  %692 = vrot.lane.b32.xlu0 %v422, 4
  %v693 = vpop.permute.xlu0 %692
  %694 = vrot.lane.b32.xlu0 %v424, 4
  %v695 = vpop.permute.xlu0 %694
  %696 = vrot.lane.b32.xlu0 %v426, 4
  %v697 = vpop.permute.xlu0 %696
  %698 = vrot.lane.b32.xlu0 %v428, 4
  %v699 = vpop.permute.xlu0 %698
  %700 = vrot.lane.b32.xlu0 %v430, 4
  %v701 = vpop.permute.xlu0 %700
  %734 = vrot.lane.b32.xlu0 %v432, 8
  %v735 = vpop.permute.xlu0 %734
  %736 = vrot.lane.b32.xlu0 %v434, 8
  %v737 = vpop.permute.xlu0 %736
  %738 = vrot.lane.b32.xlu0 %v436, 8
  %v739 = vpop.permute.xlu0 %738
  %740 = vrot.lane.b32.xlu0 %v438, 8
  %v741 = vpop.permute.xlu0 %740
  %742 = vrot.lane.b32.xlu0 %v440, 8
  %v743 = vpop.permute.xlu0 %742
  %744 = vrot.lane.b32.xlu0 %v442, 8
  %v745 = vpop.permute.xlu0 %744
  %746 = vrot.lane.b32.xlu0 %v444, 8
  %v747 = vpop.permute.xlu0 %746
  %748 = vrot.lane.b32.xlu0 %v446, 8
  %v749 = vpop.permute.xlu0 %748
  %750 = vrot.lane.b32.xlu0 %v448, 8
  %v751 = vpop.permute.xlu0 %750
  %752 = vrot.lane.b32.xlu0 %v450, 8
  %v753 = vpop.permute.xlu0 %752
  %754 = vrot.lane.b32.xlu0 %v452, 8
  %v755 = vpop.permute.xlu0 %754
  %756 = vrot.lane.b32.xlu0 %v454, 8
  %v757 = vpop.permute.xlu0 %756
  %758 = vrot.lane.b32.xlu0 %v456, 8
  %v759 = vpop.permute.xlu0 %758
  %760 = vrot.lane.b32.xlu0 %v458, 8
  %v761 = vpop.permute.xlu0 %760
  %762 = vrot.lane.b32.xlu0 %v460, 8
  %v763 = vpop.permute.xlu0 %762
  %764 = vrot.lane.b32.xlu0 %v462, 8
  %v765 = vpop.permute.xlu0 %764
  %798 = vrot.lane.b32.xlu0 %v463, 12
  %v799 = vpop.permute.xlu0 %798
  %800 = vrot.lane.b32.xlu0 %v465, 12
  %v801 = vpop.permute.xlu0 %800
  %802 = vrot.lane.b32.xlu0 %v467, 12
  %v803 = vpop.permute.xlu0 %802
  %804 = vrot.lane.b32.xlu0 %v469, 12
  %v805 = vpop.permute.xlu0 %804
  %806 = vrot.lane.b32.xlu0 %v471, 12
  %v807 = vpop.permute.xlu0 %806
  %808 = vrot.lane.b32.xlu0 %v473, 12
  %v809 = vpop.permute.xlu0 %808
  %810 = vrot.lane.b32.xlu0 %v475, 12
  %v811 = vpop.permute.xlu0 %810
  %812 = vrot.lane.b32.xlu0 %v477, 12
  %v813 = vpop.permute.xlu0 %812
  %814 = vrot.lane.b32.xlu0 %v479, 12
  %v815 = vpop.permute.xlu0 %814
  %816 = vrot.lane.b32.xlu0 %v481, 12
  %v817 = vpop.permute.xlu0 %816
  %818 = vrot.lane.b32.xlu0 %v483, 12
  %v819 = vpop.permute.xlu0 %818
  %820 = vrot.lane.b32.xlu0 %v485, 12
  %v821 = vpop.permute.xlu0 %820
  %822 = vrot.lane.b32.xlu0 %v487, 12
  %v823 = vpop.permute.xlu0 %822
  %824 = vrot.lane.b32.xlu0 %v489, 12
  %v825 = vpop.permute.xlu0 %824
  %826 = vrot.lane.b32.xlu0 %v491, 12
  %v827 = vpop.permute.xlu0 %826
  %828 = vrot.lane.b32.xlu0 %v493, 12
  %v829 = vpop.permute.xlu0 %828
  %862 = vrot.lane.b32.xlu0 %v495, 16
  %v863 = vpop.permute.xlu0 %862
  %864 = vrot.lane.b32.xlu0 %v497, 16
  %v865 = vpop.permute.xlu0 %864
  %866 = vrot.lane.b32.xlu0 %v499, 16
  %v867 = vpop.permute.xlu0 %866
  %868 = vrot.lane.b32.xlu0 %v501, 16
  %v869 = vpop.permute.xlu0 %868
  %870 = vrot.lane.b32.xlu0 %v503, 16
  %v871 = vpop.permute.xlu0 %870
  %872 = vrot.lane.b32.xlu0 %v505, 16
  %v873 = vpop.permute.xlu0 %872
  %874 = vrot.lane.b32.xlu0 %v507, 16
  %v875 = vpop.permute.xlu0 %874
  %876 = vrot.lane.b32.xlu0 %v509, 16
  %v877 = vpop.permute.xlu0 %876
  %878 = vrot.lane.b32.xlu0 %v511, 16
  %v879 = vpop.permute.xlu0 %878
  %880 = vrot.lane.b32.xlu0 %v513, 16
  %v881 = vpop.permute.xlu0 %880
  %882 = vrot.lane.b32.xlu0 %v515, 16
  %v883 = vpop.permute.xlu0 %882
  %884 = vrot.lane.b32.xlu0 %v517, 16
  %v885 = vpop.permute.xlu0 %884
  %886 = vrot.lane.b32.xlu0 %v519, 16
  %v887 = vpop.permute.xlu0 %886
  %888 = vrot.lane.b32.xlu0 %v521, 16
  %v889 = vpop.permute.xlu0 %888
  %890 = vrot.lane.b32.xlu0 %v523, 16
  %v891 = vpop.permute.xlu0 %890
  %892 = vrot.lane.b32.xlu0 %v525, 16
  %v893 = vpop.permute.xlu0 %892
  %926 = vrot.lane.b32.xlu0 %v527, 20
  %v927 = vpop.permute.xlu0 %926
  %928 = vrot.lane.b32.xlu0 %v529, 20
  %v929 = vpop.permute.xlu0 %928
  %930 = vrot.lane.b32.xlu0 %v531, 20
  %v931 = vpop.permute.xlu0 %930
  %932 = vrot.lane.b32.xlu0 %v533, 20
  %v933 = vpop.permute.xlu0 %932
  %934 = vrot.lane.b32.xlu0 %v535, 20
  %v935 = vpop.permute.xlu0 %934
  %936 = vrot.lane.b32.xlu0 %v537, 20
  %v937 = vpop.permute.xlu0 %936
  %938 = vrot.lane.b32.xlu0 %v539, 20
  %v939 = vpop.permute.xlu0 %938
  %940 = vrot.lane.b32.xlu0 %v541, 20
  %v941 = vpop.permute.xlu0 %940
  %942 = vrot.lane.b32.xlu0 %v543, 20
  %v943 = vpop.permute.xlu0 %942
  %944 = vrot.lane.b32.xlu0 %v545, 20
  %v945 = vpop.permute.xlu0 %944
  %946 = vrot.lane.b32.xlu0 %v547, 20
  %v947 = vpop.permute.xlu0 %946
  %948 = vrot.lane.b32.xlu0 %v549, 20
  %v949 = vpop.permute.xlu0 %948
  %950 = vrot.lane.b32.xlu0 %v551, 20
  %v951 = vpop.permute.xlu0 %950
  %952 = vrot.lane.b32.xlu0 %v553, 20
  %v953 = vpop.permute.xlu0 %952
  %954 = vrot.lane.b32.xlu0 %v555, 20
  %v955 = vpop.permute.xlu0 %954
  %956 = vrot.lane.b32.xlu0 %v557, 20
  %v957 = vpop.permute.xlu0 %956
  %990 = vrot.lane.b32.xlu0 %v559, 24
  %v991 = vpop.permute.xlu0 %990
  %992 = vrot.lane.b32.xlu0 %v561, 24
  %v993 = vpop.permute.xlu0 %992
  %994 = vrot.lane.b32.xlu0 %v563, 24
  %v995 = vpop.permute.xlu0 %994
  %996 = vrot.lane.b32.xlu0 %v565, 24
  %v997 = vpop.permute.xlu0 %996
  %998 = vrot.lane.b32.xlu0 %v567, 24
  %v999 = vpop.permute.xlu0 %998
  %1000 = vrot.lane.b32.xlu0 %v569, 24
  %v1001 = vpop.permute.xlu0 %1000
  %1002 = vrot.lane.b32.xlu0 %v571, 24
  %v1003 = vpop.permute.xlu0 %1002
  %1004 = vrot.lane.b32.xlu0 %v573, 24
  %v1005 = vpop.permute.xlu0 %1004
  %1006 = vrot.lane.b32.xlu0 %v575, 24
  %v1007 = vpop.permute.xlu0 %1006
  %1008 = vrot.lane.b32.xlu0 %v577, 24
  %v1009 = vpop.permute.xlu0 %1008
  %1010 = vrot.lane.b32.xlu0 %v579, 24
  %v1011 = vpop.permute.xlu0 %1010
  %1012 = vrot.lane.b32.xlu0 %v581, 24
  %v1013 = vpop.permute.xlu0 %1012
  %1014 = vrot.lane.b32.xlu0 %v583, 24
  %v1015 = vpop.permute.xlu0 %1014
  %1016 = vrot.lane.b32.xlu0 %v585, 24
  %v1017 = vpop.permute.xlu0 %1016
  %1018 = vrot.lane.b32.xlu0 %v587, 24
  %v1019 = vpop.permute.xlu0 %1018
  %1020 = vrot.lane.b32.xlu0 %v589, 24
  %v1021 = vpop.permute.xlu0 %1020
  %1054 = vrot.lane.b32.xlu0 %v591, 28
  %v1055 = vpop.permute.xlu0 %1054
  %1056 = vrot.lane.b32.xlu0 %v593, 28
  %v1057 = vpop.permute.xlu0 %1056
  %1058 = vrot.lane.b32.xlu0 %v595, 28
  %v1059 = vpop.permute.xlu0 %1058
  %1060 = vrot.lane.b32.xlu0 %v597, 28
  %v1061 = vpop.permute.xlu0 %1060
  %1062 = vrot.lane.b32.xlu0 %v599, 28
  %v1063 = vpop.permute.xlu0 %1062
  %1064 = vrot.lane.b32.xlu0 %v601, 28
  %v1065 = vpop.permute.xlu0 %1064
  %1066 = vrot.lane.b32.xlu0 %v603, 28
  %v1067 = vpop.permute.xlu0 %1066
  %1068 = vrot.lane.b32.xlu0 %v605, 28
  %v1069 = vpop.permute.xlu0 %1068
  %1070 = vrot.lane.b32.xlu0 %v607, 28
  %v1071 = vpop.permute.xlu0 %1070
  %1072 = vrot.lane.b32.xlu0 %v609, 28
  %v1073 = vpop.permute.xlu0 %1072
  %1074 = vrot.lane.b32.xlu0 %v611, 28
  %v1075 = vpop.permute.xlu0 %1074
  %1076 = vrot.lane.b32.xlu0 %v613, 28
  %v1077 = vpop.permute.xlu0 %1076
  %1078 = vrot.lane.b32.xlu0 %v615, 28
  %v1079 = vpop.permute.xlu0 %1078
  %1080 = vrot.lane.b32.xlu0 %v617, 28
  %v1081 = vpop.permute.xlu0 %1080
  %1082 = vrot.lane.b32.xlu0 %v619, 28
  %v1083 = vpop.permute.xlu0 %1082
  %1084 = vrot.lane.b32.xlu0 %v621, 28
  %v1085 = vpop.permute.xlu0 %1084
  %1118 = vrot.lane.b32.xlu0 %v623, 32
  %v1119 = vpop.permute.xlu0 %1118
  %1120 = vrot.lane.b32.xlu0 %v625, 32
  %v1121 = vpop.permute.xlu0 %1120
  %1122 = vrot.lane.b32.xlu0 %v627, 32
  %v1123 = vpop.permute.xlu0 %1122
  %1124 = vrot.lane.b32.xlu0 %v629, 32
  %v1125 = vpop.permute.xlu0 %1124
  %1126 = vrot.lane.b32.xlu0 %v631, 32
  %v1127 = vpop.permute.xlu0 %1126
  %1128 = vrot.lane.b32.xlu0 %v633, 32
  %v1129 = vpop.permute.xlu0 %1128
  %1130 = vrot.lane.b32.xlu0 %v635, 32
  %v1131 = vpop.permute.xlu0 %1130
  %1132 = vrot.lane.b32.xlu0 %v637, 32
  %v1133 = vpop.permute.xlu0 %1132
  %1134 = vrot.lane.b32.xlu0 %v639, 32
  %v1135 = vpop.permute.xlu0 %1134
  %1136 = vrot.lane.b32.xlu0 %v641, 32
  %v1137 = vpop.permute.xlu0 %1136
  %1138 = vrot.lane.b32.xlu0 %v643, 32
  %v1139 = vpop.permute.xlu0 %1138
  %1140 = vrot.lane.b32.xlu0 %v645, 32
  %v1141 = vpop.permute.xlu0 %1140
  %1142 = vrot.lane.b32.xlu0 %v647, 32
  %v1143 = vpop.permute.xlu0 %1142
  %1144 = vrot.lane.b32.xlu0 %v649, 32
  %v1145 = vpop.permute.xlu0 %1144
  %1146 = vrot.lane.b32.xlu0 %v651, 32
  %v1147 = vpop.permute.xlu0 %1146
  %1148 = vrot.lane.b32.xlu0 %v653, 32
  %v1149 = vpop.permute.xlu0 %1148
  %v1166 = vsel %vm45, %v368, %v671
  %v1167 = vsel %vm45, %v370, %v673
  %v1168 = vsel %vm45, %v372, %v675
  %v1169 = vsel %vm45, %v374, %v677
  %v1170 = vsel %vm45, %v376, %v679
  %v1171 = vsel %vm45, %v378, %v681
  %v1172 = vsel %vm45, %v380, %v683
  %v1173 = vsel %vm45, %v382, %v685
  %v1174 = vsel %vm45, %v384, %v687
  %v1175 = vsel %vm45, %v386, %v689
  %v1176 = vsel %vm45, %v388, %v691
  %v1177 = vsel %vm45, %v390, %v693
  %v1178 = vsel %vm45, %v392, %v695
  %v1179 = vsel %vm45, %v394, %v697
  %v1180 = vsel %vm45, %v396, %v699
  %v1181 = vsel %vm45, %v398, %v701
  %vm1182 = vcmask 64512
  %v1183 = vsel %vm1182, %v1166, %v735
  %v1184 = vsel %vm1182, %v1167, %v737
  %v1185 = vsel %vm1182, %v1168, %v739
  %v1186 = vsel %vm1182, %v1169, %v741
  %v1187 = vsel %vm1182, %v1170, %v743
  %v1188 = vsel %vm1182, %v1171, %v745
  %v1189 = vsel %vm1182, %v1172, %v747
  %v1190 = vsel %vm1182, %v1173, %v749
  %v1191 = vsel %vm1182, %v1174, %v751
  %v1192 = vsel %vm1182, %v1175, %v753
  %v1193 = vsel %vm1182, %v1176, %v755
  %v1194 = vsel %vm1182, %v1177, %v757
  %v1195 = vsel %vm1182, %v1178, %v759
  %v1196 = vsel %vm1182, %v1179, %v761
  %v1197 = vsel %vm1182, %v1180, %v763
  %v1198 = vsel %vm1182, %v1181, %v765
  %vm1199 = vcmask 97280
  %v1200 = vsel %vm1199, %v1183, %v799
  %v1201 = vsel %vm1199, %v1184, %v801
  %v1202 = vsel %vm1199, %v1185, %v803
  %v1203 = vsel %vm1199, %v1186, %v805
  %v1204 = vsel %vm1199, %v1187, %v807
  %v1205 = vsel %vm1199, %v1188, %v809
  %v1206 = vsel %vm1199, %v1189, %v811
  %v1207 = vsel %vm1199, %v1190, %v813
  %v1208 = vsel %vm1199, %v1191, %v815
  %v1209 = vsel %vm1199, %v1192, %v817
  %v1210 = vsel %vm1199, %v1193, %v819
  %v1211 = vsel %vm1199, %v1194, %v821
  %v1212 = vsel %vm1199, %v1195, %v823
  %v1213 = vsel %vm1199, %v1196, %v825
  %v1214 = vsel %vm1199, %v1197, %v827
  %v1215 = vsel %vm1199, %v1198, %v829
  %v1216 = vsel %vm133, %v1200, %v863
  %v1217 = vsel %vm133, %v1201, %v865
  %v1218 = vsel %vm133, %v1202, %v867
  %v1219 = vsel %vm133, %v1203, %v869
  %v1220 = vsel %vm133, %v1204, %v871
  %v1221 = vsel %vm133, %v1205, %v873
  %v1222 = vsel %vm133, %v1206, %v875
  %v1223 = vsel %vm133, %v1207, %v877
  %v1224 = vsel %vm133, %v1208, %v879
  %v1225 = vsel %vm133, %v1209, %v881
  %v1226 = vsel %vm133, %v1210, %v883
  %v1227 = vsel %vm133, %v1211, %v885
  %v1228 = vsel %vm133, %v1212, %v887
  %v1229 = vsel %vm133, %v1213, %v889
  %v1230 = vsel %vm133, %v1214, %v891
  %v1231 = vsel %vm133, %v1215, %v893
  %vm1232 = vcmask 162816
  %v1233 = vsel %vm1232, %v1216, %v927
  %v1234 = vsel %vm1232, %v1217, %v929
  %v1235 = vsel %vm1232, %v1218, %v931
  %v1236 = vsel %vm1232, %v1219, %v933
  %v1237 = vsel %vm1232, %v1220, %v935
  %v1238 = vsel %vm1232, %v1221, %v937
  %v1239 = vsel %vm1232, %v1222, %v939
  %v1240 = vsel %vm1232, %v1223, %v941
  %v1241 = vsel %vm1232, %v1224, %v943
  %v1242 = vsel %vm1232, %v1225, %v945
  %v1243 = vsel %vm1232, %v1226, %v947
  %v1244 = vsel %vm1232, %v1227, %v949
  %v1245 = vsel %vm1232, %v1228, %v951
  %v1246 = vsel %vm1232, %v1229, %v953
  %v1247 = vsel %vm1232, %v1230, %v955
  %v1248 = vsel %vm1232, %v1231, %v957
  %vm1249 = vcmask 195584
  %v1250 = vsel %vm1249, %v1233, %v991
  %v1251 = vsel %vm1249, %v1234, %v993
  %v1252 = vsel %vm1249, %v1235, %v995
  %v1253 = vsel %vm1249, %v1236, %v997
  %v1254 = vsel %vm1249, %v1237, %v999
  %v1255 = vsel %vm1249, %v1238, %v1001
  %v1256 = vsel %vm1249, %v1239, %v1003
  %v1257 = vsel %vm1249, %v1240, %v1005
  %v1258 = vsel %vm1249, %v1241, %v1007
  %v1259 = vsel %vm1249, %v1242, %v1009
  %v1260 = vsel %vm1249, %v1243, %v1011
  %v1261 = vsel %vm1249, %v1244, %v1013
  %v1262 = vsel %vm1249, %v1245, %v1015
  %v1263 = vsel %vm1249, %v1246, %v1017
  %v1264 = vsel %vm1249, %v1247, %v1019
  %v1265 = vsel %vm1249, %v1248, %v1021
  %vm1266 = vcmask 228352
  %v1267 = vsel %vm1266, %v1250, %v1055
  %v1268 = vsel %vm1266, %v1251, %v1057
  %v1269 = vsel %vm1266, %v1252, %v1059
  %v1270 = vsel %vm1266, %v1253, %v1061
  %v1271 = vsel %vm1266, %v1254, %v1063
  %v1272 = vsel %vm1266, %v1255, %v1065
  %v1273 = vsel %vm1266, %v1256, %v1067
  %v1274 = vsel %vm1266, %v1257, %v1069
  %v1275 = vsel %vm1266, %v1258, %v1071
  %v1276 = vsel %vm1266, %v1259, %v1073
  %v1277 = vsel %vm1266, %v1260, %v1075
  %v1278 = vsel %vm1266, %v1261, %v1077
  %v1279 = vsel %vm1266, %v1262, %v1079
  %v1280 = vsel %vm1266, %v1263, %v1081
  %v1281 = vsel %vm1266, %v1264, %v1083
  %v1282 = vsel %vm1266, %v1265, %v1085
  %vm1283 = vcmask 261120
  %v1284 = vsel %vm1283, %v1267, %v1119
  %v1285 = vsel %vm1283, %v1268, %v1121
  %v1286 = vsel %vm1283, %v1269, %v1123
  %v1287 = vsel %vm1283, %v1270, %v1125
  %v1288 = vsel %vm1283, %v1271, %v1127
  %v1289 = vsel %vm1283, %v1272, %v1129
  %v1290 = vsel %vm1283, %v1273, %v1131
  %v1291 = vsel %vm1283, %v1274, %v1133
  %v1292 = vsel %vm1283, %v1275, %v1135
  %v1293 = vsel %vm1283, %v1276, %v1137
  %v1294 = vsel %vm1283, %v1277, %v1139
  %v1295 = vsel %vm1283, %v1278, %v1141
  %v1296 = vsel %vm1283, %v1279, %v1143
  %v1297 = vsel %vm1283, %v1280, %v1145
  %v1298 = vsel %vm1283, %v1281, %v1147
  %v1299 = vsel %vm1283, %v1282, %v1149
  %v1300 = vpack.c.bf16 %v1285, %v1284
  %v1301 = vpack.c.bf16 %v1287, %v1286
  %v1302 = vpack.c.bf16 %v1289, %v1288
  %v1303 = vpack.c.bf16 %v1291, %v1290
  %v1304 = vpack.c.bf16 %v1293, %v1292
  %v1305 = vpack.c.bf16 %v1295, %v1294
  %v1306 = vpack.c.bf16 %v1297, %v1296
  %v1307 = vpack.c.bf16 %v1299, %v1298
  %v1308 = vld [vmem:[%s1] sm:$0xf]
  %v1309 = vld [vmem:[%s1 + $0x4] sm:$0xf]
  %v1310 = vld [vmem:[%s1 + $0x8] sm:$0xf]
  %v1311 = vld [vmem:[%s1 + $0xc] sm:$0xf]
  %v1312 = vld [vmem:[%s1 + $0x10] sm:$0x3]
  %v1318 = vunpack.c.l.b16 %v1308
  %v1319 = vunpack.c.l.b16 %v1309
  %v1320 = vunpack.c.l.b16 %v1310
  %v1321 = vunpack.c.l.b16 %v1311
  %v1322 = vunpack.c.l.b16 %v1312
  %v1323 = vpack.c.b16 %v1319, %v1318
  %v1324 = vpack.c.b16 %v1321, %v1320
  %v1325 = vpack.c.b16 %v1322, %v1322
  %vm1328 = vcmask 293888
  %v1330 = vsel %vm1328, %v1300, 0
  %v1333 = vsel %vm1328, %v1301, 0
  %v1336 = vsel %vm1328, %v1302, 0
  %v1339 = vsel %vm1328, %v1303, 0
  %v1342 = vsel %vm1328, %v1304, 0
  %v1345 = vsel %vm1328, %v1305, 0
  %v1348 = vsel %vm1328, %v1306, 0
  %v1351 = vsel %vm1328, %v1307, 0
  %vm1353 = vcmask 1041408
  %v1355 = vsel %vm1353, %v1325, 0
  %1357 = vmatprep.subr.bf16.mxu0 0
  %1358 = vmatpush1.bf16.msra.mxu0 %v1323
  %1359 = vmatprep.subr.bf16.mxu0 0
  %1360 = vmatpush1.bf16.msra.mxu0 %v1324
  %1361 = vmatprep.subr.bf16.mxu0 0
  %1362 = vmatpush1.bf16.msra.mxu0 %v1355
  %1363 = vmatprep.subr.bf16.mxu0 0
  %1364 = vmatpush1.bf16.msra.mxu0 0
  %1365 = vmatprep.subr.bf16.mxu0 0
  %1366 = vmatpush1.bf16.msra.mxu0 0
  %1367 = vmatprep.subr.bf16.mxu0 0
  %1368 = vmatpush1.bf16.msra.mxu0 0
  %1369 = vmatprep.subr.bf16.mxu0 0
  %1370 = vmatpush1.bf16.msra.mxu0 0
  %1371 = vmatprep.subr.bf16.mxu0 0
  %1372 = vmatpush1.bf16.msra.mxu0 0
  %1373 = vmatprep.subr.bf16.mxu0 0
  %1374 = vmatpush1.bf16.msra.mxu0 0
  %1375 = vmatprep.subr.bf16.mxu0 0
  %1376 = vmatpush1.bf16.msra.mxu0 0
  %1377 = vmatprep.subr.bf16.mxu0 0
  %1378 = vmatpush1.bf16.msra.mxu0 0
  %1379 = vmatprep.subr.bf16.mxu0 0
  %1380 = vmatpush1.bf16.msra.mxu0 0
  %1381 = vmatprep.subr.bf16.mxu0 0
  %1382 = vmatpush1.bf16.msra.mxu0 0
  %1383 = vmatprep.subr.bf16.mxu0 0
  %1384 = vmatpush1.bf16.msra.mxu0 0
  %1385 = vmatprep.subr.bf16.mxu0 0
  %1386 = vmatpush1.bf16.msra.mxu0 0
  %1387 = vmatprep.subr.bf16.mxu0 0
  %1388 = vmatpush1.bf16.msra.mxu0 0
  %1389 = vmatprep.mubr.bf16.mxu0 0
  %1390 = vmatmul.mubr.bf16.gmra.mrb[0].mxu0 %v1330
  %v1391 = vpop.f32.mrb[0].mxu0
  %v1392 = vadd.f32 0.0, %v1391
  %v1393 = vpop.f32.mrb[0].mxu0
  %v1394 = vpop.f32.mrb[0].mxu0
  %v1395 = vadd.f32 0.0, %v1394
  %v1396 = vpop.f32.mrb[0].mxu0
  %1397 = vmatprep.mubr.bf16.mxu0 0
  %1398 = vmatmul.mubr.bf16.gmra.mrb[0].mxu0 %v1333
  %v1399 = vpop.f32.mrb[0].mxu0
  %v1400 = vadd.f32 0.0, %v1399
  %v1401 = vpop.f32.mrb[0].mxu0
  %v1402 = vpop.f32.mrb[0].mxu0
  %v1403 = vadd.f32 0.0, %v1402
  %v1404 = vpop.f32.mrb[0].mxu0
  %1405 = vmatprep.mubr.bf16.mxu0 0
  %1406 = vmatmul.mubr.bf16.gmra.mrb[0].mxu0 %v1336
  %v1407 = vpop.f32.mrb[0].mxu0
  %v1408 = vadd.f32 0.0, %v1407
  %v1409 = vpop.f32.mrb[0].mxu0
  %v1410 = vpop.f32.mrb[0].mxu0
  %v1411 = vadd.f32 0.0, %v1410
  %v1412 = vpop.f32.mrb[0].mxu0
  %1413 = vmatprep.mubr.bf16.mxu0 0
  %1414 = vmatmul.mubr.bf16.gmra.mrb[0].mxu0 %v1339
  %v1415 = vpop.f32.mrb[0].mxu0
  %v1416 = vadd.f32 0.0, %v1415
  %v1417 = vpop.f32.mrb[0].mxu0
  %v1418 = vpop.f32.mrb[0].mxu0
  %v1419 = vadd.f32 0.0, %v1418
  %v1420 = vpop.f32.mrb[0].mxu0
  %1421 = vmatprep.mubr.bf16.mxu0 0
  %1422 = vmatmul.mubr.bf16.gmra.mrb[0].mxu0 %v1342
  %v1423 = vpop.f32.mrb[0].mxu0
  %v1424 = vadd.f32 0.0, %v1423
  %v1425 = vpop.f32.mrb[0].mxu0
  %v1426 = vpop.f32.mrb[0].mxu0
  %v1427 = vadd.f32 0.0, %v1426
  %v1428 = vpop.f32.mrb[0].mxu0
  %1429 = vmatprep.mubr.bf16.mxu0 0
  %1430 = vmatmul.mubr.bf16.gmra.mrb[0].mxu0 %v1345
  %v1431 = vpop.f32.mrb[0].mxu0
  %v1432 = vadd.f32 0.0, %v1431
  %v1433 = vpop.f32.mrb[0].mxu0
  %v1434 = vpop.f32.mrb[0].mxu0
  %v1435 = vadd.f32 0.0, %v1434
  %v1436 = vpop.f32.mrb[0].mxu0
  %1437 = vmatprep.mubr.bf16.mxu0 0
  %1438 = vmatmul.mubr.bf16.gmra.mrb[0].mxu0 %v1348
  %v1439 = vpop.f32.mrb[0].mxu0
  %v1440 = vadd.f32 0.0, %v1439
  %v1441 = vpop.f32.mrb[0].mxu0
  %v1442 = vpop.f32.mrb[0].mxu0
  %v1443 = vadd.f32 0.0, %v1442
  %v1444 = vpop.f32.mrb[0].mxu0
  %1445 = vmatprep.mubr.bf16.mxu0 0
  %1446 = vmatmul.mubr.bf16.gmra.mrb[0].mxu0 %v1351
  %v1447 = vpop.f32.mrb[0].mxu0
  %v1448 = vadd.f32 0.0, %v1447
  %v1449 = vpop.f32.mrb[0].mxu0
  %v1450 = vpop.f32.mrb[0].mxu0
  %v1451 = vadd.f32 0.0, %v1450
  %v1452 = vpop.f32.mrb[0].mxu0
  %1453 = vdwg.mxu0
  %v1454 = vsel %vm133, %v1392, 0.0
  %v1455 = vsel %vm133, %v1395, 0.0
  %v1456 = vadd.f32 %v1454, %v1455
  %v1457 = vsel %vm133, %v1400, 0.0
  %v1458 = vadd.f32 %v1456, %v1457
  %v1459 = vsel %vm133, %v1403, 0.0
  %v1460 = vadd.f32 %v1458, %v1459
  %v1461 = vsel %vm133, %v1408, 0.0
  %v1462 = vadd.f32 %v1460, %v1461
  %v1463 = vsel %vm133, %v1411, 0.0
  %v1464 = vadd.f32 %v1462, %v1463
  %v1465 = vsel %vm133, %v1416, 0.0
  %v1466 = vadd.f32 %v1464, %v1465
  %v1467 = vsel %vm133, %v1419, 0.0
  %v1468 = vadd.f32 %v1466, %v1467
  %v1469 = vrot.slane %v1468, 4
  %v1470 = vadd.f32 %v1468, %v1469
  %v1471 = vrot.slane %v1470, 2
  %v1472 = vadd.f32 %v1470, %v1471
  %v1473 = vrot.slane %v1472, 1
  %v1474 = vadd.f32 %v1472, %v1473
  %v1475 = vsel %vm133, %v1424, 0.0
  %v1476 = vsel %vm133, %v1427, 0.0
  %v1477 = vadd.f32 %v1475, %v1476
  %v1478 = vsel %vm133, %v1432, 0.0
  %v1479 = vadd.f32 %v1477, %v1478
  %v1480 = vsel %vm133, %v1435, 0.0
  %v1481 = vadd.f32 %v1479, %v1480
  %v1482 = vsel %vm133, %v1440, 0.0
  %v1483 = vadd.f32 %v1481, %v1482
  %v1484 = vsel %vm133, %v1443, 0.0
  %v1485 = vadd.f32 %v1483, %v1484
  %v1486 = vsel %vm133, %v1448, 0.0
  %v1487 = vadd.f32 %v1485, %v1486
  %v1488 = vsel %vm133, %v1451, 0.0
  %v1489 = vadd.f32 %v1487, %v1488
  %v1490 = vrot.slane %v1489, 4
  %v1491 = vadd.f32 %v1489, %v1490
  %v1492 = vrot.slane %v1491, 2
  %v1493 = vadd.f32 %v1491, %v1492
  %v1494 = vrot.slane %v1493, 1
  %v1495 = vadd.f32 %v1493, %v1494
  %v1496 = vmul.f32 %v1474, 0.015625
  %v1497 = vmul.f32 %v1495, 0.015625
  %v1498 = vsub.f32 %v1392, %v1496
  %v1499 = vsub.f32 %v1395, %v1496
  %v1500 = vsub.f32 %v1400, %v1496
  %v1501 = vsub.f32 %v1403, %v1496
  %v1502 = vsub.f32 %v1408, %v1496
  %v1503 = vsub.f32 %v1411, %v1496
  %v1504 = vsub.f32 %v1416, %v1496
  %v1505 = vsub.f32 %v1419, %v1496
  %v1506 = vsub.f32 %v1424, %v1497
  %v1507 = vsub.f32 %v1427, %v1497
  %v1508 = vsub.f32 %v1432, %v1497
  %v1509 = vsub.f32 %v1435, %v1497
  %v1510 = vsub.f32 %v1440, %v1497
  %v1511 = vsub.f32 %v1443, %v1497
  %v1512 = vsub.f32 %v1448, %v1497
  %v1513 = vsub.f32 %v1451, %v1497
  %v1514 = vmul.f32 %v1498, %v1498
  %v1515 = vmul.f32 %v1499, %v1499
  %v1516 = vmul.f32 %v1500, %v1500
  %v1517 = vmul.f32 %v1501, %v1501
  %v1518 = vmul.f32 %v1502, %v1502
  %v1519 = vmul.f32 %v1503, %v1503
  %v1520 = vmul.f32 %v1504, %v1504
  %v1521 = vmul.f32 %v1505, %v1505
  %v1522 = vmul.f32 %v1506, %v1506
  %v1523 = vmul.f32 %v1507, %v1507
  %v1524 = vmul.f32 %v1508, %v1508
  %v1525 = vmul.f32 %v1509, %v1509
  %v1526 = vmul.f32 %v1510, %v1510
  %v1527 = vmul.f32 %v1511, %v1511
  %v1528 = vmul.f32 %v1512, %v1512
  %v1529 = vmul.f32 %v1513, %v1513
  %v1530 = vsel %vm133, %v1514, 0.0
  %v1531 = vsel %vm133, %v1515, 0.0
  %v1532 = vadd.f32 %v1530, %v1531
  %v1533 = vsel %vm133, %v1516, 0.0
  %v1534 = vadd.f32 %v1532, %v1533
  %v1535 = vsel %vm133, %v1517, 0.0
  %v1536 = vadd.f32 %v1534, %v1535
  %v1537 = vsel %vm133, %v1518, 0.0
  %v1538 = vadd.f32 %v1536, %v1537
  %v1539 = vsel %vm133, %v1519, 0.0
  %v1540 = vadd.f32 %v1538, %v1539
  %v1541 = vsel %vm133, %v1520, 0.0
  %v1542 = vadd.f32 %v1540, %v1541
  %v1543 = vsel %vm133, %v1521, 0.0
  %v1544 = vadd.f32 %v1542, %v1543
  %v1545 = vrot.slane %v1544, 4
  %v1546 = vadd.f32 %v1544, %v1545
  %v1547 = vrot.slane %v1546, 2
  %v1548 = vadd.f32 %v1546, %v1547
  %v1549 = vrot.slane %v1548, 1
  %v1550 = vadd.f32 %v1548, %v1549
  %v1551 = vsel %vm133, %v1522, 0.0
  %v1552 = vsel %vm133, %v1523, 0.0
  %v1553 = vadd.f32 %v1551, %v1552
  %v1554 = vsel %vm133, %v1524, 0.0
  %v1555 = vadd.f32 %v1553, %v1554
  %v1556 = vsel %vm133, %v1525, 0.0
  %v1557 = vadd.f32 %v1555, %v1556
  %v1558 = vsel %vm133, %v1526, 0.0
  %v1559 = vadd.f32 %v1557, %v1558
  %v1560 = vsel %vm133, %v1527, 0.0
  %v1561 = vadd.f32 %v1559, %v1560
  %v1562 = vsel %vm133, %v1528, 0.0
  %v1563 = vadd.f32 %v1561, %v1562
  %v1564 = vsel %vm133, %v1529, 0.0
  %v1565 = vadd.f32 %v1563, %v1564
  %v1566 = vrot.slane %v1565, 4
  %v1567 = vadd.f32 %v1565, %v1566
  %v1568 = vrot.slane %v1567, 2
  %v1569 = vadd.f32 %v1567, %v1568
  %v1570 = vrot.slane %v1569, 1
  %v1571 = vadd.f32 %v1569, %v1570
  %v1572 = vmul.f32 %v1550, 0.015625
  %v1573 = vmul.f32 %v1571, 0.015625
  %v1574 = vld [vmem:[%s2] sm:$0x1]
  %v1575 = vadd.f32 %v1572, 1e-05
  %v1576 = vadd.f32 %v1573, 1e-05
  %v1577 = vrsqrt.pop %v1575
  %v1578 = vrsqrt.pop %v1576
  %v1579 = vmul.f32 %v1574, %v1577
  %v1580 = vmul.f32 %v1574, %v1578
  %v1581 = vld [vmem:[%s3] sm:$0x1]
  %v1582 = vmul.f32 %v1496, %v1579
  %v1583 = vmul.f32 %v1497, %v1580
  %v1584 = vsub.f32 %v1581, %v1582
  %v1585 = vsub.f32 %v1581, %v1583
  %v1588 = vlaneseq
  %v1589 = vshrl.u32 %v1588, 7
  %v1590 = vsub.s32 0, %v1589
  %v1591 = vrot.slane %v1579, %v1590
  %v1592 = vlaneseq
  %v1593 = vshrl.u32 %v1592, 7
  %v1594 = vsub.s32 0, %v1593
  %v1595 = vrot.slane %v1580, %v1594
  %v1598 = vmul.f32 %v1392, %v1591
  %v1599 = vmul.f32 %v1395, %v1591
  %v1600 = vmul.f32 %v1400, %v1591
  %v1601 = vmul.f32 %v1403, %v1591
  %v1602 = vmul.f32 %v1408, %v1591
  %v1603 = vmul.f32 %v1411, %v1591
  %v1604 = vmul.f32 %v1416, %v1591
  %v1605 = vmul.f32 %v1419, %v1591
  %v1606 = vmul.f32 %v1424, %v1595
  %v1607 = vmul.f32 %v1427, %v1595
  %v1608 = vmul.f32 %v1432, %v1595
  %v1609 = vmul.f32 %v1435, %v1595
  %v1610 = vmul.f32 %v1440, %v1595
  %v1611 = vmul.f32 %v1443, %v1595
  %v1612 = vmul.f32 %v1448, %v1595
  %v1613 = vmul.f32 %v1451, %v1595
  %v1616 = vlaneseq
  %v1617 = vshrl.u32 %v1616, 7
  %v1618 = vsub.s32 0, %v1617
  %v1619 = vrot.slane %v1584, %v1618
  %v1620 = vlaneseq
  %v1621 = vshrl.u32 %v1620, 7
  %v1622 = vsub.s32 0, %v1621
  %v1623 = vrot.slane %v1585, %v1622
  %v1626 = vadd.f32 %v1598, %v1619
  %v1627 = vadd.f32 %v1599, %v1619
  %v1628 = vadd.f32 %v1600, %v1619
  %v1629 = vadd.f32 %v1601, %v1619
  %v1630 = vadd.f32 %v1602, %v1619
  %v1631 = vadd.f32 %v1603, %v1619
  %v1632 = vadd.f32 %v1604, %v1619
  %v1633 = vadd.f32 %v1605, %v1619
  %v1634 = vadd.f32 %v1606, %v1623
  %v1635 = vadd.f32 %v1607, %v1623
  %v1636 = vadd.f32 %v1608, %v1623
  %v1637 = vadd.f32 %v1609, %v1623
  %v1638 = vadd.f32 %v1610, %v1623
  %v1639 = vadd.f32 %v1611, %v1623
  %v1640 = vadd.f32 %v1612, %v1623
  %v1641 = vadd.f32 %v1613, %v1623
  %vm1642 = vcmp.ge.f32.partialorder %v1626, 0.0
  %vm1643 = vcmp.ge.f32.partialorder %v1627, 0.0
  %vm1644 = vcmp.ge.f32.partialorder %v1628, 0.0
  %vm1645 = vcmp.ge.f32.partialorder %v1629, 0.0
  %vm1646 = vcmp.ge.f32.partialorder %v1630, 0.0
  %vm1647 = vcmp.ge.f32.partialorder %v1631, 0.0
  %vm1648 = vcmp.ge.f32.partialorder %v1632, 0.0
  %vm1649 = vcmp.ge.f32.partialorder %v1633, 0.0
  %vm1650 = vcmp.ge.f32.partialorder %v1634, 0.0
  %vm1651 = vcmp.ge.f32.partialorder %v1635, 0.0
  %vm1652 = vcmp.ge.f32.partialorder %v1636, 0.0
  %vm1653 = vcmp.ge.f32.partialorder %v1637, 0.0
  %vm1654 = vcmp.ge.f32.partialorder %v1638, 0.0
  %vm1655 = vcmp.ge.f32.partialorder %v1639, 0.0
  %vm1656 = vcmp.ge.f32.partialorder %v1640, 0.0
  %vm1657 = vcmp.ge.f32.partialorder %v1641, 0.0
  %v1658 = vmul.f32 %v1626, 0.01
  %v1659 = vmul.f32 %v1627, 0.01
  %v1660 = vmul.f32 %v1628, 0.01
  %v1661 = vmul.f32 %v1629, 0.01
  %v1662 = vmul.f32 %v1630, 0.01
  %v1663 = vmul.f32 %v1631, 0.01
  %v1664 = vmul.f32 %v1632, 0.01
  %v1665 = vmul.f32 %v1633, 0.01
  %v1666 = vmul.f32 %v1634, 0.01
  %v1667 = vmul.f32 %v1635, 0.01
  %v1668 = vmul.f32 %v1636, 0.01
  %v1669 = vmul.f32 %v1637, 0.01
  %v1670 = vmul.f32 %v1638, 0.01
  %v1671 = vmul.f32 %v1639, 0.01
  %v1672 = vmul.f32 %v1640, 0.01
  %v1673 = vmul.f32 %v1641, 0.01
  %v1674 = vsel %vm1642, %v1626, %v1658
  %v1675 = vsel %vm1643, %v1627, %v1659
  %v1676 = vsel %vm1644, %v1628, %v1660
  %v1677 = vsel %vm1645, %v1629, %v1661
  %v1678 = vsel %vm1646, %v1630, %v1662
  %v1679 = vsel %vm1647, %v1631, %v1663
  %v1680 = vsel %vm1648, %v1632, %v1664
  %v1681 = vsel %vm1649, %v1633, %v1665
  %v1682 = vsel %vm1650, %v1634, %v1666
  %v1683 = vsel %vm1651, %v1635, %v1667
  %v1684 = vsel %vm1652, %v1636, %v1668
  %v1685 = vsel %vm1653, %v1637, %v1669
  %v1686 = vsel %vm1654, %v1638, %v1670
  %v1687 = vsel %vm1655, %v1639, %v1671
  %v1688 = vsel %vm1656, %v1640, %v1672
  %v1689 = vsel %vm1657, %v1641, %v1673
  %s1690 = scalar_lea.vmem [#allocation3], 16
  %1691 = vst.msk [vmem:[%s1690 + $0x1] sm:$0xff] %vm133, %v1674
  %1692 = vst.msk [vmem:[%s1690 + $0x11] sm:$0xff] %vm133, %v1675
  %1693 = vst.msk [vmem:[%s1690 + $0x21] sm:$0xff] %vm133, %v1676
  %1694 = vst.msk [vmem:[%s1690 + $0x31] sm:$0xff] %vm133, %v1677
  %1695 = vst.msk [vmem:[%s1690 + $0x41] sm:$0xff] %vm133, %v1678
  %1696 = vst.msk [vmem:[%s1690 + $0x51] sm:$0xff] %vm133, %v1679
  %1697 = vst.msk [vmem:[%s1690 + $0x61] sm:$0xff] %vm133, %v1680
  %1698 = vst.msk [vmem:[%s1690 + $0x71] sm:$0xff] %vm133, %v1681
  %1699 = vst.msk [vmem:[%s1690 + $0xa1] sm:$0xff] %vm133, %v1682
  %1700 = vst.msk [vmem:[%s1690 + $0xb1] sm:$0xff] %vm133, %v1683
  %1701 = vst.msk [vmem:[%s1690 + $0xc1] sm:$0xff] %vm133, %v1684
  %1702 = vst.msk [vmem:[%s1690 + $0xd1] sm:$0xff] %vm133, %v1685
  %1703 = vst.msk [vmem:[%s1690 + $0xe1] sm:$0xff] %vm133, %v1686
  %1704 = vst.msk [vmem:[%s1690 + $0xf1] sm:$0xff] %vm133, %v1687
  %1705 = vst.msk [vmem:[%s1690 + $0x101] sm:$0xff] %vm133, %v1688
  %1706 = vst.msk [vmem:[%s1690 + $0x111] sm:$0xff] %vm133, %v1689
  %v1707 = vld [vmem:[#allocation3] ss:$2 sm:$0xf]
  %s1708 = scalar_lea.vmem [#allocation3], 32
  %v1709 = vld [vmem:[%s1708] ss:$2 sm:$0xf]
  %s1710 = scalar_lea.vmem [#allocation3], 64
  %v1711 = vld [vmem:[%s1710] ss:$2 sm:$0xf]
  %s1712 = scalar_lea.vmem [#allocation3], 96
  %v1713 = vld [vmem:[%s1712] ss:$2 sm:$0xf]
  %s1714 = scalar_lea.vmem [#allocation3], 160
  %v1715 = vld [vmem:[%s1714] ss:$2 sm:$0xf]
  %s1716 = scalar_lea.vmem [#allocation3], 192
  %v1717 = vld [vmem:[%s1716] ss:$2 sm:$0xf]
  %s1718 = scalar_lea.vmem [#allocation3], 224
  %v1719 = vld [vmem:[%s1718] ss:$2 sm:$0xf]
  %s1720 = scalar_lea.vmem [#allocation3], 256
  %v1721 = vld [vmem:[%s1720] ss:$2 sm:$0xf]
  %s1722 = scalar_lea.vmem [#allocation3], 1
  %v1723 = vld [vmem:[%s1722] ss:$2 sm:$0xf]
  %s1724 = scalar_lea.vmem [#allocation3], 33
  %v1725 = vld [vmem:[%s1724] ss:$2 sm:$0xf]
  %s1726 = scalar_lea.vmem [#allocation3], 65
  %v1727 = vld [vmem:[%s1726] ss:$2 sm:$0xf]
  %s1728 = scalar_lea.vmem [#allocation3], 97
  %v1729 = vld [vmem:[%s1728] ss:$2 sm:$0xf]
  %s1730 = scalar_lea.vmem [#allocation3], 161
  %v1731 = vld [vmem:[%s1730] ss:$2 sm:$0xf]
  %s1732 = scalar_lea.vmem [#allocation3], 193
  %v1733 = vld [vmem:[%s1732] ss:$2 sm:$0xf]
  %s1734 = scalar_lea.vmem [#allocation3], 225
  %v1735 = vld [vmem:[%s1734] ss:$2 sm:$0xf]
  %s1736 = scalar_lea.vmem [#allocation3], 257
  %v1737 = vld [vmem:[%s1736] ss:$2 sm:$0xf]
  %s1738 = scalar_lea.vmem [#allocation3], 2
  %v1739 = vld [vmem:[%s1738] ss:$2 sm:$0xf]
  %s1740 = scalar_lea.vmem [#allocation3], 34
  %v1741 = vld [vmem:[%s1740] ss:$2 sm:$0xf]
  %s1742 = scalar_lea.vmem [#allocation3], 66
  %v1743 = vld [vmem:[%s1742] ss:$2 sm:$0xf]
  %s1744 = scalar_lea.vmem [#allocation3], 98
  %v1745 = vld [vmem:[%s1744] ss:$2 sm:$0xf]
  %s1746 = scalar_lea.vmem [#allocation3], 162
  %v1747 = vld [vmem:[%s1746] ss:$2 sm:$0xf]
  %s1748 = scalar_lea.vmem [#allocation3], 194
  %v1749 = vld [vmem:[%s1748] ss:$2 sm:$0xf]
  %s1750 = scalar_lea.vmem [#allocation3], 226
  %v1751 = vld [vmem:[%s1750] ss:$2 sm:$0xf]
  %s1752 = scalar_lea.vmem [#allocation3], 258
  %v1753 = vld [vmem:[%s1752] ss:$2 sm:$0xf]
  %v1754 = vld [vmem:[%s1690] ss:$2 sm:$0xf]
  %s1755 = scalar_lea.vmem %s1690, 32 [#allocation3]
  %v1756 = vld [vmem:[%s1755] ss:$2 sm:$0xf]
  %s1757 = scalar_lea.vmem %s1690, 64 [#allocation3]
  %v1758 = vld [vmem:[%s1757] ss:$2 sm:$0xf]
  %s1759 = scalar_lea.vmem %s1690, 96 [#allocation3]
  %v1760 = vld [vmem:[%s1759] ss:$2 sm:$0xf]
  %s1761 = scalar_lea.vmem %s1690, 160 [#allocation3]
  %v1762 = vld [vmem:[%s1761] ss:$2 sm:$0xf]
  %s1763 = scalar_lea.vmem %s1690, 192 [#allocation3]
  %v1764 = vld [vmem:[%s1763] ss:$2 sm:$0xf]
  %s1765 = scalar_lea.vmem %s1690, 224 [#allocation3]
  %v1766 = vld [vmem:[%s1765] ss:$2 sm:$0xf]
  %s1767 = scalar_lea.vmem %s1690, 256 [#allocation3]
  %v1768 = vld [vmem:[%s1767] ss:$2 sm:$0xf]
  %s1769 = scalar_lea.vmem %s1690, 1 [#allocation3]
  %v1770 = vld [vmem:[%s1769] ss:$2 sm:$0xf]
  %s1771 = scalar_lea.vmem %s1690, 33 [#allocation3]
  %v1772 = vld [vmem:[%s1771] ss:$2 sm:$0xf]
  %s1773 = scalar_lea.vmem %s1690, 65 [#allocation3]
  %v1774 = vld [vmem:[%s1773] ss:$2 sm:$0xf]
  %s1775 = scalar_lea.vmem %s1690, 97 [#allocation3]
  %v1776 = vld [vmem:[%s1775] ss:$2 sm:$0xf]
  %s1777 = scalar_lea.vmem %s1690, 161 [#allocation3]
  %v1778 = vld [vmem:[%s1777] ss:$2 sm:$0xf]
  %s1779 = scalar_lea.vmem %s1690, 193 [#allocation3]
  %v1780 = vld [vmem:[%s1779] ss:$2 sm:$0xf]
  %s1781 = scalar_lea.vmem %s1690, 225 [#allocation3]
  %v1782 = vld [vmem:[%s1781] ss:$2 sm:$0xf]
  %s1783 = scalar_lea.vmem %s1690, 257 [#allocation3]
  %v1784 = vld [vmem:[%s1783] ss:$2 sm:$0xf]
  %s1785 = scalar_lea.vmem %s1690, 2 [#allocation3]
  %v1786 = vld [vmem:[%s1785] ss:$2 sm:$0xf]
  %s1787 = scalar_lea.vmem %s1690, 34 [#allocation3]
  %v1788 = vld [vmem:[%s1787] ss:$2 sm:$0xf]
  %s1789 = scalar_lea.vmem %s1690, 66 [#allocation3]
  %v1790 = vld [vmem:[%s1789] ss:$2 sm:$0xf]
  %s1791 = scalar_lea.vmem %s1690, 98 [#allocation3]
  %v1792 = vld [vmem:[%s1791] ss:$2 sm:$0xf]
  %s1793 = scalar_lea.vmem %s1690, 162 [#allocation3]
  %v1794 = vld [vmem:[%s1793] ss:$2 sm:$0xf]
  %s1795 = scalar_lea.vmem %s1690, 194 [#allocation3]
  %v1796 = vld [vmem:[%s1795] ss:$2 sm:$0xf]
  %s1797 = scalar_lea.vmem %s1690, 226 [#allocation3]
  %v1798 = vld [vmem:[%s1797] ss:$2 sm:$0xf]
  %s1799 = scalar_lea.vmem %s1690, 258 [#allocation3]
  %v1800 = vld [vmem:[%s1799] ss:$2 sm:$0xf]
  %s1801 = scalar_lea.vmem [#allocation3], 32
  %v1802 = vld [vmem:[%s1801] ss:$2 sm:$0xf]
  %s1803 = scalar_lea.vmem %s1801, 32 [#allocation3]
  %v1804 = vld [vmem:[%s1803] ss:$2 sm:$0xf]
  %s1805 = scalar_lea.vmem %s1801, 64 [#allocation3]
  %v1806 = vld [vmem:[%s1805] ss:$2 sm:$0xf]
  %s1807 = scalar_lea.vmem %s1801, 96 [#allocation3]
  %v1808 = vld [vmem:[%s1807] ss:$2 sm:$0xf]
  %s1809 = scalar_lea.vmem %s1801, 160 [#allocation3]
  %v1810 = vld [vmem:[%s1809] ss:$2 sm:$0xf]
  %s1811 = scalar_lea.vmem %s1801, 192 [#allocation3]
  %v1812 = vld [vmem:[%s1811] ss:$2 sm:$0xf]
  %s1813 = scalar_lea.vmem %s1801, 224 [#allocation3]
  %v1814 = vld [vmem:[%s1813] ss:$2 sm:$0xf]
  %s1815 = scalar_lea.vmem %s1801, 256 [#allocation3]
  %v1816 = vld [vmem:[%s1815] ss:$2 sm:$0xf]
  %s1817 = scalar_lea.vmem %s1801, 1 [#allocation3]
  %v1818 = vld [vmem:[%s1817] ss:$2 sm:$0xf]
  %s1819 = scalar_lea.vmem %s1801, 33 [#allocation3]
  %v1820 = vld [vmem:[%s1819] ss:$2 sm:$0xf]
  %s1821 = scalar_lea.vmem %s1801, 65 [#allocation3]
  %v1822 = vld [vmem:[%s1821] ss:$2 sm:$0xf]
  %s1823 = scalar_lea.vmem %s1801, 97 [#allocation3]
  %v1824 = vld [vmem:[%s1823] ss:$2 sm:$0xf]
  %s1825 = scalar_lea.vmem %s1801, 161 [#allocation3]
  %v1826 = vld [vmem:[%s1825] ss:$2 sm:$0xf]
  %s1827 = scalar_lea.vmem %s1801, 193 [#allocation3]
  %v1828 = vld [vmem:[%s1827] ss:$2 sm:$0xf]
  %s1829 = scalar_lea.vmem %s1801, 225 [#allocation3]
  %v1830 = vld [vmem:[%s1829] ss:$2 sm:$0xf]
  %s1831 = scalar_lea.vmem %s1801, 257 [#allocation3]
  %v1832 = vld [vmem:[%s1831] ss:$2 sm:$0xf]
  %s1833 = scalar_lea.vmem %s1801, 2 [#allocation3]
  %v1834 = vld [vmem:[%s1833] ss:$2 sm:$0xf]
  %s1835 = scalar_lea.vmem %s1801, 34 [#allocation3]
  %v1836 = vld [vmem:[%s1835] ss:$2 sm:$0xf]
  %s1837 = scalar_lea.vmem %s1801, 66 [#allocation3]
  %v1838 = vld [vmem:[%s1837] ss:$2 sm:$0xf]
  %s1839 = scalar_lea.vmem %s1801, 98 [#allocation3]
  %v1840 = vld [vmem:[%s1839] ss:$2 sm:$0xf]
  %s1841 = scalar_lea.vmem %s1801, 162 [#allocation3]
  %v1842 = vld [vmem:[%s1841] ss:$2 sm:$0xf]
  %s1843 = scalar_lea.vmem %s1801, 194 [#allocation3]
  %v1844 = vld [vmem:[%s1843] ss:$2 sm:$0xf]
  %s1845 = scalar_lea.vmem %s1801, 226 [#allocation3]
  %v1846 = vld [vmem:[%s1845] ss:$2 sm:$0xf]
  %s1847 = scalar_lea.vmem %s1801, 258 [#allocation3]
  %v1848 = vld [vmem:[%s1847] ss:$2 sm:$0xf]
  %1857 = vrot.lane.b32.xlu0 %v1723, 16
  %v1858 = vpop.permute.xlu0 %1857
  %1859 = vrot.lane.b32.xlu0 %v1725, 16
  %v1860 = vpop.permute.xlu0 %1859
  %1861 = vrot.lane.b32.xlu0 %v1727, 16
  %v1862 = vpop.permute.xlu0 %1861
  %1863 = vrot.lane.b32.xlu0 %v1729, 16
  %v1864 = vpop.permute.xlu0 %1863
  %1865 = vrot.lane.b32.xlu0 %v1731, 16
  %v1866 = vpop.permute.xlu0 %1865
  %1867 = vrot.lane.b32.xlu0 %v1733, 16
  %v1868 = vpop.permute.xlu0 %1867
  %1869 = vrot.lane.b32.xlu0 %v1735, 16
  %v1870 = vpop.permute.xlu0 %1869
  %1871 = vrot.lane.b32.xlu0 %v1737, 16
  %v1872 = vpop.permute.xlu0 %1871
  %1889 = vrot.lane.b32.xlu0 %v1739, 32
  %v1890 = vpop.permute.xlu0 %1889
  %1891 = vrot.lane.b32.xlu0 %v1741, 32
  %v1892 = vpop.permute.xlu0 %1891
  %1893 = vrot.lane.b32.xlu0 %v1743, 32
  %v1894 = vpop.permute.xlu0 %1893
  %1895 = vrot.lane.b32.xlu0 %v1745, 32
  %v1896 = vpop.permute.xlu0 %1895
  %1897 = vrot.lane.b32.xlu0 %v1747, 32
  %v1898 = vpop.permute.xlu0 %1897
  %1899 = vrot.lane.b32.xlu0 %v1749, 32
  %v1900 = vpop.permute.xlu0 %1899
  %1901 = vrot.lane.b32.xlu0 %v1751, 32
  %v1902 = vpop.permute.xlu0 %1901
  %1903 = vrot.lane.b32.xlu0 %v1753, 32
  %v1904 = vpop.permute.xlu0 %1903
  %1921 = vrot.lane.b32.xlu0 %v1754, 48
  %v1922 = vpop.permute.xlu0 %1921
  %1923 = vrot.lane.b32.xlu0 %v1756, 48
  %v1924 = vpop.permute.xlu0 %1923
  %1925 = vrot.lane.b32.xlu0 %v1758, 48
  %v1926 = vpop.permute.xlu0 %1925
  %1927 = vrot.lane.b32.xlu0 %v1760, 48
  %v1928 = vpop.permute.xlu0 %1927
  %1929 = vrot.lane.b32.xlu0 %v1762, 48
  %v1930 = vpop.permute.xlu0 %1929
  %1931 = vrot.lane.b32.xlu0 %v1764, 48
  %v1932 = vpop.permute.xlu0 %1931
  %1933 = vrot.lane.b32.xlu0 %v1766, 48
  %v1934 = vpop.permute.xlu0 %1933
  %1935 = vrot.lane.b32.xlu0 %v1768, 48
  %v1936 = vpop.permute.xlu0 %1935
  %1953 = vrot.lane.b32.xlu0 %v1770, 64
  %v1954 = vpop.permute.xlu0 %1953
  %1955 = vrot.lane.b32.xlu0 %v1772, 64
  %v1956 = vpop.permute.xlu0 %1955
  %1957 = vrot.lane.b32.xlu0 %v1774, 64
  %v1958 = vpop.permute.xlu0 %1957
  %1959 = vrot.lane.b32.xlu0 %v1776, 64
  %v1960 = vpop.permute.xlu0 %1959
  %1961 = vrot.lane.b32.xlu0 %v1778, 64
  %v1962 = vpop.permute.xlu0 %1961
  %1963 = vrot.lane.b32.xlu0 %v1780, 64
  %v1964 = vpop.permute.xlu0 %1963
  %1965 = vrot.lane.b32.xlu0 %v1782, 64
  %v1966 = vpop.permute.xlu0 %1965
  %1967 = vrot.lane.b32.xlu0 %v1784, 64
  %v1968 = vpop.permute.xlu0 %1967
  %1985 = vrot.lane.b32.xlu0 %v1786, 80
  %v1986 = vpop.permute.xlu0 %1985
  %1987 = vrot.lane.b32.xlu0 %v1788, 80
  %v1988 = vpop.permute.xlu0 %1987
  %1989 = vrot.lane.b32.xlu0 %v1790, 80
  %v1990 = vpop.permute.xlu0 %1989
  %1991 = vrot.lane.b32.xlu0 %v1792, 80
  %v1992 = vpop.permute.xlu0 %1991
  %1993 = vrot.lane.b32.xlu0 %v1794, 80
  %v1994 = vpop.permute.xlu0 %1993
  %1995 = vrot.lane.b32.xlu0 %v1796, 80
  %v1996 = vpop.permute.xlu0 %1995
  %1997 = vrot.lane.b32.xlu0 %v1798, 80
  %v1998 = vpop.permute.xlu0 %1997
  %1999 = vrot.lane.b32.xlu0 %v1800, 80
  %v2000 = vpop.permute.xlu0 %1999
  %2017 = vrot.lane.b32.xlu0 %v1802, 96
  %v2018 = vpop.permute.xlu0 %2017
  %2019 = vrot.lane.b32.xlu0 %v1804, 96
  %v2020 = vpop.permute.xlu0 %2019
  %2021 = vrot.lane.b32.xlu0 %v1806, 96
  %v2022 = vpop.permute.xlu0 %2021
  %2023 = vrot.lane.b32.xlu0 %v1808, 96
  %v2024 = vpop.permute.xlu0 %2023
  %2025 = vrot.lane.b32.xlu0 %v1810, 96
  %v2026 = vpop.permute.xlu0 %2025
  %2027 = vrot.lane.b32.xlu0 %v1812, 96
  %v2028 = vpop.permute.xlu0 %2027
  %2029 = vrot.lane.b32.xlu0 %v1814, 96
  %v2030 = vpop.permute.xlu0 %2029
  %2031 = vrot.lane.b32.xlu0 %v1816, 96
  %v2032 = vpop.permute.xlu0 %2031
  %2049 = vrot.lane.b32.xlu0 %v1818, 112
  %v2050 = vpop.permute.xlu0 %2049
  %2051 = vrot.lane.b32.xlu0 %v1820, 112
  %v2052 = vpop.permute.xlu0 %2051
  %2053 = vrot.lane.b32.xlu0 %v1822, 112
  %v2054 = vpop.permute.xlu0 %2053
  %2055 = vrot.lane.b32.xlu0 %v1824, 112
  %v2056 = vpop.permute.xlu0 %2055
  %2057 = vrot.lane.b32.xlu0 %v1826, 112
  %v2058 = vpop.permute.xlu0 %2057
  %2059 = vrot.lane.b32.xlu0 %v1828, 112
  %v2060 = vpop.permute.xlu0 %2059
  %2061 = vrot.lane.b32.xlu0 %v1830, 112
  %v2062 = vpop.permute.xlu0 %2061
  %2063 = vrot.lane.b32.xlu0 %v1832, 112
  %v2064 = vpop.permute.xlu0 %2063
  %v2073 = vsel %vm133, %v1707, %v1858
  %v2074 = vsel %vm133, %v1709, %v1860
  %v2075 = vsel %vm133, %v1711, %v1862
  %v2076 = vsel %vm133, %v1713, %v1864
  %v2077 = vsel %vm133, %v1715, %v1866
  %v2078 = vsel %vm133, %v1717, %v1868
  %v2079 = vsel %vm133, %v1719, %v1870
  %v2080 = vsel %vm133, %v1721, %v1872
  %v2081 = vsel %vm1283, %v2073, %v1890
  %v2082 = vsel %vm1283, %v2074, %v1892
  %v2083 = vsel %vm1283, %v2075, %v1894
  %v2084 = vsel %vm1283, %v2076, %v1896
  %v2085 = vsel %vm1283, %v2077, %v1898
  %v2086 = vsel %vm1283, %v2078, %v1900
  %v2087 = vsel %vm1283, %v2079, %v1902
  %v2088 = vsel %vm1283, %v2080, %v1904
  %vm2089 = vcmask 392192
  %v2090 = vsel %vm2089, %v2081, %v1922
  %v2091 = vsel %vm2089, %v2082, %v1924
  %v2092 = vsel %vm2089, %v2083, %v1926
  %v2093 = vsel %vm2089, %v2084, %v1928
  %v2094 = vsel %vm2089, %v2085, %v1930
  %v2095 = vsel %vm2089, %v2086, %v1932
  %v2096 = vsel %vm2089, %v2087, %v1934
  %v2097 = vsel %vm2089, %v2088, %v1936
  %vm2098 = vcmask 523264
  %v2099 = vsel %vm2098, %v2090, %v1954
  %v2100 = vsel %vm2098, %v2091, %v1956
  %v2101 = vsel %vm2098, %v2092, %v1958
  %v2102 = vsel %vm2098, %v2093, %v1960
  %v2103 = vsel %vm2098, %v2094, %v1962
  %v2104 = vsel %vm2098, %v2095, %v1964
  %v2105 = vsel %vm2098, %v2096, %v1966
  %v2106 = vsel %vm2098, %v2097, %v1968
  %vm2107 = vcmask 654336
  %v2108 = vsel %vm2107, %v2099, %v1986
  %v2109 = vsel %vm2107, %v2100, %v1988
  %v2110 = vsel %vm2107, %v2101, %v1990
  %v2111 = vsel %vm2107, %v2102, %v1992
  %v2112 = vsel %vm2107, %v2103, %v1994
  %v2113 = vsel %vm2107, %v2104, %v1996
  %v2114 = vsel %vm2107, %v2105, %v1998
  %v2115 = vsel %vm2107, %v2106, %v2000
  %vm2116 = vcmask 785408
  %v2117 = vsel %vm2116, %v2108, %v2018
  %v2118 = vsel %vm2116, %v2109, %v2020
  %v2119 = vsel %vm2116, %v2110, %v2022
  %v2120 = vsel %vm2116, %v2111, %v2024
  %v2121 = vsel %vm2116, %v2112, %v2026
  %v2122 = vsel %vm2116, %v2113, %v2028
  %v2123 = vsel %vm2116, %v2114, %v2030
  %v2124 = vsel %vm2116, %v2115, %v2032
  %vm2125 = vcmask 916480
  %v2126 = vsel %vm2125, %v2117, %v2050
  %v2127 = vsel %vm2125, %v2118, %v2052
  %v2128 = vsel %vm2125, %v2119, %v2054
  %v2129 = vsel %vm2125, %v2120, %v2056
  %v2130 = vsel %vm2125, %v2121, %v2058
  %v2131 = vsel %vm2125, %v2122, %v2060
  %v2132 = vsel %vm2125, %v2123, %v2062
  %v2133 = vsel %vm2125, %v2124, %v2064
  %v2150 = vcombine.low %v2126, %v1834
  %v2151 = vcombine.low %v2127, %v1836
  %v2152 = vcombine.low %v2128, %v1838
  %v2153 = vcombine.low %v2129, %v1840
  %v2154 = vcombine.low %v2130, %v1842
  %v2155 = vcombine.low %v2131, %v1844
  %v2156 = vcombine.low %v2132, %v1846
  %v2157 = vcombine.low %v2133, %v1848
  %v2158 = vcombine.low %v2150, %v2151
  %v2159 = vcombine.high %v2150, %v2151
  %v2160 = vcombine.low %v2152, %v2153
  %v2161 = vcombine.high %v2152, %v2153
  %v2162 = vcombine.low %v2154, %v2155
  %v2163 = vcombine.high %v2154, %v2155
  %v2164 = vcombine.low %v2156, %v2157
  %v2165 = vcombine.high %v2156, %v2157
  %v2174 = vpack.c.bf16 %v2160, %v2158
  %v2175 = vpack.c.bf16 %v2161, %v2159
  %v2176 = vpack.c.bf16 %v2164, %v2162
  %v2177 = vpack.c.bf16 %v2165, %v2163
  %v2178 = vld [vmem:[%s4] sm:$0xf]
  %v2179 = vld [vmem:[%s4 + $0x4] sm:$0xf]
  %v2180 = vld [vmem:[%s4 + $0x8] sm:$0xf]
  %v2181 = vld [vmem:[%s4 + $0xc] sm:$0xf]
  %v2182 = vld [vmem:[%s4 + $0x10] sm:$0xf]
  %v2183 = vld [vmem:[%s4 + $0x14] sm:$0xf]
  %v2184 = vld [vmem:[%s4 + $0x18] sm:$0xf]
  %v2185 = vld [vmem:[%s4 + $0x1c] sm:$0xf]
  %v2186 = vld [vmem:[%s4 + $0x20] sm:$0xf]
  %v2187 = vld [vmem:[%s4 + $0x24] sm:$0xf]
  %v2188 = vld [vmem:[%s4 + $0x28] sm:$0xf]
  %v2189 = vld [vmem:[%s4 + $0x2c] sm:$0xf]
  %v2190 = vld [vmem:[%s4 + $0x30] sm:$0xf]
  %v2191 = vld [vmem:[%s4 + $0x34] sm:$0xf]
  %v2192 = vld [vmem:[%s4 + $0x38] sm:$0xf]
  %v2193 = vld [vmem:[%s4 + $0x3c] sm:$0xf]
  %v2194 = vld [vmem:[%s4 + $0x40] sm:$0xf]
  %v2195 = vld [vmem:[%s4 + $0x44] sm:$0xf]
  %v2214 = vunpack.c.l.b16 %v2178
  %v2215 = vunpack.c.l.b16 %v2179
  %v2216 = vunpack.c.l.b16 %v2180
  %v2217 = vunpack.c.l.b16 %v2181
  %v2218 = vunpack.c.l.b16 %v2182
  %v2219 = vunpack.c.l.b16 %v2183
  %v2220 = vunpack.c.l.b16 %v2184
  %v2221 = vunpack.c.l.b16 %v2185
  %v2222 = vunpack.c.l.b16 %v2186
  %v2223 = vunpack.c.l.b16 %v2187
  %v2224 = vunpack.c.l.b16 %v2188
  %v2225 = vunpack.c.l.b16 %v2189
  %v2226 = vunpack.c.l.b16 %v2190
  %v2227 = vunpack.c.l.b16 %v2191
  %v2228 = vunpack.c.l.b16 %v2192
  %v2229 = vunpack.c.l.b16 %v2193
  %v2230 = vunpack.c.l.b16 %v2194
  %v2231 = vunpack.c.l.b16 %v2195
  %v2232 = vpack.c.b16 %v2215, %v2214
  %v2233 = vpack.c.b16 %v2217, %v2216
  %v2234 = vpack.c.b16 %v2219, %v2218
  %v2235 = vpack.c.b16 %v2221, %v2220
  %v2236 = vpack.c.b16 %v2223, %v2222
  %v2237 = vpack.c.b16 %v2225, %v2224
  %v2238 = vpack.c.b16 %v2227, %v2226
  %v2239 = vpack.c.b16 %v2229, %v2228
  %v2240 = vpack.c.b16 %v2231, %v2230
  %v2251 = vsel %vm133, %v2175, 0
  %v2254 = vsel %vm133, %v2177, 0
  %2256 = vmatprep.subr.bf16.mxu0 0
  %2257 = vmatpush1.bf16.msra.mxu0 %v2232
  %2258 = vmatprep.subr.bf16.mxu0 0
  %2259 = vmatpush1.bf16.msra.mxu0 %v2233
  %2260 = vmatprep.subr.bf16.mxu0 0
  %2261 = vmatpush1.bf16.msra.mxu0 %v2234
  %2262 = vmatprep.subr.bf16.mxu0 0
  %2263 = vmatpush1.bf16.msra.mxu0 %v2235
  %2264 = vmatprep.subr.bf16.mxu0 0
  %2265 = vmatpush1.bf16.msra.mxu0 %v2236
  %2266 = vmatprep.subr.bf16.mxu0 0
  %2267 = vmatpush1.bf16.msra.mxu0 %v2237
  %2268 = vmatprep.subr.bf16.mxu0 0
  %2269 = vmatpush1.bf16.msra.mxu0 %v2238
  %2270 = vmatprep.subr.bf16.mxu0 0
  %2271 = vmatpush1.bf16.msra.mxu0 %v2239
  %2272 = vmatprep.subr.bf16.mxu0 0
  %2273 = vmatpush1.bf16.msra.mxu0 %v2240
  %2274 = vmatprep.subr.bf16.mxu0 0
  %2275 = vmatpush1.bf16.msra.mxu0 0
  %2276 = vmatprep.subr.bf16.mxu0 0
  %2277 = vmatpush1.bf16.msra.mxu0 0
  %2278 = vmatprep.subr.bf16.mxu0 0
  %2279 = vmatpush1.bf16.msra.mxu0 0
  %2280 = vmatprep.subr.bf16.mxu0 0
  %2281 = vmatpush1.bf16.msra.mxu0 0
  %2282 = vmatprep.subr.bf16.mxu0 0
  %2283 = vmatpush1.bf16.msra.mxu0 0
  %2284 = vmatprep.subr.bf16.mxu0 0
  %2285 = vmatpush1.bf16.msra.mxu0 0
  %2286 = vmatprep.subr.bf16.mxu0 0
  %2287 = vmatpush1.bf16.msra.mxu0 0
  %2288 = vmatprep.mubr.bf16.mxu0 %v2251
  %2289 = vmatmul.mubr.bf16.gmra.mrb[0].mxu0 %v2174
  %v2290 = vpop.f32.mrb[0].mxu0
  %v2291 = vadd.f32 0.0, %v2290
  %v2292 = vpop.f32.mrb[0].mxu0
  %v2293 = vpop.f32.mrb[0].mxu0
  %v2294 = vadd.f32 0.0, %v2293
  %v2295 = vpop.f32.mrb[0].mxu0
  %2296 = vmatprep.mubr.bf16.mxu0 %v2254
  %2297 = vmatmul.mubr.bf16.gmra.mrb[0].mxu0 %v2176
  %v2298 = vpop.f32.mrb[0].mxu0
  %v2299 = vadd.f32 0.0, %v2298
  %v2300 = vpop.f32.mrb[0].mxu0
  %v2301 = vpop.f32.mrb[0].mxu0
  %v2302 = vadd.f32 0.0, %v2301
  %v2303 = vpop.f32.mrb[0].mxu0
  %2304 = vdwg.mxu0
  %v2305 = vsel %vm1283, %v2291, 0.0
  %v2306 = vsel %vm1283, %v2294, 0.0
  %v2307 = vadd.f32 %v2305, %v2306
  %v2308 = vrot.slane %v2307, 4
  %v2309 = vadd.f32 %v2307, %v2308
  %v2310 = vrot.slane %v2309, 2
  %v2311 = vadd.f32 %v2309, %v2310
  %v2312 = vrot.slane %v2311, 1
  %v2313 = vadd.f32 %v2311, %v2312
  %v2314 = vsel %vm1283, %v2299, 0.0
  %v2315 = vsel %vm1283, %v2302, 0.0
  %v2316 = vadd.f32 %v2314, %v2315
  %v2317 = vrot.slane %v2316, 4
  %v2318 = vadd.f32 %v2316, %v2317
  %v2319 = vrot.slane %v2318, 2
  %v2320 = vadd.f32 %v2318, %v2319
  %v2321 = vrot.slane %v2320, 1
  %v2322 = vadd.f32 %v2320, %v2321
  %v2323 = vmul.f32 %v2313, 0.0625
  %v2324 = vmul.f32 %v2322, 0.0625
  %v2325 = vsub.f32 %v2291, %v2323
  %v2326 = vsub.f32 %v2294, %v2323
  %v2327 = vsub.f32 %v2299, %v2324
  %v2328 = vsub.f32 %v2302, %v2324
  %v2329 = vmul.f32 %v2325, %v2325
  %v2330 = vmul.f32 %v2326, %v2326
  %v2331 = vmul.f32 %v2327, %v2327
  %v2332 = vmul.f32 %v2328, %v2328
  %v2333 = vsel %vm1283, %v2329, 0.0
  %v2334 = vsel %vm1283, %v2330, 0.0
  %v2335 = vadd.f32 %v2333, %v2334
  %v2336 = vrot.slane %v2335, 4
  %v2337 = vadd.f32 %v2335, %v2336
  %v2338 = vrot.slane %v2337, 2
  %v2339 = vadd.f32 %v2337, %v2338
  %v2340 = vrot.slane %v2339, 1
  %v2341 = vadd.f32 %v2339, %v2340
  %v2342 = vsel %vm1283, %v2331, 0.0
  %v2343 = vsel %vm1283, %v2332, 0.0
  %v2344 = vadd.f32 %v2342, %v2343
  %v2345 = vrot.slane %v2344, 4
  %v2346 = vadd.f32 %v2344, %v2345
  %v2347 = vrot.slane %v2346, 2
  %v2348 = vadd.f32 %v2346, %v2347
  %v2349 = vrot.slane %v2348, 1
  %v2350 = vadd.f32 %v2348, %v2349
  %v2351 = vmul.f32 %v2341, 0.0625
  %v2352 = vmul.f32 %v2350, 0.0625
  %v2353 = vld [vmem:[%s5] sm:$0x1]
  %v2354 = vadd.f32 %v2351, 1e-05
  %v2355 = vadd.f32 %v2352, 1e-05
  %v2356 = vrsqrt.pop %v2354
  %v2357 = vrsqrt.pop %v2355
  %v2358 = vmul.f32 %v2353, %v2356
  %v2359 = vmul.f32 %v2353, %v2357
  %v2360 = vld [vmem:[%s6] sm:$0x1]
  %v2361 = vmul.f32 %v2323, %v2358
  %v2362 = vmul.f32 %v2324, %v2359
  %v2363 = vsub.f32 %v2360, %v2361
  %v2364 = vsub.f32 %v2360, %v2362
  %v2367 = vlaneseq
  %v2368 = vshrl.u32 %v2367, 7
  %v2369 = vsub.s32 0, %v2368
  %v2370 = vrot.slane %v2358, %v2369
  %v2371 = vlaneseq
  %v2372 = vshrl.u32 %v2371, 7
  %v2373 = vsub.s32 0, %v2372
  %v2374 = vrot.slane %v2359, %v2373
  %v2377 = vmul.f32 %v2291, %v2370
  %v2378 = vmul.f32 %v2294, %v2370
  %v2379 = vmul.f32 %v2299, %v2374
  %v2380 = vmul.f32 %v2302, %v2374
  %v2383 = vlaneseq
  %v2384 = vshrl.u32 %v2383, 7
  %v2385 = vsub.s32 0, %v2384
  %v2386 = vrot.slane %v2363, %v2385
  %v2387 = vlaneseq
  %v2388 = vshrl.u32 %v2387, 7
  %v2389 = vsub.s32 0, %v2388
  %v2390 = vrot.slane %v2364, %v2389
  %v2393 = vadd.f32 %v2377, %v2386
  %v2394 = vadd.f32 %v2378, %v2386
  %v2395 = vadd.f32 %v2379, %v2390
  %v2396 = vadd.f32 %v2380, %v2390
  %vm2397 = vcmp.ge.f32.partialorder %v2393, 0.0
  %vm2398 = vcmp.ge.f32.partialorder %v2394, 0.0
  %vm2399 = vcmp.ge.f32.partialorder %v2395, 0.0
  %vm2400 = vcmp.ge.f32.partialorder %v2396, 0.0
  %v2401 = vmul.f32 %v2393, 0.01
  %v2402 = vmul.f32 %v2394, 0.01
  %v2403 = vmul.f32 %v2395, 0.01
  %v2404 = vmul.f32 %v2396, 0.01
  %v2405 = vsel %vm2397, %v2393, %v2401
  %v2406 = vsel %vm2398, %v2394, %v2402
  %v2407 = vsel %vm2399, %v2395, %v2403
  %v2408 = vsel %vm2400, %v2396, %v2404
  %v2413 = vcombine.high %v2405, %v2405
  %v2414 = vcombine.high %v2406, %v2406
  %v2415 = vcombine.high %v2407, %v2407
  %v2416 = vcombine.high %v2408, %v2408
  %s2421 = scalar_lea.vmem [#allocation4], 8
  %vm2422 = vcmask 257024
  %2423 = vst.msk [vmem:[%s2421 + $0x1] sm:$0xf] %vm2422, %v2405
  %2424 = vst.msk [vmem:[%s2421 + $0x9] sm:$0xf] %vm2422, %v2413
  %2425 = vst.msk [vmem:[%s2421 + $0x11] sm:$0xf] %vm2422, %v2406
  %2426 = vst.msk [vmem:[%s2421 + $0x19] sm:$0xf] %vm2422, %v2414
  %2427 = vst.msk [vmem:[%s2421 + $0x31] sm:$0xf] %vm2422, %v2407
  %2428 = vst.msk [vmem:[%s2421 + $0x39] sm:$0xf] %vm2422, %v2415
  %2429 = vst.msk [vmem:[%s2421 + $0x41] sm:$0xf] %vm2422, %v2408
  %2430 = vst.msk [vmem:[%s2421 + $0x49] sm:$0xf] %vm2422, %v2416
  %v2431 = vld [vmem:[#allocation4] ss:$2 sm:$0x3]
  %s2432 = scalar_lea.vmem [#allocation4], 16
  %v2433 = vld [vmem:[%s2432] ss:$2 sm:$0x3]
  %s2434 = scalar_lea.vmem [#allocation4], 48
  %v2435 = vld [vmem:[%s2434] ss:$2 sm:$0x3]
  %s2436 = scalar_lea.vmem [#allocation4], 64
  %v2437 = vld [vmem:[%s2436] ss:$2 sm:$0x3]
  %s2438 = scalar_lea.vmem [#allocation4], 1
  %v2439 = vld [vmem:[%s2438] ss:$2 sm:$0x3]
  %s2440 = scalar_lea.vmem [#allocation4], 17
  %v2441 = vld [vmem:[%s2440] ss:$2 sm:$0x3]
  %s2442 = scalar_lea.vmem [#allocation4], 49
  %v2443 = vld [vmem:[%s2442] ss:$2 sm:$0x3]
  %s2444 = scalar_lea.vmem [#allocation4], 65
  %v2445 = vld [vmem:[%s2444] ss:$2 sm:$0x3]
  %s2446 = scalar_lea.vmem [#allocation4], 2
  %v2447 = vld [vmem:[%s2446] ss:$2 sm:$0x3]
  %s2448 = scalar_lea.vmem [#allocation4], 18
  %v2449 = vld [vmem:[%s2448] ss:$2 sm:$0x3]
  %s2450 = scalar_lea.vmem [#allocation4], 50
  %v2451 = vld [vmem:[%s2450] ss:$2 sm:$0x3]
  %s2452 = scalar_lea.vmem [#allocation4], 66
  %v2453 = vld [vmem:[%s2452] ss:$2 sm:$0x3]
  %v2454 = vld [vmem:[%s2421] ss:$2 sm:$0x3]
  %s2455 = scalar_lea.vmem %s2421, 16 [#allocation4]
  %v2456 = vld [vmem:[%s2455] ss:$2 sm:$0x3]
  %s2457 = scalar_lea.vmem %s2421, 48 [#allocation4]
  %v2458 = vld [vmem:[%s2457] ss:$2 sm:$0x3]
  %s2459 = scalar_lea.vmem %s2421, 64 [#allocation4]
  %v2460 = vld [vmem:[%s2459] ss:$2 sm:$0x3]
  %s2461 = scalar_lea.vmem %s2421, 1 [#allocation4]
  %v2462 = vld [vmem:[%s2461] ss:$2 sm:$0x3]
  %s2463 = scalar_lea.vmem %s2421, 17 [#allocation4]
  %v2464 = vld [vmem:[%s2463] ss:$2 sm:$0x3]
  %s2465 = scalar_lea.vmem %s2421, 49 [#allocation4]
  %v2466 = vld [vmem:[%s2465] ss:$2 sm:$0x3]
  %s2467 = scalar_lea.vmem %s2421, 65 [#allocation4]
  %v2468 = vld [vmem:[%s2467] ss:$2 sm:$0x3]
  %s2469 = scalar_lea.vmem %s2421, 2 [#allocation4]
  %v2470 = vld [vmem:[%s2469] ss:$2 sm:$0x3]
  %s2471 = scalar_lea.vmem %s2421, 18 [#allocation4]
  %v2472 = vld [vmem:[%s2471] ss:$2 sm:$0x3]
  %s2473 = scalar_lea.vmem %s2421, 50 [#allocation4]
  %v2474 = vld [vmem:[%s2473] ss:$2 sm:$0x3]
  %s2475 = scalar_lea.vmem %s2421, 66 [#allocation4]
  %v2476 = vld [vmem:[%s2475] ss:$2 sm:$0x3]
  %s2477 = scalar_lea.vmem [#allocation4], 16
  %v2478 = vld [vmem:[%s2477] ss:$2 sm:$0x3]
  %s2479 = scalar_lea.vmem %s2477, 16 [#allocation4]
  %v2480 = vld [vmem:[%s2479] ss:$2 sm:$0x3]
  %s2481 = scalar_lea.vmem %s2477, 48 [#allocation4]
  %v2482 = vld [vmem:[%s2481] ss:$2 sm:$0x3]
  %s2483 = scalar_lea.vmem %s2477, 64 [#allocation4]
  %v2484 = vld [vmem:[%s2483] ss:$2 sm:$0x3]
  %s2485 = scalar_lea.vmem %s2477, 1 [#allocation4]
  %v2486 = vld [vmem:[%s2485] ss:$2 sm:$0x3]
  %s2487 = scalar_lea.vmem %s2477, 17 [#allocation4]
  %v2488 = vld [vmem:[%s2487] ss:$2 sm:$0x3]
  %s2489 = scalar_lea.vmem %s2477, 49 [#allocation4]
  %v2490 = vld [vmem:[%s2489] ss:$2 sm:$0x3]
  %s2491 = scalar_lea.vmem %s2477, 65 [#allocation4]
  %v2492 = vld [vmem:[%s2491] ss:$2 sm:$0x3]
  %s2493 = scalar_lea.vmem %s2477, 2 [#allocation4]
  %v2494 = vld [vmem:[%s2493] ss:$2 sm:$0x3]
  %s2495 = scalar_lea.vmem %s2477, 18 [#allocation4]
  %v2496 = vld [vmem:[%s2495] ss:$2 sm:$0x3]
  %s2497 = scalar_lea.vmem %s2477, 50 [#allocation4]
  %v2498 = vld [vmem:[%s2497] ss:$2 sm:$0x3]
  %s2499 = scalar_lea.vmem %s2477, 66 [#allocation4]
  %v2500 = vld [vmem:[%s2499] ss:$2 sm:$0x3]
  %2505 = vrot.lane.b32.xlu0 %v2439, 32
  %v2506 = vpop.permute.xlu0 %2505
  %2507 = vrot.lane.b32.xlu0 %v2441, 32
  %v2508 = vpop.permute.xlu0 %2507
  %2509 = vrot.lane.b32.xlu0 %v2443, 32
  %v2510 = vpop.permute.xlu0 %2509
  %2511 = vrot.lane.b32.xlu0 %v2445, 32
  %v2512 = vpop.permute.xlu0 %2511
  %2521 = vrot.lane.b32.xlu0 %v2447, 64
  %v2522 = vpop.permute.xlu0 %2521
  %2523 = vrot.lane.b32.xlu0 %v2449, 64
  %v2524 = vpop.permute.xlu0 %2523
  %2525 = vrot.lane.b32.xlu0 %v2451, 64
  %v2526 = vpop.permute.xlu0 %2525
  %2527 = vrot.lane.b32.xlu0 %v2453, 64
  %v2528 = vpop.permute.xlu0 %2527
  %2537 = vrot.lane.b32.xlu0 %v2454, 96
  %v2538 = vpop.permute.xlu0 %2537
  %2539 = vrot.lane.b32.xlu0 %v2456, 96
  %v2540 = vpop.permute.xlu0 %2539
  %2541 = vrot.lane.b32.xlu0 %v2458, 96
  %v2542 = vpop.permute.xlu0 %2541
  %2543 = vrot.lane.b32.xlu0 %v2460, 96
  %v2544 = vpop.permute.xlu0 %2543
  %2553 = vrot.lane.b32.xlu0 %v2470, 32
  %v2554 = vpop.permute.xlu0 %2553
  %2555 = vrot.lane.b32.xlu0 %v2472, 32
  %v2556 = vpop.permute.xlu0 %2555
  %2557 = vrot.lane.b32.xlu0 %v2474, 32
  %v2558 = vpop.permute.xlu0 %2557
  %2559 = vrot.lane.b32.xlu0 %v2476, 32
  %v2560 = vpop.permute.xlu0 %2559
  %2569 = vrot.lane.b32.xlu0 %v2478, 64
  %v2570 = vpop.permute.xlu0 %2569
  %2571 = vrot.lane.b32.xlu0 %v2480, 64
  %v2572 = vpop.permute.xlu0 %2571
  %2573 = vrot.lane.b32.xlu0 %v2482, 64
  %v2574 = vpop.permute.xlu0 %2573
  %2575 = vrot.lane.b32.xlu0 %v2484, 64
  %v2576 = vpop.permute.xlu0 %2575
  %2585 = vrot.lane.b32.xlu0 %v2486, 96
  %v2586 = vpop.permute.xlu0 %2585
  %2587 = vrot.lane.b32.xlu0 %v2488, 96
  %v2588 = vpop.permute.xlu0 %2587
  %2589 = vrot.lane.b32.xlu0 %v2490, 96
  %v2590 = vpop.permute.xlu0 %2589
  %2591 = vrot.lane.b32.xlu0 %v2492, 96
  %v2592 = vpop.permute.xlu0 %2591
  %v2597 = vsel %vm1283, %v2431, %v2506
  %v2598 = vsel %vm1283, %v2433, %v2508
  %v2599 = vsel %vm1283, %v2435, %v2510
  %v2600 = vsel %vm1283, %v2437, %v2512
  %v2601 = vsel %vm2098, %v2597, %v2522
  %v2602 = vsel %vm2098, %v2598, %v2524
  %v2603 = vsel %vm2098, %v2599, %v2526
  %v2604 = vsel %vm2098, %v2600, %v2528
  %v2605 = vsel %vm2116, %v2601, %v2538
  %v2606 = vsel %vm2116, %v2602, %v2540
  %v2607 = vsel %vm2116, %v2603, %v2542
  %v2608 = vsel %vm2116, %v2604, %v2544
  %v2609 = vsel %vm1283, %v2462, %v2554
  %v2610 = vsel %vm1283, %v2464, %v2556
  %v2611 = vsel %vm1283, %v2466, %v2558
  %v2612 = vsel %vm1283, %v2468, %v2560
  %v2613 = vsel %vm2098, %v2609, %v2570
  %v2614 = vsel %vm2098, %v2610, %v2572
  %v2615 = vsel %vm2098, %v2611, %v2574
  %v2616 = vsel %vm2098, %v2612, %v2576
  %v2617 = vsel %vm2116, %v2613, %v2586
  %v2618 = vsel %vm2116, %v2614, %v2588
  %v2619 = vsel %vm2116, %v2615, %v2590
  %v2620 = vsel %vm2116, %v2616, %v2592
  %v2633 = vcombine.low %v2605, %v2617
  %v2635 = vunpack.c.l.s4 1983009808
  %v2636 = vunpack.c.0.s8 %v2635
  %v2637 = vlaneseq
  %v2638 = vshrl.u32 %v2637, 7
  %v2639 = vsub.s32 %v2636, %v2638
  %v2640 = vrot.slane %v2633, %v2639
  %v2642 = vunpack.c.l.s4 1983009808
  %v2643 = vunpack.c.0.s8 %v2642
  %v2644 = vlaneseq
  %v2645 = vshrl.u32 %v2644, 7
  %v2646 = vsub.s32 %v2643, %v2645
  %v2647 = vrot.slane %v2494, %v2646
  %v2648 = vcombine.low %v2640, %v2647
  %v2649 = vcombine.low %v2606, %v2618
  %v2651 = vunpack.c.l.s4 1983009808
  %v2652 = vunpack.c.0.s8 %v2651
  %v2653 = vlaneseq
  %v2654 = vshrl.u32 %v2653, 7
  %v2655 = vsub.s32 %v2652, %v2654
  %v2656 = vrot.slane %v2649, %v2655
  %v2658 = vunpack.c.l.s4 1983009808
  %v2659 = vunpack.c.0.s8 %v2658
  %v2660 = vlaneseq
  %v2661 = vshrl.u32 %v2660, 7
  %v2662 = vsub.s32 %v2659, %v2661
  %v2663 = vrot.slane %v2496, %v2662
  %v2664 = vcombine.low %v2656, %v2663
  %v2665 = vcombine.low %v2607, %v2619
  %v2667 = vunpack.c.l.s4 1983009808
  %v2668 = vunpack.c.0.s8 %v2667
  %v2669 = vlaneseq
  %v2670 = vshrl.u32 %v2669, 7
  %v2671 = vsub.s32 %v2668, %v2670
  %v2672 = vrot.slane %v2665, %v2671
  %v2674 = vunpack.c.l.s4 1983009808
  %v2675 = vunpack.c.0.s8 %v2674
  %v2676 = vlaneseq
  %v2677 = vshrl.u32 %v2676, 7
  %v2678 = vsub.s32 %v2675, %v2677
  %v2679 = vrot.slane %v2498, %v2678
  %v2680 = vcombine.low %v2672, %v2679
  %v2681 = vcombine.low %v2608, %v2620
  %v2683 = vunpack.c.l.s4 1983009808
  %v2684 = vunpack.c.0.s8 %v2683
  %v2685 = vlaneseq
  %v2686 = vshrl.u32 %v2685, 7
  %v2687 = vsub.s32 %v2684, %v2686
  %v2688 = vrot.slane %v2681, %v2687
  %v2690 = vunpack.c.l.s4 1983009808
  %v2691 = vunpack.c.0.s8 %v2690
  %v2692 = vlaneseq
  %v2693 = vshrl.u32 %v2692, 7
  %v2694 = vsub.s32 %v2691, %v2693
  %v2695 = vrot.slane %v2500, %v2694
  %v2696 = vcombine.low %v2688, %v2695
  %v2697 = vcombine.low %v2648, %v2664
  %v2698 = vcombine.high %v2648, %v2664
  %v2699 = vcombine.low %v2680, %v2696
  %v2700 = vcombine.high %v2680, %v2696
  %v2702 = vunpack.c.l.s4 1983009808
  %v2703 = vunpack.c.0.s8 %v2702
  %v2704 = vlaneseq
  %v2705 = vshrl.u32 %v2704, 7
  %v2706 = vsub.s32 %v2703, %v2705
  %v2707 = vrot.slane %v2697, %v2706
  %v2709 = vunpack.c.l.s4 1983009808
  %v2710 = vunpack.c.0.s8 %v2709
  %v2711 = vlaneseq
  %v2712 = vshrl.u32 %v2711, 7
  %v2713 = vsub.s32 %v2710, %v2712
  %v2714 = vrot.slane %v2698, %v2713
  %v2716 = vunpack.c.l.s4 1983009808
  %v2717 = vunpack.c.0.s8 %v2716
  %v2718 = vlaneseq
  %v2719 = vshrl.u32 %v2718, 7
  %v2720 = vsub.s32 %v2717, %v2719
  %v2721 = vrot.slane %v2699, %v2720
  %v2723 = vunpack.c.l.s4 1983009808
  %v2724 = vunpack.c.0.s8 %v2723
  %v2725 = vlaneseq
  %v2726 = vshrl.u32 %v2725, 7
  %v2727 = vsub.s32 %v2724, %v2726
  %v2728 = vrot.slane %v2700, %v2727
  %v2729 = vcombine.low %v2707, %v2721
  %v2730 = vcombine.high %v2707, %v2721
  %v2731 = vcombine.low %v2714, %v2728
  %v2735 = vpack.c.bf16 %v2729, %v2729
  %v2736 = vpack.c.bf16 %v2730, %v2730
  %v2737 = vpack.c.bf16 %v2731, %v2731
  %v2738 = vld [vmem:[%s7] sm:$0xf]
  %v2739 = vld [vmem:[%s7 + $0x4] sm:$0xf]
  %v2740 = vld [vmem:[%s7 + $0x8] sm:$0xf]
  %v2741 = vld [vmem:[%s7 + $0xc] sm:$0xf]
  %v2742 = vld [vmem:[%s7 + $0x10] sm:$0xf]
  %v2743 = vld [vmem:[%s7 + $0x14] sm:$0xf]
  %v2744 = vld [vmem:[%s7 + $0x18] sm:$0xf]
  %v2745 = vld [vmem:[%s7 + $0x1c] sm:$0xf]
  %v2746 = vld [vmem:[%s7 + $0x20] sm:$0xf]
  %v2747 = vld [vmem:[%s7 + $0x24] sm:$0xf]
  %v2748 = vld [vmem:[%s7 + $0x28] sm:$0xf]
  %v2749 = vld [vmem:[%s7 + $0x2c] sm:$0xf]
  %v2750 = vld [vmem:[%s7 + $0x30] sm:$0xf]
  %v2751 = vld [vmem:[%s7 + $0x34] sm:$0xf]
  %v2752 = vld [vmem:[%s7 + $0x38] sm:$0xf]
  %v2753 = vld [vmem:[%s7 + $0x3c] sm:$0xf]
  %v2754 = vld [vmem:[%s7 + $0x40] sm:$0xf]
  %v2755 = vld [vmem:[%s7 + $0x44] sm:$0xf]
  %v2756 = vld [vmem:[%s7 + $0x48] sm:$0xf]
  %v2757 = vld [vmem:[%s7 + $0x4c] sm:$0xf]
  %v2758 = vld [vmem:[%s7 + $0x50] sm:$0xf]
  %v2759 = vld [vmem:[%s7 + $0x54] sm:$0xf]
  %v2760 = vld [vmem:[%s7 + $0x58] sm:$0xf]
  %v2761 = vld [vmem:[%s7 + $0x5c] sm:$0xf]
  %v2762 = vld [vmem:[%s7 + $0x60] sm:$0xf]
  %v2763 = vld [vmem:[%s7 + $0x64] sm:$0xf]
  %v2764 = vld [vmem:[%s7 + $0x68] sm:$0xf]
  %v2765 = vld [vmem:[%s7 + $0x6c] sm:$0xf]
  %v2766 = vld [vmem:[%s7 + $0x70] sm:$0xf]
  %v2767 = vld [vmem:[%s7 + $0x74] sm:$0xf]
  %v2768 = vld [vmem:[%s7 + $0x78] sm:$0xf]
  %v2769 = vld [vmem:[%s7 + $0x7c] sm:$0xf]
  %v2770 = vld [vmem:[%s7 + $0x80] sm:$0xf]
  %v2771 = vld [vmem:[%s7 + $0x84] sm:$0xf]
  %v2772 = vld [vmem:[%s7 + $0x88] sm:$0xf]
  %v2773 = vld [vmem:[%s7 + $0x8c] sm:$0xf]
  %v2810 = vunpack.c.l.b16 %v2738
  %v2811 = vunpack.c.l.b16 %v2739
  %v2812 = vunpack.c.l.b16 %v2740
  %v2813 = vunpack.c.l.b16 %v2741
  %v2814 = vunpack.c.l.b16 %v2742
  %v2815 = vunpack.c.l.b16 %v2743
  %v2816 = vunpack.c.l.b16 %v2744
  %v2817 = vunpack.c.l.b16 %v2745
  %v2818 = vunpack.c.l.b16 %v2746
  %v2819 = vunpack.c.l.b16 %v2747
  %v2820 = vunpack.c.l.b16 %v2748
  %v2821 = vunpack.c.l.b16 %v2749
  %v2822 = vunpack.c.l.b16 %v2750
  %v2823 = vunpack.c.l.b16 %v2751
  %v2824 = vunpack.c.l.b16 %v2752
  %v2825 = vunpack.c.l.b16 %v2753
  %v2826 = vunpack.c.l.b16 %v2754
  %v2827 = vunpack.c.l.b16 %v2755
  %v2828 = vunpack.c.l.b16 %v2756
  %v2829 = vunpack.c.l.b16 %v2757
  %v2830 = vunpack.c.l.b16 %v2758
  %v2831 = vunpack.c.l.b16 %v2759
  %v2832 = vunpack.c.l.b16 %v2760
  %v2833 = vunpack.c.l.b16 %v2761
  %v2834 = vunpack.c.l.b16 %v2762
  %v2835 = vunpack.c.l.b16 %v2763
  %v2836 = vunpack.c.l.b16 %v2764
  %v2837 = vunpack.c.l.b16 %v2765
  %v2838 = vunpack.c.l.b16 %v2766
  %v2839 = vunpack.c.l.b16 %v2767
  %v2840 = vunpack.c.l.b16 %v2768
  %v2841 = vunpack.c.l.b16 %v2769
  %v2842 = vunpack.c.l.b16 %v2770
  %v2843 = vunpack.c.l.b16 %v2771
  %v2844 = vunpack.c.l.b16 %v2772
  %v2845 = vunpack.c.l.b16 %v2773
  %v2846 = vpack.c.b16 %v2811, %v2810
  %v2847 = vpack.c.b16 %v2813, %v2812
  %v2848 = vpack.c.b16 %v2815, %v2814
  %v2849 = vpack.c.b16 %v2817, %v2816
  %v2850 = vpack.c.b16 %v2819, %v2818
  %v2851 = vpack.c.b16 %v2821, %v2820
  %v2852 = vpack.c.b16 %v2823, %v2822
  %v2853 = vpack.c.b16 %v2825, %v2824
  %v2854 = vpack.c.b16 %v2827, %v2826
  %v2855 = vpack.c.b16 %v2829, %v2828
  %v2856 = vpack.c.b16 %v2831, %v2830
  %v2857 = vpack.c.b16 %v2833, %v2832
  %v2858 = vpack.c.b16 %v2835, %v2834
  %v2859 = vpack.c.b16 %v2837, %v2836
  %v2860 = vpack.c.b16 %v2839, %v2838
  %v2861 = vpack.c.b16 %v2841, %v2840
  %v2862 = vpack.c.b16 %v2843, %v2842
  %v2863 = vpack.c.b16 %v2845, %v2844
  %v2883 = vsel %vm1283, %v2737, 0
  %2885 = vmatprep.subr.bf16.mxu0 0
  %2886 = vmatpush1.bf16.msra.mxu0 %v2846
  %2887 = vmatprep.subr.bf16.mxu0 0
  %2888 = vmatpush1.bf16.msra.mxu0 %v2847
  %2889 = vmatprep.subr.bf16.mxu0 0
  %2890 = vmatpush1.bf16.msra.mxu0 %v2848
  %2891 = vmatprep.subr.bf16.mxu0 0
  %2892 = vmatpush1.bf16.msra.mxu0 %v2849
  %2893 = vmatprep.subr.bf16.mxu0 0
  %2894 = vmatpush1.bf16.msra.mxu0 %v2850
  %2895 = vmatprep.subr.bf16.mxu0 0
  %2896 = vmatpush1.bf16.msra.mxu0 %v2851
  %2897 = vmatprep.subr.bf16.mxu0 0
  %2898 = vmatpush1.bf16.msra.mxu0 %v2852
  %2899 = vmatprep.subr.bf16.mxu0 0
  %2900 = vmatpush1.bf16.msra.mxu0 %v2853
  %2901 = vmatprep.subr.bf16.mxu0 0
  %2902 = vmatpush1.bf16.msra.mxu0 %v2854
  %2903 = vmatprep.subr.bf16.mxu0 0
  %2904 = vmatpush1.bf16.msra.mxu0 %v2855
  %2905 = vmatprep.subr.bf16.mxu0 0
  %2906 = vmatpush1.bf16.msra.mxu0 %v2856
  %2907 = vmatprep.subr.bf16.mxu0 0
  %2908 = vmatpush1.bf16.msra.mxu0 %v2857
  %2909 = vmatprep.subr.bf16.mxu0 0
  %2910 = vmatpush1.bf16.msra.mxu0 %v2858
  %2911 = vmatprep.subr.bf16.mxu0 0
  %2912 = vmatpush1.bf16.msra.mxu0 %v2859
  %2913 = vmatprep.subr.bf16.mxu0 0
  %2914 = vmatpush1.bf16.msra.mxu0 %v2860
  %2915 = vmatprep.subr.bf16.mxu0 0
  %2916 = vmatpush1.bf16.msra.mxu0 %v2861
  %2917 = vmatprep.mubr.bf16.mxu0 %v2736
  %2918 = vmatmul.mubr.bf16.gmra.mrb[0].mxu0 %v2735
  %v2919 = vpop.f32.mrb[0].mxu0
  %v2920 = vadd.f32 0.0, %v2919
  %v2921 = vpop.f32.mrb[0].mxu0
  %v2922 = vpop.f32.mrb[0].mxu0
  %v2923 = vpop.f32.mrb[0].mxu0
  %2924 = vdwg.mxu0
  %2925 = vmatprep.subr.bf16.mxu0 0
  %2926 = vmatpush1.bf16.msra.mxu0 %v2862
  %2927 = vmatprep.subr.bf16.mxu0 0
  %2928 = vmatpush1.bf16.msra.mxu0 %v2863
  %2929 = vmatprep.subr.bf16.mxu0 0
  %2930 = vmatpush1.bf16.msra.mxu0 0
  %2931 = vmatprep.subr.bf16.mxu0 0
  %2932 = vmatpush1.bf16.msra.mxu0 0
  %2933 = vmatprep.subr.bf16.mxu0 0
  %2934 = vmatpush1.bf16.msra.mxu0 0
  %2935 = vmatprep.subr.bf16.mxu0 0
  %2936 = vmatpush1.bf16.msra.mxu0 0
  %2937 = vmatprep.subr.bf16.mxu0 0
  %2938 = vmatpush1.bf16.msra.mxu0 0
  %2939 = vmatprep.subr.bf16.mxu0 0
  %2940 = vmatpush1.bf16.msra.mxu0 0
  %2941 = vmatprep.subr.bf16.mxu0 0
  %2942 = vmatpush1.bf16.msra.mxu0 0
  %2943 = vmatprep.subr.bf16.mxu0 0
  %2944 = vmatpush1.bf16.msra.mxu0 0
  %2945 = vmatprep.subr.bf16.mxu0 0
  %2946 = vmatpush1.bf16.msra.mxu0 0
  %2947 = vmatprep.subr.bf16.mxu0 0
  %2948 = vmatpush1.bf16.msra.mxu0 0
  %2949 = vmatprep.subr.bf16.mxu0 0
  %2950 = vmatpush1.bf16.msra.mxu0 0
  %2951 = vmatprep.subr.bf16.mxu0 0
  %2952 = vmatpush1.bf16.msra.mxu0 0
  %2953 = vmatprep.subr.bf16.mxu0 0
  %2954 = vmatpush1.bf16.msra.mxu0 0
  %2955 = vmatprep.subr.bf16.mxu0 0
  %2956 = vmatpush1.bf16.msra.mxu0 0
  %2957 = vmatprep.mubr.bf16.mxu0 0
  %2958 = vmatmul.mubr.bf16.gmra.mrb[0].mxu0 %v2883
  %v2959 = vpop.f32.mrb[0].mxu0
  %v2960 = vadd.f32 %v2920, %v2959
  %v2961 = vpop.f32.mrb[0].mxu0
  %v2962 = vpop.f32.mrb[0].mxu0
  %v2963 = vpop.f32.mrb[0].mxu0
  %2964 = vdwg.mxu0
  %v2966 = vcombine.high %v2960, %v2960
  %v2968 = vsel %vm216, %v2960, 0.0
  %v2969 = vrot.slane %v2968, 4
  %v2970 = vadd.f32 %v2968, %v2969
  %v2971 = vrot.slane %v2970, 2
  %v2972 = vadd.f32 %v2970, %v2971
  %v2973 = vrot.slane %v2972, 1
  %v2974 = vadd.f32 %v2972, %v2973
  %v2975 = vsel %vm216, %v2966, 0.0
  %v2976 = vrot.slane %v2975, 4
  %v2977 = vadd.f32 %v2975, %v2976
  %v2978 = vrot.slane %v2977, 2
  %v2979 = vadd.f32 %v2977, %v2978
  %v2980 = vrot.slane %v2979, 1
  %v2981 = vadd.f32 %v2979, %v2980
  %v2982 = vmul.f32 %v2974, 0.25
  %v2983 = vmul.f32 %v2981, 0.25
  %v2984 = vsub.f32 %v2960, %v2982
  %v2985 = vsub.f32 %v2966, %v2983
  %v2986 = vmul.f32 %v2984, %v2984
  %v2987 = vmul.f32 %v2985, %v2985
  %v2988 = vsel %vm216, %v2986, 0.0
  %v2989 = vrot.slane %v2988, 4
  %v2990 = vadd.f32 %v2988, %v2989
  %v2991 = vrot.slane %v2990, 2
  %v2992 = vadd.f32 %v2990, %v2991
  %v2993 = vrot.slane %v2992, 1
  %v2994 = vadd.f32 %v2992, %v2993
  %v2995 = vsel %vm216, %v2987, 0.0
  %v2996 = vrot.slane %v2995, 4
  %v2997 = vadd.f32 %v2995, %v2996
  %v2998 = vrot.slane %v2997, 2
  %v2999 = vadd.f32 %v2997, %v2998
  %v3000 = vrot.slane %v2999, 1
  %v3001 = vadd.f32 %v2999, %v3000
  %v3002 = vmul.f32 %v2994, 0.25
  %v3003 = vmul.f32 %v3001, 0.25
  %v3004 = vld [vmem:[%s8] sm:$0x1]
  %v3005 = vadd.f32 %v3002, 1e-05
  %v3006 = vadd.f32 %v3003, 1e-05
  %v3007 = vrsqrt.pop %v3005
  %v3008 = vrsqrt.pop %v3006
  %v3009 = vmul.f32 %v3004, %v3007
  %v3010 = vmul.f32 %v3004, %v3008
  %v3011 = vld [vmem:[%s9] sm:$0x1]
  %v3012 = vmul.f32 %v2982, %v3009
  %v3013 = vmul.f32 %v2983, %v3010
  %v3014 = vsub.f32 %v3011, %v3012
  %v3015 = vsub.f32 %v3011, %v3013
  %v3018 = vlaneseq
  %v3019 = vshrl.u32 %v3018, 7
  %v3020 = vsub.s32 0, %v3019
  %v3021 = vrot.slane %v3009, %v3020
  %v3022 = vlaneseq
  %v3023 = vshrl.u32 %v3022, 7
  %v3024 = vsub.s32 0, %v3023
  %v3025 = vrot.slane %v3010, %v3024
  %v3028 = vmul.f32 %v2960, %v3021
  %v3029 = vmul.f32 %v2966, %v3025
  %v3032 = vlaneseq
  %v3033 = vshrl.u32 %v3032, 7
  %v3034 = vsub.s32 0, %v3033
  %v3035 = vrot.slane %v3014, %v3034
  %v3036 = vlaneseq
  %v3037 = vshrl.u32 %v3036, 7
  %v3038 = vsub.s32 0, %v3037
  %v3039 = vrot.slane %v3015, %v3038
  %v3042 = vadd.f32 %v3028, %v3035
  %v3043 = vadd.f32 %v3029, %v3039
  %vm3044 = vcmp.ge.f32.partialorder %v3042, 0.0
  %vm3045 = vcmp.ge.f32.partialorder %v3043, 0.0
  %v3046 = vmul.f32 %v3042, 0.01
  %v3047 = vmul.f32 %v3043, 0.01
  %v3048 = vsel %vm3044, %v3042, %v3046
  %v3049 = vsel %vm3045, %v3043, %v3047
  %v3053 = vunpack.c.l.s4 1983009808
  %v3054 = vunpack.c.0.s8 %v3053
  %v3055 = vlaneseq
  %v3056 = vshrl.u32 %v3055, 7
  %v3057 = vsub.s32 %v3054, %v3056
  %v3058 = vrot.slane %v3048, %v3057
  %v3059 = vcombine.high %v3058, %v3058
  %v3061 = vunpack.c.l.s4 1983009808
  %v3062 = vunpack.c.0.s8 %v3061
  %v3063 = vlaneseq
  %v3064 = vshrl.u32 %v3063, 7
  %v3065 = vsub.s32 %v3062, %v3064
  %v3066 = vrot.slane %v3049, %v3065
  %v3067 = vcombine.high %v3066, %v3066
  %s3072 = scalar_lea.vmem [#allocation5], 4
  %vm3073 = vcmask 517120
  %3074 = vst.msk [vmem:[%s3072 + $0x1] sm:$0x3] %vm3073, %v3058
  %3075 = vst.msk [vmem:[%s3072 + $0x5] sm:$0x3] %vm3073, %v3059
  %3076 = vst.msk [vmem:[%s3072 + $0x11] sm:$0x3] %vm3073, %v3066
  %3077 = vst.msk [vmem:[%s3072 + $0x15] sm:$0x3] %vm3073, %v3067
  %v3078 = vld [vmem:[#allocation5] sm:$0x1]
  %v3079 = vld [vmem:[#allocation5 + $0x10] sm:$0x1]
  %v3080 = vld [vmem:[#allocation5 + $0x1] sm:$0x1]
  %v3081 = vld [vmem:[#allocation5 + $0x11] sm:$0x1]
  %v3082 = vld [vmem:[#allocation5 + $0x2] sm:$0x1]
  %v3083 = vld [vmem:[#allocation5 + $0x12] sm:$0x1]
  %v3084 = vld [vmem:[%s3072] sm:$0x1]
  %v3085 = vld [vmem:[%s3072 + $0x10] sm:$0x1]
  %v3086 = vld [vmem:[%s3072 + $0x1] sm:$0x1]
  %v3087 = vld [vmem:[%s3072 + $0x11] sm:$0x1]
  %v3088 = vld [vmem:[%s3072 + $0x2] sm:$0x1]
  %v3089 = vld [vmem:[%s3072 + $0x12] sm:$0x1]
  %s3090 = scalar_lea.vmem [#allocation5], 8
  %v3091 = vld [vmem:[%s3090] sm:$0x1]
  %v3092 = vld [vmem:[%s3090 + $0x10] sm:$0x1]
  %v3093 = vld [vmem:[%s3090 + $0x1] sm:$0x1]
  %v3094 = vld [vmem:[%s3090 + $0x11] sm:$0x1]
  %v3095 = vld [vmem:[%s3090 + $0x2] sm:$0x1]
  %v3096 = vld [vmem:[%s3090 + $0x12] sm:$0x1]
  %3099 = vrot.lane.b32.xlu0 %v3080, 64
  %v3100 = vpop.permute.xlu0 %3099
  %3101 = vrot.lane.b32.xlu0 %v3081, 64
  %v3102 = vpop.permute.xlu0 %3101
  %3107 = vrot.lane.b32.xlu0 %v3084, 64
  %v3108 = vpop.permute.xlu0 %3107
  %3109 = vrot.lane.b32.xlu0 %v3085, 64
  %v3110 = vpop.permute.xlu0 %3109
  %3115 = vrot.lane.b32.xlu0 %v3088, 64
  %v3116 = vpop.permute.xlu0 %3115
  %3117 = vrot.lane.b32.xlu0 %v3089, 64
  %v3118 = vpop.permute.xlu0 %3117
  %3123 = vrot.lane.b32.xlu0 %v3093, 64
  %v3124 = vpop.permute.xlu0 %3123
  %3125 = vrot.lane.b32.xlu0 %v3094, 64
  %v3126 = vpop.permute.xlu0 %3125
  %v3129 = vsel %vm2098, %v3078, %v3100
  %v3130 = vsel %vm2098, %v3079, %v3102
  %v3131 = vsel %vm2098, %v3082, %v3108
  %v3132 = vsel %vm2098, %v3083, %v3110
  %v3133 = vsel %vm2098, %v3086, %v3116
  %v3134 = vsel %vm2098, %v3087, %v3118
  %v3135 = vsel %vm2098, %v3091, %v3124
  %v3136 = vsel %vm2098, %v3092, %v3126
  %v3137 = vpack.c.bf16 %v3129, %v3129
  %v3138 = vpack.c.bf16 %v3131, %v3131
  %v3139 = vpack.c.bf16 %v3133, %v3133
  %v3140 = vpack.c.bf16 %v3135, %v3135
  %v3141 = vpack.c.bf16 %v3095, %v3095
  %v3142 = vpack.c.bf16 %v3130, %v3130
  %v3143 = vpack.c.bf16 %v3132, %v3132
  %v3144 = vpack.c.bf16 %v3134, %v3134
  %v3145 = vpack.c.bf16 %v3136, %v3136
  %v3146 = vpack.c.bf16 %v3096, %v3096
  %v3147 = vld [vmem:[%s10] sm:$0xf]
  %v3148 = vld [vmem:[%s10 + $0x4] sm:$0xf]
  %v3149 = vld [vmem:[%s10 + $0x8] sm:$0xf]
  %v3150 = vld [vmem:[%s10 + $0xc] sm:$0xf]
  %v3151 = vld [vmem:[%s10 + $0x10] sm:$0xf]
  %v3152 = vld [vmem:[%s10 + $0x14] sm:$0xf]
  %v3153 = vld [vmem:[%s10 + $0x18] sm:$0xf]
  %v3154 = vld [vmem:[%s10 + $0x1c] sm:$0xf]
  %v3155 = vld [vmem:[%s10 + $0x20] sm:$0xf]
  %v3156 = vld [vmem:[%s10 + $0x24] sm:$0xf]
  %v3157 = vld [vmem:[%s10 + $0x28] sm:$0xf]
  %v3158 = vld [vmem:[%s10 + $0x2c] sm:$0xf]
  %v3159 = vld [vmem:[%s10 + $0x30] sm:$0xf]
  %v3160 = vld [vmem:[%s10 + $0x34] sm:$0xf]
  %v3161 = vld [vmem:[%s10 + $0x38] sm:$0xf]
  %v3162 = vld [vmem:[%s10 + $0x3c] sm:$0xf]
  %v3163 = vld [vmem:[%s10 + $0x40] sm:$0xf]
  %v3164 = vld [vmem:[%s10 + $0x44] sm:$0xf]
  %v3165 = vld [vmem:[%s10 + $0x48] sm:$0xf]
  %v3166 = vld [vmem:[%s10 + $0x4c] sm:$0xf]
  %v3167 = vld [vmem:[%s10 + $0x50] sm:$0xf]
  %v3168 = vld [vmem:[%s10 + $0x54] sm:$0xf]
  %v3169 = vld [vmem:[%s10 + $0x58] sm:$0xf]
  %v3170 = vld [vmem:[%s10 + $0x5c] sm:$0xf]
  %v3171 = vld [vmem:[%s10 + $0x60] sm:$0xf]
  %v3172 = vld [vmem:[%s10 + $0x64] sm:$0xf]
  %v3173 = vld [vmem:[%s10 + $0x68] sm:$0xf]
  %v3174 = vld [vmem:[%s10 + $0x6c] sm:$0xf]
  %v3175 = vld [vmem:[%s10 + $0x70] sm:$0xf]
  %v3176 = vld [vmem:[%s10 + $0x74] sm:$0xf]
  %v3177 = vld [vmem:[%s10 + $0x78] sm:$0xf]
  %v3178 = vld [vmem:[%s10 + $0x7c] sm:$0xf]
  %v3179 = vld [vmem:[%s10 + $0x80] sm:$0xf]
  %v3180 = vld [vmem:[%s10 + $0x84] sm:$0xf]
  %v3181 = vld [vmem:[%s10 + $0x88] sm:$0xf]
  %v3182 = vld [vmem:[%s10 + $0x8c] sm:$0xf]
  %v3183 = vld [vmem:[%s10 + $0x90] sm:$0xf]
  %v3184 = vld [vmem:[%s10 + $0x94] sm:$0xf]
  %v3185 = vld [vmem:[%s10 + $0x98] sm:$0xf]
  %v3186 = vld [vmem:[%s10 + $0x9c] sm:$0xf]
  %v3187 = vld [vmem:[%s10 + $0xa0] sm:$0xf]
  %v3188 = vld [vmem:[%s10 + $0xa4] sm:$0xf]
  %v3189 = vld [vmem:[%s10 + $0xa8] sm:$0xf]
  %v3190 = vld [vmem:[%s10 + $0xac] sm:$0xf]
  %v3191 = vld [vmem:[%s10 + $0xb0] sm:$0xf]
  %v3192 = vld [vmem:[%s10 + $0xb4] sm:$0xf]
  %v3193 = vld [vmem:[%s10 + $0xb8] sm:$0xf]
  %v3194 = vld [vmem:[%s10 + $0xbc] sm:$0xf]
  %v3195 = vld [vmem:[%s10 + $0xc0] sm:$0xf]
  %v3196 = vld [vmem:[%s10 + $0xc4] sm:$0xf]
  %v3197 = vld [vmem:[%s10 + $0xc8] sm:$0xf]
  %v3198 = vld [vmem:[%s10 + $0xcc] sm:$0xf]
  %v3199 = vld [vmem:[%s10 + $0xd0] sm:$0xf]
  %v3200 = vld [vmem:[%s10 + $0xd4] sm:$0xf]
  %v3201 = vld [vmem:[%s10 + $0xd8] sm:$0xf]
  %v3202 = vld [vmem:[%s10 + $0xdc] sm:$0xf]
  %v3203 = vld [vmem:[%s10 + $0xe0] sm:$0xf]
  %v3204 = vld [vmem:[%s10 + $0xe4] sm:$0xf]
  %v3205 = vld [vmem:[%s10 + $0xe8] sm:$0xf]
  %v3206 = vld [vmem:[%s10 + $0xec] sm:$0xf]
  %v3207 = vld [vmem:[%s10 + $0xf0] sm:$0xf]
  %v3208 = vld [vmem:[%s10 + $0xf4] sm:$0xf]
  %v3209 = vld [vmem:[%s10 + $0xf8] sm:$0xf]
  %v3210 = vld [vmem:[%s10 + $0xfc] sm:$0xf]
  %v3211 = vld [vmem:[%s10 + $0x100] sm:$0xf]
  %v3212 = vld [vmem:[%s10 + $0x104] sm:$0xf]
  %v3213 = vld [vmem:[%s10 + $0x108] sm:$0xf]
  %v3214 = vld [vmem:[%s10 + $0x10c] sm:$0xf]
  %v3215 = vld [vmem:[%s10 + $0x110] sm:$0xf]
  %v3216 = vld [vmem:[%s10 + $0x114] sm:$0xf]
  %v3217 = vld [vmem:[%s10 + $0x118] sm:$0xf]
  %v3218 = vld [vmem:[%s10 + $0x11c] sm:$0xf]
  %v3229 = vunpack.c.l.b16 %v3137
  %v3230 = vunpack.c.l.b16 %v3138
  %v3231 = vunpack.c.l.b16 %v3139
  %v3232 = vunpack.c.l.b16 %v3140
  %v3233 = vunpack.c.l.b16 %v3141
  %v3234 = vunpack.c.l.b16 %v3142
  %v3235 = vunpack.c.l.b16 %v3143
  %v3236 = vunpack.c.l.b16 %v3144
  %v3237 = vunpack.c.l.b16 %v3145
  %v3238 = vunpack.c.l.b16 %v3146
  %v3239 = vrot.slane %v3234, 7
  %vm3240 = vcmask 1041409
  %v3241 = vsel %vm3240, %v3239, %v3229
  %v3242 = vrot.slane %v3235, 7
  %v3243 = vsel %vm3240, %v3242, %v3230
  %v3244 = vrot.slane %v3236, 7
  %v3245 = vsel %vm3240, %v3244, %v3231
  %v3246 = vrot.slane %v3237, 7
  %v3247 = vsel %vm3240, %v3246, %v3232
  %v3248 = vrot.slane %v3238, 7
  %v3249 = vsel %vm3240, %v3248, %v3233
  %v3250 = vpack.c.b16 %v3241, %v3241
  %v3251 = vpack.c.b16 %v3243, %v3243
  %v3252 = vpack.c.b16 %v3245, %v3245
  %v3253 = vpack.c.b16 %v3247, %v3247
  %v3254 = vpack.c.b16 %v3249, %v3249
  %v3331 = vunpack.c.l.b16 %v3147
  %v3332 = vunpack.c.l.b16 %v3148
  %v3333 = vunpack.c.l.b16 %v3149
  %v3334 = vunpack.c.l.b16 %v3150
  %v3335 = vunpack.c.l.b16 %v3151
  %v3336 = vunpack.c.l.b16 %v3152
  %v3337 = vunpack.c.l.b16 %v3153
  %v3338 = vunpack.c.l.b16 %v3154
  %v3339 = vunpack.c.l.b16 %v3155
  %v3340 = vunpack.c.l.b16 %v3156
  %v3341 = vunpack.c.l.b16 %v3157
  %v3342 = vunpack.c.l.b16 %v3158
  %v3343 = vunpack.c.l.b16 %v3159
  %v3344 = vunpack.c.l.b16 %v3160
  %v3345 = vunpack.c.l.b16 %v3161
  %v3346 = vunpack.c.l.b16 %v3162
  %v3347 = vunpack.c.l.b16 %v3163
  %v3348 = vunpack.c.l.b16 %v3164
  %v3349 = vunpack.c.l.b16 %v3165
  %v3350 = vunpack.c.l.b16 %v3166
  %v3351 = vunpack.c.l.b16 %v3167
  %v3352 = vunpack.c.l.b16 %v3168
  %v3353 = vunpack.c.l.b16 %v3169
  %v3354 = vunpack.c.l.b16 %v3170
  %v3355 = vunpack.c.l.b16 %v3171
  %v3356 = vunpack.c.l.b16 %v3172
  %v3357 = vunpack.c.l.b16 %v3173
  %v3358 = vunpack.c.l.b16 %v3174
  %v3359 = vunpack.c.l.b16 %v3175
  %v3360 = vunpack.c.l.b16 %v3176
  %v3361 = vunpack.c.l.b16 %v3177
  %v3362 = vunpack.c.l.b16 %v3178
  %v3363 = vunpack.c.l.b16 %v3179
  %v3364 = vunpack.c.l.b16 %v3180
  %v3365 = vunpack.c.l.b16 %v3181
  %v3366 = vunpack.c.l.b16 %v3182
  %v3367 = vunpack.c.l.b16 %v3183
  %v3368 = vunpack.c.l.b16 %v3184
  %v3369 = vunpack.c.l.b16 %v3185
  %v3370 = vunpack.c.l.b16 %v3186
  %v3371 = vunpack.c.l.b16 %v3187
  %v3372 = vunpack.c.l.b16 %v3188
  %v3373 = vunpack.c.l.b16 %v3189
  %v3374 = vunpack.c.l.b16 %v3190
  %v3375 = vunpack.c.l.b16 %v3191
  %v3376 = vunpack.c.l.b16 %v3192
  %v3377 = vunpack.c.l.b16 %v3193
  %v3378 = vunpack.c.l.b16 %v3194
  %v3379 = vunpack.c.l.b16 %v3195
  %v3380 = vunpack.c.l.b16 %v3196
  %v3381 = vunpack.c.l.b16 %v3197
  %v3382 = vunpack.c.l.b16 %v3198
  %v3383 = vunpack.c.l.b16 %v3199
  %v3384 = vunpack.c.l.b16 %v3200
  %v3385 = vunpack.c.l.b16 %v3201
  %v3386 = vunpack.c.l.b16 %v3202
  %v3387 = vunpack.c.l.b16 %v3203
  %v3388 = vunpack.c.l.b16 %v3204
  %v3389 = vunpack.c.l.b16 %v3205
  %v3390 = vunpack.c.l.b16 %v3206
  %v3391 = vunpack.c.l.b16 %v3207
  %v3392 = vunpack.c.l.b16 %v3208
  %v3393 = vunpack.c.l.b16 %v3209
  %v3394 = vunpack.c.l.b16 %v3210
  %v3395 = vunpack.c.l.b16 %v3211
  %v3396 = vunpack.c.l.b16 %v3212
  %v3397 = vunpack.c.l.b16 %v3213
  %v3398 = vunpack.c.l.b16 %v3214
  %v3399 = vunpack.c.l.b16 %v3215
  %v3400 = vunpack.c.l.b16 %v3216
  %v3401 = vunpack.c.l.b16 %v3217
  %v3402 = vunpack.c.l.b16 %v3218
  %v3403 = vpack.c.b16 %v3332, %v3331
  %v3404 = vpack.c.b16 %v3334, %v3333
  %v3405 = vpack.c.b16 %v3336, %v3335
  %v3406 = vpack.c.b16 %v3338, %v3337
  %v3407 = vpack.c.b16 %v3340, %v3339
  %v3408 = vpack.c.b16 %v3342, %v3341
  %v3409 = vpack.c.b16 %v3344, %v3343
  %v3410 = vpack.c.b16 %v3346, %v3345
  %v3411 = vpack.c.b16 %v3348, %v3347
  %v3412 = vpack.c.b16 %v3350, %v3349
  %v3413 = vpack.c.b16 %v3352, %v3351
  %v3414 = vpack.c.b16 %v3354, %v3353
  %v3415 = vpack.c.b16 %v3356, %v3355
  %v3416 = vpack.c.b16 %v3358, %v3357
  %v3417 = vpack.c.b16 %v3360, %v3359
  %v3418 = vpack.c.b16 %v3362, %v3361
  %v3419 = vpack.c.b16 %v3364, %v3363
  %v3420 = vpack.c.b16 %v3366, %v3365
  %v3421 = vpack.c.b16 %v3368, %v3367
  %v3422 = vpack.c.b16 %v3370, %v3369
  %v3423 = vpack.c.b16 %v3372, %v3371
  %v3424 = vpack.c.b16 %v3374, %v3373
  %v3425 = vpack.c.b16 %v3376, %v3375
  %v3426 = vpack.c.b16 %v3378, %v3377
  %v3427 = vpack.c.b16 %v3380, %v3379
  %v3428 = vpack.c.b16 %v3382, %v3381
  %v3429 = vpack.c.b16 %v3384, %v3383
  %v3430 = vpack.c.b16 %v3386, %v3385
  %v3431 = vpack.c.b16 %v3388, %v3387
  %v3432 = vpack.c.b16 %v3390, %v3389
  %v3433 = vpack.c.b16 %v3392, %v3391
  %v3434 = vpack.c.b16 %v3394, %v3393
  %v3435 = vpack.c.b16 %v3396, %v3395
  %v3436 = vpack.c.b16 %v3398, %v3397
  %v3437 = vpack.c.b16 %v3400, %v3399
  %v3438 = vpack.c.b16 %v3402, %v3401
  %v3476 = vsel %vm2098, %v3254, 0
  %3478 = vmatprep.subr.bf16.mxu0 0
  %3479 = vmatpush1.bf16.msra.mxu0 %v3403
  %3480 = vmatprep.subr.bf16.mxu0 0
  %3481 = vmatpush1.bf16.msra.mxu0 %v3404
  %3482 = vmatprep.subr.bf16.mxu0 0
  %3483 = vmatpush1.bf16.msra.mxu0 %v3405
  %3484 = vmatprep.subr.bf16.mxu0 0
  %3485 = vmatpush1.bf16.msra.mxu0 %v3406
  %3486 = vmatprep.subr.bf16.mxu0 0
  %3487 = vmatpush1.bf16.msra.mxu0 %v3407
  %3488 = vmatprep.subr.bf16.mxu0 0
  %3489 = vmatpush1.bf16.msra.mxu0 %v3408
  %3490 = vmatprep.subr.bf16.mxu0 0
  %3491 = vmatpush1.bf16.msra.mxu0 %v3409
  %3492 = vmatprep.subr.bf16.mxu0 0
  %3493 = vmatpush1.bf16.msra.mxu0 %v3410
  %3494 = vmatprep.subr.bf16.mxu0 0
  %3495 = vmatpush1.bf16.msra.mxu0 %v3411
  %3496 = vmatprep.subr.bf16.mxu0 0
  %3497 = vmatpush1.bf16.msra.mxu0 %v3412
  %3498 = vmatprep.subr.bf16.mxu0 0
  %3499 = vmatpush1.bf16.msra.mxu0 %v3413
  %3500 = vmatprep.subr.bf16.mxu0 0
  %3501 = vmatpush1.bf16.msra.mxu0 %v3414
  %3502 = vmatprep.subr.bf16.mxu0 0
  %3503 = vmatpush1.bf16.msra.mxu0 %v3415
  %3504 = vmatprep.subr.bf16.mxu0 0
  %3505 = vmatpush1.bf16.msra.mxu0 %v3416
  %3506 = vmatprep.subr.bf16.mxu0 0
  %3507 = vmatpush1.bf16.msra.mxu0 %v3417
  %3508 = vmatprep.subr.bf16.mxu0 0
  %3509 = vmatpush1.bf16.msra.mxu0 %v3418
  %3510 = vmatprep.mubr.bf16.mxu0 %v3251
  %3511 = vmatmul.mubr.bf16.gmra.mrb[0].mxu0 %v3250
  %v3512 = vpop.f32.mrb[0].mxu0
  %v3513 = vadd.f32 0.0, %v3512
  %v3514 = vpop.f32.mrb[0].mxu0
  %v3515 = vpop.f32.mrb[0].mxu0
  %v3516 = vpop.f32.mrb[0].mxu0
  %3517 = vdwg.mxu0
  %3518 = vmatprep.subr.bf16.mxu0 0
  %3519 = vmatpush1.bf16.msra.mxu0 %v3419
  %3520 = vmatprep.subr.bf16.mxu0 0
  %3521 = vmatpush1.bf16.msra.mxu0 %v3420
  %3522 = vmatprep.subr.bf16.mxu0 0
  %3523 = vmatpush1.bf16.msra.mxu0 %v3421
  %3524 = vmatprep.subr.bf16.mxu0 0
  %3525 = vmatpush1.bf16.msra.mxu0 %v3422
  %3526 = vmatprep.subr.bf16.mxu0 0
  %3527 = vmatpush1.bf16.msra.mxu0 %v3423
  %3528 = vmatprep.subr.bf16.mxu0 0
  %3529 = vmatpush1.bf16.msra.mxu0 %v3424
  %3530 = vmatprep.subr.bf16.mxu0 0
  %3531 = vmatpush1.bf16.msra.mxu0 %v3425
  %3532 = vmatprep.subr.bf16.mxu0 0
  %3533 = vmatpush1.bf16.msra.mxu0 %v3426
  %3534 = vmatprep.subr.bf16.mxu0 0
  %3535 = vmatpush1.bf16.msra.mxu0 %v3427
  %3536 = vmatprep.subr.bf16.mxu0 0
  %3537 = vmatpush1.bf16.msra.mxu0 %v3428
  %3538 = vmatprep.subr.bf16.mxu0 0
  %3539 = vmatpush1.bf16.msra.mxu0 %v3429
  %3540 = vmatprep.subr.bf16.mxu0 0
  %3541 = vmatpush1.bf16.msra.mxu0 %v3430
  %3542 = vmatprep.subr.bf16.mxu0 0
  %3543 = vmatpush1.bf16.msra.mxu0 %v3431
  %3544 = vmatprep.subr.bf16.mxu0 0
  %3545 = vmatpush1.bf16.msra.mxu0 %v3432
  %3546 = vmatprep.subr.bf16.mxu0 0
  %3547 = vmatpush1.bf16.msra.mxu0 %v3433
  %3548 = vmatprep.subr.bf16.mxu0 0
  %3549 = vmatpush1.bf16.msra.mxu0 %v3434
  %3550 = vmatprep.mubr.bf16.mxu0 %v3253
  %3551 = vmatmul.mubr.bf16.gmra.mrb[0].mxu0 %v3252
  %v3552 = vpop.f32.mrb[0].mxu0
  %v3553 = vadd.f32 %v3513, %v3552
  %v3554 = vpop.f32.mrb[0].mxu0
  %v3555 = vpop.f32.mrb[0].mxu0
  %v3556 = vpop.f32.mrb[0].mxu0
  %3557 = vdwg.mxu0
  %3558 = vmatprep.subr.bf16.mxu0 0
  %3559 = vmatpush1.bf16.msra.mxu0 %v3435
  %3560 = vmatprep.subr.bf16.mxu0 0
  %3561 = vmatpush1.bf16.msra.mxu0 %v3436
  %3562 = vmatprep.subr.bf16.mxu0 0
  %3563 = vmatpush1.bf16.msra.mxu0 %v3437
  %3564 = vmatprep.subr.bf16.mxu0 0
  %3565 = vmatpush1.bf16.msra.mxu0 %v3438
  %3566 = vmatprep.subr.bf16.mxu0 0
  %3567 = vmatpush1.bf16.msra.mxu0 0
  %3568 = vmatprep.subr.bf16.mxu0 0
  %3569 = vmatpush1.bf16.msra.mxu0 0
  %3570 = vmatprep.subr.bf16.mxu0 0
  %3571 = vmatpush1.bf16.msra.mxu0 0
  %3572 = vmatprep.subr.bf16.mxu0 0
  %3573 = vmatpush1.bf16.msra.mxu0 0
  %3574 = vmatprep.subr.bf16.mxu0 0
  %3575 = vmatpush1.bf16.msra.mxu0 0
  %3576 = vmatprep.subr.bf16.mxu0 0
  %3577 = vmatpush1.bf16.msra.mxu0 0
  %3578 = vmatprep.subr.bf16.mxu0 0
  %3579 = vmatpush1.bf16.msra.mxu0 0
  %3580 = vmatprep.subr.bf16.mxu0 0
  %3581 = vmatpush1.bf16.msra.mxu0 0
  %3582 = vmatprep.subr.bf16.mxu0 0
  %3583 = vmatpush1.bf16.msra.mxu0 0
  %3584 = vmatprep.subr.bf16.mxu0 0
  %3585 = vmatpush1.bf16.msra.mxu0 0
  %3586 = vmatprep.subr.bf16.mxu0 0
  %3587 = vmatpush1.bf16.msra.mxu0 0
  %3588 = vmatprep.subr.bf16.mxu0 0
  %3589 = vmatpush1.bf16.msra.mxu0 0
  %3590 = vmatprep.mubr.bf16.mxu0 0
  %3591 = vmatmul.mubr.bf16.gmra.mrb[0].mxu0 %v3476
  %v3592 = vpop.f32.mrb[0].mxu0
  %v3593 = vadd.f32 %v3553, %v3592
  %v3594 = vpop.f32.mrb[0].mxu0
  %v3595 = vpop.f32.mrb[0].mxu0
  %v3596 = vpop.f32.mrb[0].mxu0
  %3597 = vdwg.mxu0
  %v3600 = vunpack.c.l.s4 1966171168
  %v3601 = vunpack.c.0.s8 %v3600
  %v3602 = vlaneseq
  %v3603 = vshrl.u32 %v3602, 7
  %v3604 = vsub.s32 %v3601, %v3603
  %v3605 = vrot.slane %v3593, %v3604
  %v3606 = vcombine.high %v3605, %v3605
  %v3608 = vunpack.c.l.s4 1966171168
  %v3609 = vunpack.c.0.s8 %v3608
  %v3610 = vlaneseq
  %v3611 = vshrl.u32 %v3610, 7
  %v3612 = vsub.s32 %v3609, %v3611
  %v3613 = vrot.slane %v3605, %v3612
  %v3615 = vunpack.c.l.s4 1966171168
  %v3616 = vunpack.c.0.s8 %v3615
  %v3617 = vlaneseq
  %v3618 = vshrl.u32 %v3617, 7
  %v3619 = vsub.s32 %v3616, %v3618
  %v3620 = vrot.slane %v3606, %v3619
  %vm3623 = vcmp.ge.f32.partialorder %v3613, 0.0
  %vm3624 = vcmp.ge.f32.partialorder %v3620, 0.0
  %v3625 = vmul.f32 %v3613, 0.01
  %v3626 = vmul.f32 %v3620, 0.01
  %v3627 = vsel %vm3623, %v3613, %v3625
  %v3628 = vsel %vm3624, %v3620, %v3626
  %v3629 = vpack.c.bf16 %v3627, %v3627
  %v3630 = vpack.c.bf16 %v3628, %v3628
  %v3631 = vld [vmem:[%s11] sm:$0xf]
  %v3632 = vld [vmem:[%s11 + $0x4] sm:$0xf]
  %v3633 = vld [vmem:[%s11 + $0x8] sm:$0xf]
  %v3634 = vld [vmem:[%s11 + $0xc] sm:$0xf]
  %v3635 = vld [vmem:[%s11 + $0x10] sm:$0xf]
  %v3636 = vld [vmem:[%s11 + $0x14] sm:$0xf]
  %v3637 = vld [vmem:[%s11 + $0x18] sm:$0xf]
  %v3638 = vld [vmem:[%s11 + $0x1c] sm:$0xf]
  %v3639 = vld [vmem:[%s11 + $0x20] sm:$0xf]
  %v3640 = vld [vmem:[%s11 + $0x24] sm:$0xf]
  %v3641 = vld [vmem:[%s11 + $0x28] sm:$0xf]
  %v3642 = vld [vmem:[%s11 + $0x2c] sm:$0xf]
  %v3643 = vld [vmem:[%s11 + $0x30] sm:$0xf]
  %v3644 = vld [vmem:[%s11 + $0x34] sm:$0xf]
  %v3645 = vld [vmem:[%s11 + $0x38] sm:$0xf]
  %v3646 = vld [vmem:[%s11 + $0x3c] sm:$0xf]
  %v3647 = vld [vmem:[%s12] sm:$0x1]
  %v3649 = vlaneseq
  %v3650 = vshrl.u32 %v3649, 7
  %v3651 = vsub.s32 0, %v3650
  %v3652 = vrot.slane %v3647, %v3651
  %v3656 = vunpack.c.l.b16 %v3629
  %v3657 = vunpack.c.l.b16 %v3630
  %v3658 = vrot.slane %v3657, 7
  %v3659 = vsel %vm3240, %v3658, %v3656
  %v3660 = vpack.c.b16 %v3659, %v3659
  %v3678 = vunpack.c.l.b16 %v3631
  %v3679 = vunpack.c.l.b16 %v3632
  %v3680 = vunpack.c.l.b16 %v3633
  %v3681 = vunpack.c.l.b16 %v3634
  %v3682 = vunpack.c.l.b16 %v3635
  %v3683 = vunpack.c.l.b16 %v3636
  %v3684 = vunpack.c.l.b16 %v3637
  %v3685 = vunpack.c.l.b16 %v3638
  %v3686 = vunpack.c.l.b16 %v3639
  %v3687 = vunpack.c.l.b16 %v3640
  %v3688 = vunpack.c.l.b16 %v3641
  %v3689 = vunpack.c.l.b16 %v3642
  %v3690 = vunpack.c.l.b16 %v3643
  %v3691 = vunpack.c.l.b16 %v3644
  %v3692 = vunpack.c.l.b16 %v3645
  %v3693 = vunpack.c.l.b16 %v3646
  %v3694 = vpack.c.b16 %v3679, %v3678
  %v3695 = vpack.c.b16 %v3681, %v3680
  %v3696 = vpack.c.b16 %v3683, %v3682
  %v3697 = vpack.c.b16 %v3685, %v3684
  %v3698 = vpack.c.b16 %v3687, %v3686
  %v3699 = vpack.c.b16 %v3689, %v3688
  %v3700 = vpack.c.b16 %v3691, %v3690
  %v3701 = vpack.c.b16 %v3693, %v3692
  %3710 = vmatprep.subr.bf16.mxu0 0
  %3711 = vmatpush1.bf16.msra.mxu0 %v3694
  %3712 = vmatprep.subr.bf16.mxu0 0
  %3713 = vmatpush1.bf16.msra.mxu0 %v3695
  %3714 = vmatprep.subr.bf16.mxu0 0
  %3715 = vmatpush1.bf16.msra.mxu0 %v3696
  %3716 = vmatprep.subr.bf16.mxu0 0
  %3717 = vmatpush1.bf16.msra.mxu0 %v3697
  %3718 = vmatprep.subr.bf16.mxu0 0
  %3719 = vmatpush1.bf16.msra.mxu0 %v3698
  %3720 = vmatprep.subr.bf16.mxu0 0
  %3721 = vmatpush1.bf16.msra.mxu0 %v3699
  %3722 = vmatprep.subr.bf16.mxu0 0
  %3723 = vmatpush1.bf16.msra.mxu0 %v3700
  %3724 = vmatprep.subr.bf16.mxu0 0
  %3725 = vmatpush1.bf16.msra.mxu0 %v3701
  %3726 = vmatprep.subr.bf16.mxu0 0
  %3727 = vmatpush1.bf16.msra.mxu0 0
  %3728 = vmatprep.subr.bf16.mxu0 0
  %3729 = vmatpush1.bf16.msra.mxu0 0
  %3730 = vmatprep.subr.bf16.mxu0 0
  %3731 = vmatpush1.bf16.msra.mxu0 0
  %3732 = vmatprep.subr.bf16.mxu0 0
  %3733 = vmatpush1.bf16.msra.mxu0 0
  %3734 = vmatprep.subr.bf16.mxu0 0
  %3735 = vmatpush1.bf16.msra.mxu0 0
  %3736 = vmatprep.subr.bf16.mxu0 0
  %3737 = vmatpush1.bf16.msra.mxu0 0
  %3738 = vmatprep.subr.bf16.mxu0 0
  %3739 = vmatpush1.bf16.msra.mxu0 0
  %3740 = vmatprep.subr.bf16.mxu0 0
  %3741 = vmatpush1.bf16.msra.mxu0 0
  %3742 = vmatprep.mubr.bf16.mxu0 0
  %3743 = vmatmul.mubr.bf16.gmra.mrb[0].mxu0 %v3660
  %v3744 = vpop.f32.mrb[0].mxu0
  %v3745 = vadd.f32 %v3652, %v3744
  %v3746 = vpop.f32.mrb[0].mxu0
  %v3747 = vpop.f32.mrb[0].mxu0
  %v3748 = vpop.f32.mrb[0].mxu0
  %3749 = vdwg.mxu0
  %v3752 = vunpack.c.l.s4 1966171168
  %v3753 = vunpack.c.0.s8 %v3752
  %v3754 = vlaneseq
  %v3755 = vshrl.u32 %v3754, 7
  %v3756 = vsub.s32 %v3753, %v3755
  %v3757 = vrot.slane %v3745, %v3756
  %v3758 = vcombine.high %v3757, %v3757
  %v3760 = vunpack.c.l.s4 1966171168
  %v3761 = vunpack.c.0.s8 %v3760
  %v3762 = vlaneseq
  %v3763 = vshrl.u32 %v3762, 7
  %v3764 = vsub.s32 %v3761, %v3763
  %v3765 = vrot.slane %v3757, %v3764
  %v3767 = vunpack.c.l.s4 1966171168
  %v3768 = vunpack.c.0.s8 %v3767
  %v3769 = vlaneseq
  %v3770 = vshrl.u32 %v3769, 7
  %v3771 = vsub.s32 %v3768, %v3770
  %v3772 = vrot.slane %v3758, %v3771
  %3775 = vst.msk [vmem:[%s13] sm:$0x1] %vm222, %v3765
  %3776 = vst.msk [vmem:[%s13 + $0x1] sm:$0x1] %vm222, %v3772
  // Predicated region
  $region54: #{vanilla_encoder_forward.1} parent=0 // pred_check
    _
  $region55: #{vanilla_encoder_forward.1} parent=0 // pred_check_branch
    %3778 = sbr.rel (0) target = $region57
  $region56: #{vanilla_encoder_forward.1} parent=0 // pred_region
    _
  $region57: #{vanilla_encoder_forward.1} parent=0 // pred_fallthru
    _
  // Predicated region
  $region58: #{vanilla_encoder_forward.1} parent=0 // pred_check
    _
  $region59: #{vanilla_encoder_forward.1} parent=0 // pred_check_branch
    %3780 = sbr.rel (0) target = $region61
  $region60: #{vanilla_encoder_forward.1} parent=0 // pred_region
    _
  $region61: #{vanilla_encoder_forward.1} parent=0 // pred_fallthru
    _

</llo_original>
